<compile_context>
chip_gen: v7x
topology: tpu7x:2x2x1
jax: 0.10.0
libtpu: 0.0.40
codegen_flags: <defaults>
</compile_context>

<pallas_src>
import functools

import jax
import jax.numpy as jnp
from jax import lax
from jax.experimental import pallas as pl
from jax.experimental.pallas import tpu as pltpu

LANE = 128      # f32 lane width
SUBLANE = 8     # f32 sublane count


def _round_up(n, m):
    return ((n + m - 1) // m) * m


# ----------------------------------------------------------------------------
# In-kernel helpers
# ----------------------------------------------------------------------------
def _lstm_cell(gates, c, Hp):
    """gates: (B, 4*Hp) with lane-aligned gate blocks [i | f | g | o]."""
    i_g = jax.nn.sigmoid(gates[:, 0 * Hp:1 * Hp])
    f_g = jax.nn.sigmoid(gates[:, 1 * Hp:2 * Hp])
    g_g = jnp.tanh(gates[:, 2 * Hp:3 * Hp])
    o_g = jax.nn.sigmoid(gates[:, 3 * Hp:4 * Hp])
    c_new = f_g * c + i_g * g_g
    h_new = o_g * jnp.tanh(c_new)
    return h_new, c_new


# ----------------------------------------------------------------------------
# Pallas kernels
# ----------------------------------------------------------------------------
def _bilstm_layer_kernel(x_ref, wih_f_ref, whh_f_ref, b_f_ref,
                         wih_b_ref, whh_b_ref, b_b_ref,
                         out_ref, gx_f, gx_b, hf, cf, hb, cb):
    """One bidirectional LSTM layer, full sequence output.

    x_ref   : (T*B, D_in)   time-major, flattened (row block t*B..t*B+B-1 = step t)
    wih_*   : (D_in, 4*Hp)  (pre-transposed, gate blocks lane-aligned)
    whh_*   : (Hp,  4*Hp)
    b_*     : (1,   4*Hp)   (b_ih + b_hh)
    out_ref : (T*B, 2*Hp)   fwd hidden in cols [0:Hp], bwd hidden in cols [Hp:2Hp]
    gx_*    : (T*B, 4*Hp)   scratch: precomputed input projections
    hf,cf,hb,cb : (B, Hp)   scratch: recurrent state
    """
    B, Hp = hf.shape
    T = x_ref.shape[0] // B

    # Hoisted input projection: one big GEMM per direction, bias folded in.
    x_all = x_ref[...]
    gx_f[...] = jnp.dot(x_all, wih_f_ref[...],
                        preferred_element_type=jnp.float32) + b_f_ref[...]
    gx_b[...] = jnp.dot(x_all, wih_b_ref[...],
                        preferred_element_type=jnp.float32) + b_b_ref[...]

    hf[...] = jnp.zeros_like(hf)
    cf[...] = jnp.zeros_like(cf)
    hb[...] = jnp.zeros_like(hb)
    cb[...] = jnp.zeros_like(cb)

    # Loop-invariant weight loads hoisted out of the recurrent loop.
    whh_f = whh_f_ref[...]
    whh_b = whh_b_ref[...]

    def step(t, carry):
        tb = T - 1 - t
        rf = pl.multiple_of(t * B, B)
        rb = pl.multiple_of(tb * B, B)
        gates_f = gx_f[pl.ds(rf, B), :] + jnp.dot(
            hf[...], whh_f, preferred_element_type=jnp.float32)
        gates_b = gx_b[pl.ds(rb, B), :] + jnp.dot(
            hb[...], whh_b, preferred_element_type=jnp.float32)
        h_f, c_f = _lstm_cell(gates_f, cf[...], Hp)
        h_b, c_b = _lstm_cell(gates_b, cb[...], Hp)
        hf[...] = h_f
        cf[...] = c_f
        hb[...] = h_b
        cb[...] = c_b
        out_ref[pl.ds(rf, B), 0:Hp] = h_f
        out_ref[pl.ds(rb, B), Hp:2 * Hp] = h_b
        return carry

    lax.fori_loop(0, T, step, 0)


def _bilstm_top_kernel(x_ref, wih_f_ref, whh_f_ref, b_f_ref,
                       wih_b_ref, whh_b_ref, b_b_ref,
                       wfc_ref, bfc_ref, out_ref,
                       gx_f, gx_b, hf, cf, hb, cb, hb_last):
    """Top bidirectional layer fused with Linear + softmax epilogue.

    Does not materialize the full sequence output: only the forward hidden at
    t = T-1 (final hf) and the backward hidden at position T-1 (first backward
    step) are needed for fc(out[:, -1, :]).

    wfc_ref : (2*Hp, Op)  rows [0:Hp] = fwd part, [Hp:2Hp] = bwd part
    bfc_ref : (1, Op)     padded output columns carry -1e30 so softmax ignores them
    out_ref : (B, Op)     softmax probabilities
    """
    B, Hp = hf.shape
    T = x_ref.shape[0] // B

    x_all = x_ref[...]
    gx_f[...] = jnp.dot(x_all, wih_f_ref[...],
                        preferred_element_type=jnp.float32) + b_f_ref[...]
    gx_b[...] = jnp.dot(x_all, wih_b_ref[...],
                        preferred_element_type=jnp.float32) + b_b_ref[...]

    hf[...] = jnp.zeros_like(hf)
    cf[...] = jnp.zeros_like(cf)
    hb[...] = jnp.zeros_like(hb)
    cb[...] = jnp.zeros_like(cb)
    hb_last[...] = jnp.zeros_like(hb_last)

    whh_f = whh_f_ref[...]
    whh_b = whh_b_ref[...]

    def step(t, carry):
        tb = T - 1 - t
        rf = pl.multiple_of(t * B, B)
        rb = pl.multiple_of(tb * B, B)
        gates_f = gx_f[pl.ds(rf, B), :] + jnp.dot(
            hf[...], whh_f, preferred_element_type=jnp.float32)
        gates_b = gx_b[pl.ds(rb, B), :] + jnp.dot(
            hb[...], whh_b, preferred_element_type=jnp.float32)
        h_f, c_f = _lstm_cell(gates_f, cf[...], Hp)
        h_b, c_b = _lstm_cell(gates_b, cb[...], Hp)
        hf[...] = h_f
        cf[...] = c_f
        hb[...] = h_b
        cb[...] = c_b

        # Backward hidden at sequence position T-1 is produced by its first step.
        @pl.when(t == 0)
        def _():
            hb_last[...] = h_b

        return carry

    lax.fori_loop(0, T, step, 0)

    # Fused FC + softmax epilogue (no concat needed: split the FC weight rows).
    logits = (
        jnp.dot(hf[...], wfc_ref[0:Hp, :], preferred_element_type=jnp.float32)
        + jnp.dot(hb_last[...], wfc_ref[Hp:2 * Hp, :],
                  preferred_element_type=jnp.float32)
        + bfc_ref[...]
    )
    m = jnp.max(logits, axis=1, keepdims=True)
    e = jnp.exp(logits - m)
    denom = jnp.sum(e, axis=1, keepdims=True)
    out_ref[...] = e * pl.reciprocal(denom, approx=True)


# ----------------------------------------------------------------------------
# pallas_call wrappers
# ----------------------------------------------------------------------------
def _run_bilstm_layer(x_flat, p, Bp):
    TB = x_flat.shape[0]
    Hp = p["whh_fwd"].shape[0]
    vmem = pl.BlockSpec(memory_space=pltpu.MemorySpace.VMEM)
    return pl.pallas_call(
        _bilstm_layer_kernel,
        out_shape=jax.ShapeDtypeStruct((TB, 2 * Hp), jnp.float32),
        in_specs=[vmem] * 7,
        out_specs=vmem,
        scratch_shapes=[
            pltpu.VMEM((TB, 4 * Hp), jnp.float32),
            pltpu.VMEM((TB, 4 * Hp), jnp.float32),
            pltpu.VMEM((Bp, Hp), jnp.float32),
            pltpu.VMEM((Bp, Hp), jnp.float32),
            pltpu.VMEM((Bp, Hp), jnp.float32),
            pltpu.VMEM((Bp, Hp), jnp.float32),
        ],
    )(x_flat, p["wih_fwd"], p["whh_fwd"], p["b_fwd"],
      p["wih_bwd"], p["whh_bwd"], p["b_bwd"])


def _run_bilstm_top(x_flat, p, fc_w, fc_b, Bp):
    TB = x_flat.shape[0]
    Hp = p["whh_fwd"].shape[0]
    Op = fc_w.shape[1]
    vmem = pl.BlockSpec(memory_space=pltpu.MemorySpace.VMEM)
    return pl.pallas_call(
        _bilstm_top_kernel,
        out_shape=jax.ShapeDtypeStruct((Bp, Op), jnp.float32),
        in_specs=[vmem] * 9,
        out_specs=vmem,
        scratch_shapes=[
            pltpu.VMEM((TB, 4 * Hp), jnp.float32),
            pltpu.VMEM((TB, 4 * Hp), jnp.float32),
            pltpu.VMEM((Bp, Hp), jnp.float32),
            pltpu.VMEM((Bp, Hp), jnp.float32),
            pltpu.VMEM((Bp, Hp), jnp.float32),
            pltpu.VMEM((Bp, Hp), jnp.float32),
            pltpu.VMEM((Bp, Hp), jnp.float32),
        ],
    )(x_flat, p["wih_fwd"], p["whh_fwd"], p["b_fwd"],
      p["wih_bwd"], p["whh_bwd"], p["b_bwd"], fc_w, fc_b)


# ----------------------------------------------------------------------------
# Forward pass (matches the PyTorch module's forward())
# ----------------------------------------------------------------------------
@functools.partial(jax.jit, static_argnames=("num_layers", "output_size"))
def bilstm_forward(x, padded_params, num_layers, output_size):
    """x: (B, T, input_size) batch-first. Returns (B, output_size) softmax."""
    B, T, D = x.shape
    Dp = padded_params["lstm"][0]["wih_fwd"].shape[0]
    Bp = _round_up(B, SUBLANE)

    # Time-major, padded, flattened to (T*Bp, Dp): rows [t*Bp, (t+1)*Bp) = step t.
    xt = jnp.transpose(x, (1, 0, 2)).astype(jnp.float32)     # (T, B, D)
    xt = jnp.pad(xt, ((0, 0), (0, Bp - B), (0, Dp - D)))
    layer_in = xt.reshape(T * Bp, Dp)

    for layer in range(num_layers - 1):
        layer_in = _run_bilstm_layer(layer_in, padded_params["lstm"][layer], Bp)

    probs = _run_bilstm_top(layer_in, padded_params["lstm"][num_layers - 1],
                            padded_params["fc_w"], padded_params["fc_b"], Bp)
    return probs[:B, :output_size]


# ----------------------------------------------------------------------------
# Parameter construction (PyTorch shapes) and padding/layout preparation
# ----------------------------------------------------------------------------
def make_params(key, input_size, hidden_size, output_size, num_layers):
    """Synthetic parameters in exact PyTorch nn.LSTM / nn.Linear shapes."""
    H = hidden_size
    scale = 0.1
    params = {"lstm": []}
    for layer in range(num_layers):
        d_in = input_size if layer == 0 else 2 * H
        lp = {}
        for d in ("fwd", "bwd"):
            key, k1, k2, k3, k4 = jax.random.split(key, 5)
            lp[f"w_ih_{d}"] = jax.random.normal(k1, (4 * H, d_in), jnp.float32) * scale
            lp[f"w_hh_{d}"] = jax.random.normal(k2, (4 * H, H), jnp.float32) * scale
            lp[f"b_ih_{d}"] = jax.random.normal(k3, (4 * H,), jnp.float32) * scale
            lp[f"b_hh_{d}"] = jax.random.normal(k4, (4 * H,), jnp.float32) * scale
        params["lstm"].append(lp)
    key, kw, kb = jax.random.split(key, 3)
    params["fc_w"] = jax.random.normal(kw, (output_size, 2 * H), jnp.float32) * scale
    params["fc_b"] = jax.random.normal(kb, (output_size,), jnp.float32) * scale
    return params


def prepare_params(params, input_size, hidden_size, output_size, num_layers):
    """Transpose + pad PyTorch-shaped weights into the lane-aligned kernel layout.

    Gate k (i,f,g,o) occupies columns [k*Hp, k*Hp + H) of the 4*Hp gate axis;
    all padded rows/columns are zero so padded hidden lanes remain exactly 0.
    """
    H = hidden_size
    Hp = _round_up(H, LANE)
    Op = _round_up(output_size, LANE)
    D0p = _round_up(input_size, LANE)

    def pad_wih(w, layer):
        wt = w.T.astype(jnp.float32)                    # (d_in, 4H)
        if layer == 0:
            d_pad = D0p
            placements = [(0, input_size, 0)]           # real input rows -> rows 0..D-1
        else:
            d_pad = 2 * Hp
            placements = [(0, H, 0), (H, H, Hp)]        # fwd rows -> 0.., bwd rows -> Hp..
        out = jnp.zeros((d_pad, 4 * Hp), jnp.float32)
        for (s0, n, d0) in placements:
            for k in range(4):
                out = out.at[d0:d0 + n, k * Hp:k * Hp + H].set(
                    wt[s0:s0 + n, k * H:(k + 1) * H])
        return out

    def pad_whh(w):
        wt = w.T.astype(jnp.float32)                    # (H, 4H)
        out = jnp.zeros((Hp, 4 * Hp), jnp.float32)
        for k in range(4):
            out = out.at[:H, k * Hp:k * Hp + H].set(wt[:, k * H:(k + 1) * H])
        return out

    def pad_bias(b):
        out = jnp.zeros((1, 4 * Hp), jnp.float32)
        for k in range(4):
            out = out.at[0, k * Hp:k * Hp + H].set(b[k * H:(k + 1) * H])
        return out

    padded = {"lstm": []}
    for layer in range(num_layers):
        lp = params["lstm"][layer]
        pp = {}
        for d in ("fwd", "bwd"):
            pp[f"wih_{d}"] = pad_wih(lp[f"w_ih_{d}"], layer)
            pp[f"whh_{d}"] = pad_whh(lp[f"w_hh_{d}"])
            pp[f"b_{d}"] = pad_bias(lp[f"b_ih_{d}"] + lp[f"b_hh_{d}"])
        padded["lstm"].append(pp)

    fcw = jnp.zeros((2 * Hp, Op), jnp.float32)
    wt = params["fc_w"].T.astype(jnp.float32)           # (2H, O)
    fcw = fcw.at[:H, :output_size].set(wt[:H])
    fcw = fcw.at[Hp:Hp + H, :output_size].set(wt[H:2 * H])
    # Padded output columns get a huge negative bias so softmax assigns them 0.
    fcb = jnp.full((1, Op), -1e30, jnp.float32)
    fcb = fcb.at[0, :output_size].set(params["fc_b"].astype(jnp.float32))

    padded["fc_w"] = fcw
    padded["fc_b"] = fcb
    return padded


# ----------------------------------------------------------------------------
# Pure-JAX reference mirroring the PyTorch forward (for correctness check)
# ----------------------------------------------------------------------------
def bilstm_reference(x, params, num_layers):
    def run_dir(xs, w_ih, w_hh, b_ih, b_hh):
        T, B, _ = xs.shape
        H = w_hh.shape[1]

        def step(carry, x_t):
            h, c = carry
            gates = x_t @ w_ih.T + h @ w_hh.T + b_ih + b_hh
            i = jax.nn.sigmoid(gates[:, 0:H])
            f = jax.nn.sigmoid(gates[:, H:2 * H])
            g = jnp.tanh(gates[:, 2 * H:3 * H])
            o = jax.nn.sigmoid(gates[:, 3 * H:4 * H])
            c = f * c + i * g
            h = o * jnp.tanh(c)
            return (h, c), h

        h0 = jnp.zeros((B, H), jnp.float32)
        c0 = jnp.zeros((B, H), jnp.float32)
        _, hs = lax.scan(step, (h0, c0), xs)
        return hs

    xt = jnp.transpose(x, (1, 0, 2)).astype(jnp.float32)
    layer_in = xt
    for l in range(num_layers):
        p = params["lstm"][l]
        hf = run_dir(layer_in, p["w_ih_fwd"], p["w_hh_fwd"], p["b_ih_fwd"], p["b_hh_fwd"])
        hb = run_dir(layer_in[::-1], p["w_ih_bwd"], p["w_hh_bwd"],
                     p["b_ih_bwd"], p["b_hh_bwd"])[::-1]
        layer_in = jnp.concatenate([hf, hb], axis=-1)
    feats = layer_in[-1]
    logits = feats @ params["fc_w"].T + params["fc_b"]
    return jax.nn.softmax(logits, axis=1)


# ----------------------------------------------------------------------------
if __name__ == "__main__":
    BATCH = 2
    SEQ = 8
    INPUT_SIZE = 16
    HIDDEN_SIZE = 32
    OUTPUT_SIZE = 8
    NUM_LAYERS = 2

    key = jax.random.PRNGKey(0)
    key, kx = jax.random.split(key)
    x = jax.random.normal(kx, (BATCH, SEQ, INPUT_SIZE), jnp.float32)

    params = make_params(key, INPUT_SIZE, HIDDEN_SIZE, OUTPUT_SIZE, NUM_LAYERS)
    padded = prepare_params(params, INPUT_SIZE, HIDDEN_SIZE, OUTPUT_SIZE, NUM_LAYERS)

    out = bilstm_forward(x, padded, NUM_LAYERS, OUTPUT_SIZE)
    out = jax.block_until_ready(out)

    assert out.shape == (BATCH, OUTPUT_SIZE)
    # softmax rows should sum to 1 (approx reciprocal -> slightly looser tol)
    assert bool(jnp.allclose(jnp.sum(out, axis=1), 1.0, atol=2e-3))

    # Cross-check the Pallas kernels against a pure-JAX PyTorch-semantics reference.
    ref = bilstm_reference(x, params, NUM_LAYERS)
    assert bool(jnp.allclose(out, ref, atol=2e-3, rtol=2e-3))

    print("KERNEL_OK")
</pallas_src>

<mosaic_0001>
module attributes {stable_mosaic.version = 11 : i64} {
  func.func @_bilstm_layer_kernel(%arg0: memref<64x128xf32, #tpu.memory_space<vmem>>, %arg1: memref<128x512xf32, #tpu.memory_space<vmem>>, %arg2: memref<128x512xf32, #tpu.memory_space<vmem>>, %arg3: memref<1x512xf32, #tpu.memory_space<vmem>>, %arg4: memref<128x512xf32, #tpu.memory_space<vmem>>, %arg5: memref<128x512xf32, #tpu.memory_space<vmem>>, %arg6: memref<1x512xf32, #tpu.memory_space<vmem>>, %arg7: memref<64x256xf32, #tpu.memory_space<vmem>>, %arg8: memref<64x512xf32, #tpu.memory_space<vmem>>, %arg9: memref<64x512xf32, #tpu.memory_space<vmem>>, %arg10: memref<8x128xf32, #tpu.memory_space<vmem>>, %arg11: memref<8x128xf32, #tpu.memory_space<vmem>>, %arg12: memref<8x128xf32, #tpu.memory_space<vmem>>, %arg13: memref<8x128xf32, #tpu.memory_space<vmem>>) attributes {dimension_semantics = [], scalar_prefetch = 0 : i64, scratch_operands = 6 : i64, tpu.core_type = #tpu.core_type<tc>} {
    %c0 = arith.constant 0 : index
    %c0_0 = arith.constant 0 : index
    %0 = vector.load %arg0[%c0, %c0_0] : memref<64x128xf32, #tpu.memory_space<vmem>>, vector<64x128xf32>
    %c0_1 = arith.constant 0 : index
    %c0_2 = arith.constant 0 : index
    %1 = vector.load %arg1[%c0_1, %c0_2] : memref<128x512xf32, #tpu.memory_space<vmem>>, vector<128x512xf32>
    %cst = arith.constant dense<0.000000e+00> : vector<64x512xf32>
    %2 = tpu.matmul %0, %1, %cst {dimension_numbers = #tpu.dot_dimension_numbers<[1], [0], [0], [1], [0, 0, 1, 1], [], []>} : vector<64x128xf32>, vector<128x512xf32>, vector<64x512xf32> -> vector<64x512xf32>
    %c0_3 = arith.constant 0 : index
    %c0_4 = arith.constant 0 : index
    %3 = vector.load %arg3[%c0_3, %c0_4] : memref<1x512xf32, #tpu.memory_space<vmem>>, vector<1x512xf32>
    %4 = vector.broadcast %3 : vector<1x512xf32> to vector<64x512xf32>
    %5 = arith.addf %2, %4 : vector<64x512xf32>
    %c0_5 = arith.constant 0 : index
    %c0_6 = arith.constant 0 : index
    %6 = vector.load %arg8[%c0_5, %c0_6] : memref<64x512xf32, #tpu.memory_space<vmem>>, vector<64x512xf32>
    tpu.vector_store %arg8[%c0_5, %c0_6], %5 {strides = array<i32>} : memref<64x512xf32, #tpu.memory_space<vmem>>, vector<64x512xf32>,
    %c0_7 = arith.constant 0 : index
    %c0_8 = arith.constant 0 : index
    %7 = vector.load %arg4[%c0_7, %c0_8] : memref<128x512xf32, #tpu.memory_space<vmem>>, vector<128x512xf32>
    %cst_9 = arith.constant dense<0.000000e+00> : vector<64x512xf32>
    %8 = tpu.matmul %0, %7, %cst_9 {dimension_numbers = #tpu.dot_dimension_numbers<[1], [0], [0], [1], [0, 0, 1, 1], [], []>} : vector<64x128xf32>, vector<128x512xf32>, vector<64x512xf32> -> vector<64x512xf32>
    %c0_10 = arith.constant 0 : index
    %c0_11 = arith.constant 0 : index
    %9 = vector.load %arg6[%c0_10, %c0_11] : memref<1x512xf32, #tpu.memory_space<vmem>>, vector<1x512xf32>
    %10 = vector.broadcast %9 : vector<1x512xf32> to vector<64x512xf32>
    %11 = arith.addf %8, %10 : vector<64x512xf32>
    %c0_12 = arith.constant 0 : index
    %c0_13 = arith.constant 0 : index
    %12 = vector.load %arg9[%c0_12, %c0_13] : memref<64x512xf32, #tpu.memory_space<vmem>>, vector<64x512xf32>
    tpu.vector_store %arg9[%c0_12, %c0_13], %11 {strides = array<i32>} : memref<64x512xf32, #tpu.memory_space<vmem>>, vector<64x512xf32>,
    %cst_14 = arith.constant 0.000000e+00 : f32
    %13 = vector.broadcast %cst_14 : f32 to vector<8x128xf32>
    %c0_15 = arith.constant 0 : index
    %c0_16 = arith.constant 0 : index
    %14 = vector.load %arg10[%c0_15, %c0_16] : memref<8x128xf32, #tpu.memory_space<vmem>>, vector<8x128xf32>
    tpu.vector_store %arg10[%c0_15, %c0_16], %13 {strides = array<i32>} : memref<8x128xf32, #tpu.memory_space<vmem>>, vector<8x128xf32>,
    %cst_17 = arith.constant 0.000000e+00 : f32
    %15 = vector.broadcast %cst_17 : f32 to vector<8x128xf32>
    %c0_18 = arith.constant 0 : index
    %c0_19 = arith.constant 0 : index
    %16 = vector.load %arg11[%c0_18, %c0_19] : memref<8x128xf32, #tpu.memory_space<vmem>>, vector<8x128xf32>
    tpu.vector_store %arg11[%c0_18, %c0_19], %15 {strides = array<i32>} : memref<8x128xf32, #tpu.memory_space<vmem>>, vector<8x128xf32>,
    %cst_20 = arith.constant 0.000000e+00 : f32
    %17 = vector.broadcast %cst_20 : f32 to vector<8x128xf32>
    %c0_21 = arith.constant 0 : index
    %c0_22 = arith.constant 0 : index
    %18 = vector.load %arg12[%c0_21, %c0_22] : memref<8x128xf32, #tpu.memory_space<vmem>>, vector<8x128xf32>
    tpu.vector_store %arg12[%c0_21, %c0_22], %17 {strides = array<i32>} : memref<8x128xf32, #tpu.memory_space<vmem>>, vector<8x128xf32>,
    %cst_23 = arith.constant 0.000000e+00 : f32
    %19 = vector.broadcast %cst_23 : f32 to vector<8x128xf32>
    %c0_24 = arith.constant 0 : index
    %c0_25 = arith.constant 0 : index
    %20 = vector.load %arg13[%c0_24, %c0_25] : memref<8x128xf32, #tpu.memory_space<vmem>>, vector<8x128xf32>
    tpu.vector_store %arg13[%c0_24, %c0_25], %19 {strides = array<i32>} : memref<8x128xf32, #tpu.memory_space<vmem>>, vector<8x128xf32>,
    %c0_26 = arith.constant 0 : index
    %c0_27 = arith.constant 0 : index
    %21 = vector.load %arg2[%c0_26, %c0_27] : memref<128x512xf32, #tpu.memory_space<vmem>>, vector<128x512xf32>
    %c0_28 = arith.constant 0 : index
    %c0_29 = arith.constant 0 : index
    %22 = vector.load %arg5[%c0_28, %c0_29] : memref<128x512xf32, #tpu.memory_space<vmem>>, vector<128x512xf32>
    %c0_i32 = arith.constant 0 : i32
    %c8_i32 = arith.constant 8 : i32
    %23 = arith.addi %c0_i32, %c8_i32 : i32
    %c1_i32 = arith.constant 1 : i32
    scf.for %arg14 = %c0_i32 to %23 step %c1_i32  : i32 {
      %c7_i32 = arith.constant 7 : i32
      %24 = arith.subi %c7_i32, %arg14 : i32
      %c8_i32_31 = arith.constant 8 : i32
      %25 = arith.muli %arg14, %c8_i32_31 : i32
      %26 = tpu.assume_multiple %25, 8 : i32
      %c8_i32_32 = arith.constant 8 : i32
      %27 = arith.muli %24, %c8_i32_32 : i32
      %28 = tpu.assume_multiple %27, 8 : i32
      %29 = arith.index_cast %26 : i32 to index
      %c0_33 = arith.constant 0 : index
      %30 = vector.load %arg8[%29, %c0_33] : memref<64x512xf32, #tpu.memory_space<vmem>>, vector<8x512xf32>
      %c0_34 = arith.constant 0 : index
      %c0_35 = arith.constant 0 : index
      %31 = vector.load %arg10[%c0_34, %c0_35] : memref<8x128xf32, #tpu.memory_space<vmem>>, vector<8x128xf32>
      %cst_36 = arith.constant dense<0.000000e+00> : vector<8x512xf32>
      %32 = tpu.matmul %31, %21, %cst_36 {dimension_numbers = #tpu.dot_dimension_numbers<[1], [0], [0], [1], [0, 0, 1, 1], [], []>} : vector<8x128xf32>, vector<128x512xf32>, vector<8x512xf32> -> vector<8x512xf32>
      %33 = arith.addf %30, %32 : vector<8x512xf32>
      %34 = arith.index_cast %28 : i32 to index
      %c0_37 = arith.constant 0 : index
      %35 = vector.load %arg9[%34, %c0_37] : memref<64x512xf32, #tpu.memory_space<vmem>>, vector<8x512xf32>
      %c0_38 = arith.constant 0 : index
      %c0_39 = arith.constant 0 : index
      %36 = vector.load %arg12[%c0_38, %c0_39] : memref<8x128xf32, #tpu.memory_space<vmem>>, vector<8x128xf32>
      %cst_40 = arith.constant dense<0.000000e+00> : vector<8x512xf32>
      %37 = tpu.matmul %36, %22, %cst_40 {dimension_numbers = #tpu.dot_dimension_numbers<[1], [0], [0], [1], [0, 0, 1, 1], [], []>} : vector<8x128xf32>, vector<128x512xf32>, vector<8x512xf32> -> vector<8x512xf32>
      %38 = arith.addf %35, %37 : vector<8x512xf32>
      %c0_41 = arith.constant 0 : index
      %c0_42 = arith.constant 0 : index
      %39 = vector.load %arg11[%c0_41, %c0_42] : memref<8x128xf32, #tpu.memory_space<vmem>>, vector<8x128xf32>
      %40 = vector.extract_strided_slice %33 {offsets = [0, 0], sizes = [8, 128], strides = [1, 1]} : vector<8x512xf32> to vector<8x128xf32>
      %41 = arith.negf %40 : vector<8x128xf32>
      %42 = math.exp %41 : vector<8x128xf32>
      %cst_43 = arith.constant 1.000000e+00 : f32
      %43 = vector.broadcast %cst_43 : f32 to vector<8x128xf32>
      %44 = arith.addf %43, %42 : vector<8x128xf32>
      %45 = arith.divf %43, %44 : vector<8x128xf32>
      %46 = vector.extract_strided_slice %33 {offsets = [0, 128], sizes = [8, 128], strides = [1, 1]} : vector<8x512xf32> to vector<8x128xf32>
      %47 = arith.negf %46 : vector<8x128xf32>
      %48 = math.exp %47 : vector<8x128xf32>
      %cst_44 = arith.constant 1.000000e+00 : f32
      %49 = vector.broadcast %cst_44 : f32 to vector<8x128xf32>
      %50 = arith.addf %49, %48 : vector<8x128xf32>
      %51 = arith.divf %49, %50 : vector<8x128xf32>
      %52 = vector.extract_strided_slice %33 {offsets = [0, 256], sizes = [8, 128], strides = [1, 1]} : vector<8x512xf32> to vector<8x128xf32>
      %53 = math.tanh %52 : vector<8x128xf32>
      %54 = vector.extract_strided_slice %33 {offsets = [0, 384], sizes = [8, 128], strides = [1, 1]} : vector<8x512xf32> to vector<8x128xf32>
      %55 = arith.negf %54 : vector<8x128xf32>
      %56 = math.exp %55 : vector<8x128xf32>
      %cst_45 = arith.constant 1.000000e+00 : f32
      %57 = vector.broadcast %cst_45 : f32 to vector<8x128xf32>
      %58 = arith.addf %57, %56 : vector<8x128xf32>
      %59 = arith.divf %57, %58 : vector<8x128xf32>
      %60 = arith.mulf %51, %39 : vector<8x128xf32>
      %61 = arith.mulf %45, %53 : vector<8x128xf32>
      %62 = arith.addf %60, %61 : vector<8x128xf32>
      %63 = math.tanh %62 : vector<8x128xf32>
      %64 = arith.mulf %59, %63 : vector<8x128xf32>
      %c0_46 = arith.constant 0 : index
      %c0_47 = arith.constant 0 : index
      %65 = vector.load %arg13[%c0_46, %c0_47] : memref<8x128xf32, #tpu.memory_space<vmem>>, vector<8x128xf32>
      %66 = vector.extract_strided_slice %38 {offsets = [0, 0], sizes = [8, 128], strides = [1, 1]} : vector<8x512xf32> to vector<8x128xf32>
      %67 = arith.negf %66 : vector<8x128xf32>
      %68 = math.exp %67 : vector<8x128xf32>
      %cst_48 = arith.constant 1.000000e+00 : f32
      %69 = vector.broadcast %cst_48 : f32 to vector<8x128xf32>
      %70 = arith.addf %69, %68 : vector<8x128xf32>
      %71 = arith.divf %69, %70 : vector<8x128xf32>
      %72 = vector.extract_strided_slice %38 {offsets = [0, 128], sizes = [8, 128], strides = [1, 1]} : vector<8x512xf32> to vector<8x128xf32>
      %73 = arith.negf %72 : vector<8x128xf32>
      %74 = math.exp %73 : vector<8x128xf32>
      %cst_49 = arith.constant 1.000000e+00 : f32
      %75 = vector.broadcast %cst_49 : f32 to vector<8x128xf32>
      %76 = arith.addf %75, %74 : vector<8x128xf32>
      %77 = arith.divf %75, %76 : vector<8x128xf32>
      %78 = vector.extract_strided_slice %38 {offsets = [0, 256], sizes = [8, 128], strides = [1, 1]} : vector<8x512xf32> to vector<8x128xf32>
      %79 = math.tanh %78 : vector<8x128xf32>
      %80 = vector.extract_strided_slice %38 {offsets = [0, 384], sizes = [8, 128], strides = [1, 1]} : vector<8x512xf32> to vector<8x128xf32>
      %81 = arith.negf %80 : vector<8x128xf32>
      %82 = math.exp %81 : vector<8x128xf32>
      %cst_50 = arith.constant 1.000000e+00 : f32
      %83 = vector.broadcast %cst_50 : f32 to vector<8x128xf32>
      %84 = arith.addf %83, %82 : vector<8x128xf32>
      %85 = arith.divf %83, %84 : vector<8x128xf32>
      %86 = arith.mulf %77, %65 : vector<8x128xf32>
      %87 = arith.mulf %71, %79 : vector<8x128xf32>
      %88 = arith.addf %86, %87 : vector<8x128xf32>
      %89 = math.tanh %88 : vector<8x128xf32>
      %90 = arith.mulf %85, %89 : vector<8x128xf32>
      %c0_51 = arith.constant 0 : index
      %c0_52 = arith.constant 0 : index
      %91 = vector.load %arg10[%c0_51, %c0_52] : memref<8x128xf32, #tpu.memory_space<vmem>>, vector<8x128xf32>
      tpu.vector_store %arg10[%c0_51, %c0_52], %64 {strides = array<i32>} : memref<8x128xf32, #tpu.memory_space<vmem>>, vector<8x128xf32>,
      %c0_53 = arith.constant 0 : index
      %c0_54 = arith.constant 0 : index
      %92 = vector.load %arg11[%c0_53, %c0_54] : memref<8x128xf32, #tpu.memory_space<vmem>>, vector<8x128xf32>
      tpu.vector_store %arg11[%c0_53, %c0_54], %62 {strides = array<i32>} : memref<8x128xf32, #tpu.memory_space<vmem>>, vector<8x128xf32>,
      %c0_55 = arith.constant 0 : index
      %c0_56 = arith.constant 0 : index
      %93 = vector.load %arg12[%c0_55, %c0_56] : memref<8x128xf32, #tpu.memory_space<vmem>>, vector<8x128xf32>
      tpu.vector_store %arg12[%c0_55, %c0_56], %90 {strides = array<i32>} : memref<8x128xf32, #tpu.memory_space<vmem>>, vector<8x128xf32>,
      %c0_57 = arith.constant 0 : index
      %c0_58 = arith.constant 0 : index
      %94 = vector.load %arg13[%c0_57, %c0_58] : memref<8x128xf32, #tpu.memory_space<vmem>>, vector<8x128xf32>
      tpu.vector_store %arg13[%c0_57, %c0_58], %88 {strides = array<i32>} : memref<8x128xf32, #tpu.memory_space<vmem>>, vector<8x128xf32>,
      %95 = arith.index_cast %26 : i32 to index
      %c0_59 = arith.constant 0 : index
      %96 = vector.load %arg7[%95, %c0_59] : memref<64x256xf32, #tpu.memory_space<vmem>>, vector<8x128xf32>
      tpu.vector_store %arg7[%95, %c0_59], %64 {strides = array<i32>} : memref<64x256xf32, #tpu.memory_space<vmem>>, vector<8x128xf32>,
      %97 = arith.index_cast %28 : i32 to index
      %c128 = arith.constant 128 : index
      %98 = vector.load %arg7[%97, %c128] : memref<64x256xf32, #tpu.memory_space<vmem>>, vector<8x128xf32>
      tpu.vector_store %arg7[%97, %c128], %90 {strides = array<i32>} : memref<64x256xf32, #tpu.memory_space<vmem>>, vector<8x128xf32>,
    }
    %c8_i32_30 = arith.constant 8 : i32
    return
  }
}

module attributes {stable_mosaic.version = 11 : i64} {
  func.func @_bilstm_top_kernel(%arg0: memref<64x256xf32, #tpu.memory_space<vmem>>, %arg1: memref<256x512xf32, #tpu.memory_space<vmem>>, %arg2: memref<128x512xf32, #tpu.memory_space<vmem>>, %arg3: memref<1x512xf32, #tpu.memory_space<vmem>>, %arg4: memref<256x512xf32, #tpu.memory_space<vmem>>, %arg5: memref<128x512xf32, #tpu.memory_space<vmem>>, %arg6: memref<1x512xf32, #tpu.memory_space<vmem>>, %arg7: memref<256x128xf32, #tpu.memory_space<vmem>>, %arg8: memref<1x128xf32, #tpu.memory_space<vmem>>, %arg9: memref<8x128xf32, #tpu.memory_space<vmem>>, %arg10: memref<64x512xf32, #tpu.memory_space<vmem>>, %arg11: memref<64x512xf32, #tpu.memory_space<vmem>>, %arg12: memref<8x128xf32, #tpu.memory_space<vmem>>, %arg13: memref<8x128xf32, #tpu.memory_space<vmem>>, %arg14: memref<8x128xf32, #tpu.memory_space<vmem>>, %arg15: memref<8x128xf32, #tpu.memory_space<vmem>>, %arg16: memref<8x128xf32, #tpu.memory_space<vmem>>) attributes {dimension_semantics = [], scalar_prefetch = 0 : i64, scratch_operands = 7 : i64, tpu.core_type = #tpu.core_type<tc>} {
    %c0 = arith.constant 0 : index
    %c0_0 = arith.constant 0 : index
    %0 = vector.load %arg0[%c0, %c0_0] : memref<64x256xf32, #tpu.memory_space<vmem>>, vector<64x256xf32>
    %c0_1 = arith.constant 0 : index
    %c0_2 = arith.constant 0 : index
    %1 = vector.load %arg1[%c0_1, %c0_2] : memref<256x512xf32, #tpu.memory_space<vmem>>, vector<256x512xf32>
    %cst = arith.constant dense<0.000000e+00> : vector<64x512xf32>
    %2 = tpu.matmul %0, %1, %cst {dimension_numbers = #tpu.dot_dimension_numbers<[1], [0], [0], [1], [0, 0, 1, 1], [], []>} : vector<64x256xf32>, vector<256x512xf32>, vector<64x512xf32> -> vector<64x512xf32>
    %c0_3 = arith.constant 0 : index
    %c0_4 = arith.constant 0 : index
    %3 = vector.load %arg3[%c0_3, %c0_4] : memref<1x512xf32, #tpu.memory_space<vmem>>, vector<1x512xf32>
    %4 = vector.broadcast %3 : vector<1x512xf32> to vector<64x512xf32>
    %5 = arith.addf %2, %4 : vector<64x512xf32>
    %c0_5 = arith.constant 0 : index
    %c0_6 = arith.constant 0 : index
    %6 = vector.load %arg10[%c0_5, %c0_6] : memref<64x512xf32, #tpu.memory_space<vmem>>, vector<64x512xf32>
    tpu.vector_store %arg10[%c0_5, %c0_6], %5 {strides = array<i32>} : memref<64x512xf32, #tpu.memory_space<vmem>>, vector<64x512xf32>,
    %c0_7 = arith.constant 0 : index
    %c0_8 = arith.constant 0 : index
    %7 = vector.load %arg4[%c0_7, %c0_8] : memref<256x512xf32, #tpu.memory_space<vmem>>, vector<256x512xf32>
    %cst_9 = arith.constant dense<0.000000e+00> : vector<64x512xf32>
    %8 = tpu.matmul %0, %7, %cst_9 {dimension_numbers = #tpu.dot_dimension_numbers<[1], [0], [0], [1], [0, 0, 1, 1], [], []>} : vector<64x256xf32>, vector<256x512xf32>, vector<64x512xf32> -> vector<64x512xf32>
    %c0_10 = arith.constant 0 : index
    %c0_11 = arith.constant 0 : index
    %9 = vector.load %arg6[%c0_10, %c0_11] : memref<1x512xf32, #tpu.memory_space<vmem>>, vector<1x512xf32>
    %10 = vector.broadcast %9 : vector<1x512xf32> to vector<64x512xf32>
    %11 = arith.addf %8, %10 : vector<64x512xf32>
    %c0_12 = arith.constant 0 : index
    %c0_13 = arith.constant 0 : index
    %12 = vector.load %arg11[%c0_12, %c0_13] : memref<64x512xf32, #tpu.memory_space<vmem>>, vector<64x512xf32>
    tpu.vector_store %arg11[%c0_12, %c0_13], %11 {strides = array<i32>} : memref<64x512xf32, #tpu.memory_space<vmem>>, vector<64x512xf32>,
    %cst_14 = arith.constant 0.000000e+00 : f32
    %13 = vector.broadcast %cst_14 : f32 to vector<8x128xf32>
    %c0_15 = arith.constant 0 : index
    %c0_16 = arith.constant 0 : index
    %14 = vector.load %arg12[%c0_15, %c0_16] : memref<8x128xf32, #tpu.memory_space<vmem>>, vector<8x128xf32>
    tpu.vector_store %arg12[%c0_15, %c0_16], %13 {strides = array<i32>} : memref<8x128xf32, #tpu.memory_space<vmem>>, vector<8x128xf32>,
    %cst_17 = arith.constant 0.000000e+00 : f32
    %15 = vector.broadcast %cst_17 : f32 to vector<8x128xf32>
    %c0_18 = arith.constant 0 : index
    %c0_19 = arith.constant 0 : index
    %16 = vector.load %arg13[%c0_18, %c0_19] : memref<8x128xf32, #tpu.memory_space<vmem>>, vector<8x128xf32>
    tpu.vector_store %arg13[%c0_18, %c0_19], %15 {strides = array<i32>} : memref<8x128xf32, #tpu.memory_space<vmem>>, vector<8x128xf32>,
    %cst_20 = arith.constant 0.000000e+00 : f32
    %17 = vector.broadcast %cst_20 : f32 to vector<8x128xf32>
    %c0_21 = arith.constant 0 : index
    %c0_22 = arith.constant 0 : index
    %18 = vector.load %arg14[%c0_21, %c0_22] : memref<8x128xf32, #tpu.memory_space<vmem>>, vector<8x128xf32>
    tpu.vector_store %arg14[%c0_21, %c0_22], %17 {strides = array<i32>} : memref<8x128xf32, #tpu.memory_space<vmem>>, vector<8x128xf32>,
    %cst_23 = arith.constant 0.000000e+00 : f32
    %19 = vector.broadcast %cst_23 : f32 to vector<8x128xf32>
    %c0_24 = arith.constant 0 : index
    %c0_25 = arith.constant 0 : index
    %20 = vector.load %arg15[%c0_24, %c0_25] : memref<8x128xf32, #tpu.memory_space<vmem>>, vector<8x128xf32>
    tpu.vector_store %arg15[%c0_24, %c0_25], %19 {strides = array<i32>} : memref<8x128xf32, #tpu.memory_space<vmem>>, vector<8x128xf32>,
    %cst_26 = arith.constant 0.000000e+00 : f32
    %21 = vector.broadcast %cst_26 : f32 to vector<8x128xf32>
    %c0_27 = arith.constant 0 : index
    %c0_28 = arith.constant 0 : index
    %22 = vector.load %arg16[%c0_27, %c0_28] : memref<8x128xf32, #tpu.memory_space<vmem>>, vector<8x128xf32>
    tpu.vector_store %arg16[%c0_27, %c0_28], %21 {strides = array<i32>} : memref<8x128xf32, #tpu.memory_space<vmem>>, vector<8x128xf32>,
    %c0_29 = arith.constant 0 : index
    %c0_30 = arith.constant 0 : index
    %23 = vector.load %arg2[%c0_29, %c0_30] : memref<128x512xf32, #tpu.memory_space<vmem>>, vector<128x512xf32>
    %c0_31 = arith.constant 0 : index
    %c0_32 = arith.constant 0 : index
    %24 = vector.load %arg5[%c0_31, %c0_32] : memref<128x512xf32, #tpu.memory_space<vmem>>, vector<128x512xf32>
    %c0_i32 = arith.constant 0 : i32
    %c8_i32 = arith.constant 8 : i32
    %25 = arith.addi %c0_i32, %c8_i32 : i32
    %c1_i32 = arith.constant 1 : i32
    scf.for %arg17 = %c0_i32 to %25 step %c1_i32  : i32 {
      %c7_i32 = arith.constant 7 : i32
      %47 = arith.subi %c7_i32, %arg17 : i32
      %c8_i32_49 = arith.constant 8 : i32
      %48 = arith.muli %arg17, %c8_i32_49 : i32
      %49 = tpu.assume_multiple %48, 8 : i32
      %c8_i32_50 = arith.constant 8 : i32
      %50 = arith.muli %47, %c8_i32_50 : i32
      %51 = tpu.assume_multiple %50, 8 : i32
      %52 = arith.index_cast %49 : i32 to index
      %c0_51 = arith.constant 0 : index
      %53 = vector.load %arg10[%52, %c0_51] : memref<64x512xf32, #tpu.memory_space<vmem>>, vector<8x512xf32>
      %c0_52 = arith.constant 0 : index
      %c0_53 = arith.constant 0 : index
      %54 = vector.load %arg12[%c0_52, %c0_53] : memref<8x128xf32, #tpu.memory_space<vmem>>, vector<8x128xf32>
      %cst_54 = arith.constant dense<0.000000e+00> : vector<8x512xf32>
      %55 = tpu.matmul %54, %23, %cst_54 {dimension_numbers = #tpu.dot_dimension_numbers<[1], [0], [0], [1], [0, 0, 1, 1], [], []>} : vector<8x128xf32>, vector<128x512xf32>, vector<8x512xf32> -> vector<8x512xf32>
      %56 = arith.addf %53, %55 : vector<8x512xf32>
      %57 = arith.index_cast %51 : i32 to index
      %c0_55 = arith.constant 0 : index
      %58 = vector.load %arg11[%57, %c0_55] : memref<64x512xf32, #tpu.memory_space<vmem>>, vector<8x512xf32>
      %c0_56 = arith.constant 0 : index
      %c0_57 = arith.constant 0 : index
      %59 = vector.load %arg14[%c0_56, %c0_57] : memref<8x128xf32, #tpu.memory_space<vmem>>, vector<8x128xf32>
      %cst_58 = arith.constant dense<0.000000e+00> : vector<8x512xf32>
      %60 = tpu.matmul %59, %24, %cst_58 {dimension_numbers = #tpu.dot_dimension_numbers<[1], [0], [0], [1], [0, 0, 1, 1], [], []>} : vector<8x128xf32>, vector<128x512xf32>, vector<8x512xf32> -> vector<8x512xf32>
      %61 = arith.addf %58, %60 : vector<8x512xf32>
      %c0_59 = arith.constant 0 : index
      %c0_60 = arith.constant 0 : index
      %62 = vector.load %arg13[%c0_59, %c0_60] : memref<8x128xf32, #tpu.memory_space<vmem>>, vector<8x128xf32>
      %63 = vector.extract_strided_slice %56 {offsets = [0, 0], sizes = [8, 128], strides = [1, 1]} : vector<8x512xf32> to vector<8x128xf32>
      %64 = arith.negf %63 : vector<8x128xf32>
      %65 = math.exp %64 : vector<8x128xf32>
      %cst_61 = arith.constant 1.000000e+00 : f32
      %66 = vector.broadcast %cst_61 : f32 to vector<8x128xf32>
      %67 = arith.addf %66, %65 : vector<8x128xf32>
      %68 = arith.divf %66, %67 : vector<8x128xf32>
      %69 = vector.extract_strided_slice %56 {offsets = [0, 128], sizes = [8, 128], strides = [1, 1]} : vector<8x512xf32> to vector<8x128xf32>
      %70 = arith.negf %69 : vector<8x128xf32>
      %71 = math.exp %70 : vector<8x128xf32>
      %cst_62 = arith.constant 1.000000e+00 : f32
      %72 = vector.broadcast %cst_62 : f32 to vector<8x128xf32>
      %73 = arith.addf %72, %71 : vector<8x128xf32>
      %74 = arith.divf %72, %73 : vector<8x128xf32>
      %75 = vector.extract_strided_slice %56 {offsets = [0, 256], sizes = [8, 128], strides = [1, 1]} : vector<8x512xf32> to vector<8x128xf32>
      %76 = math.tanh %75 : vector<8x128xf32>
      %77 = vector.extract_strided_slice %56 {offsets = [0, 384], sizes = [8, 128], strides = [1, 1]} : vector<8x512xf32> to vector<8x128xf32>
      %78 = arith.negf %77 : vector<8x128xf32>
      %79 = math.exp %78 : vector<8x128xf32>
      %cst_63 = arith.constant 1.000000e+00 : f32
      %80 = vector.broadcast %cst_63 : f32 to vector<8x128xf32>
      %81 = arith.addf %80, %79 : vector<8x128xf32>
      %82 = arith.divf %80, %81 : vector<8x128xf32>
      %83 = arith.mulf %74, %62 : vector<8x128xf32>
      %84 = arith.mulf %68, %76 : vector<8x128xf32>
      %85 = arith.addf %83, %84 : vector<8x128xf32>
      %86 = math.tanh %85 : vector<8x128xf32>
      %87 = arith.mulf %82, %86 : vector<8x128xf32>
      %c0_64 = arith.constant 0 : index
      %c0_65 = arith.constant 0 : index
      %88 = vector.load %arg15[%c0_64, %c0_65] : memref<8x128xf32, #tpu.memory_space<vmem>>, vector<8x128xf32>
      %89 = vector.extract_strided_slice %61 {offsets = [0, 0], sizes = [8, 128], strides = [1, 1]} : vector<8x512xf32> to vector<8x128xf32>
      %90 = arith.negf %89 : vector<8x128xf32>
      %91 = math.exp %90 : vector<8x128xf32>
      %cst_66 = arith.constant 1.000000e+00 : f32
      %92 = vector.broadcast %cst_66 : f32 to vector<8x128xf32>
      %93 = arith.addf %92, %91 : vector<8x128xf32>
      %94 = arith.divf %92, %93 : vector<8x128xf32>
      %95 = vector.extract_strided_slice %61 {offsets = [0, 128], sizes = [8, 128], strides = [1, 1]} : vector<8x512xf32> to vector<8x128xf32>
      %96 = arith.negf %95 : vector<8x128xf32>
      %97 = math.exp %96 : vector<8x128xf32>
      %cst_67 = arith.constant 1.000000e+00 : f32
      %98 = vector.broadcast %cst_67 : f32 to vector<8x128xf32>
      %99 = arith.addf %98, %97 : vector<8x128xf32>
      %100 = arith.divf %98, %99 : vector<8x128xf32>
      %101 = vector.extract_strided_slice %61 {offsets = [0, 256], sizes = [8, 128], strides = [1, 1]} : vector<8x512xf32> to vector<8x128xf32>
      %102 = math.tanh %101 : vector<8x128xf32>
      %103 = vector.extract_strided_slice %61 {offsets = [0, 384], sizes = [8, 128], strides = [1, 1]} : vector<8x512xf32> to vector<8x128xf32>
      %104 = arith.negf %103 : vector<8x128xf32>
      %105 = math.exp %104 : vector<8x128xf32>
      %cst_68 = arith.constant 1.000000e+00 : f32
      %106 = vector.broadcast %cst_68 : f32 to vector<8x128xf32>
      %107 = arith.addf %106, %105 : vector<8x128xf32>
      %108 = arith.divf %106, %107 : vector<8x128xf32>
      %109 = arith.mulf %100, %88 : vector<8x128xf32>
      %110 = arith.mulf %94, %102 : vector<8x128xf32>
      %111 = arith.addf %109, %110 : vector<8x128xf32>
      %112 = math.tanh %111 : vector<8x128xf32>
      %113 = arith.mulf %108, %112 : vector<8x128xf32>
      %c0_69 = arith.constant 0 : index
      %c0_70 = arith.constant 0 : index
      %114 = vector.load %arg12[%c0_69, %c0_70] : memref<8x128xf32, #tpu.memory_space<vmem>>, vector<8x128xf32>
      tpu.vector_store %arg12[%c0_69, %c0_70], %87 {strides = array<i32>} : memref<8x128xf32, #tpu.memory_space<vmem>>, vector<8x128xf32>,
      %c0_71 = arith.constant 0 : index
      %c0_72 = arith.constant 0 : index
      %115 = vector.load %arg13[%c0_71, %c0_72] : memref<8x128xf32, #tpu.memory_space<vmem>>, vector<8x128xf32>
      tpu.vector_store %arg13[%c0_71, %c0_72], %85 {strides = array<i32>} : memref<8x128xf32, #tpu.memory_space<vmem>>, vector<8x128xf32>,
      %c0_73 = arith.constant 0 : index
      %c0_74 = arith.constant 0 : index
      %116 = vector.load %arg14[%c0_73, %c0_74] : memref<8x128xf32, #tpu.memory_space<vmem>>, vector<8x128xf32>
      tpu.vector_store %arg14[%c0_73, %c0_74], %113 {strides = array<i32>} : memref<8x128xf32, #tpu.memory_space<vmem>>, vector<8x128xf32>,
      %c0_75 = arith.constant 0 : index
      %c0_76 = arith.constant 0 : index
      %117 = vector.load %arg15[%c0_75, %c0_76] : memref<8x128xf32, #tpu.memory_space<vmem>>, vector<8x128xf32>
      tpu.vector_store %arg15[%c0_75, %c0_76], %111 {strides = array<i32>} : memref<8x128xf32, #tpu.memory_space<vmem>>, vector<8x128xf32>,
      %c0_i32_77 = arith.constant 0 : i32
      %118 = arith.cmpi eq, %arg17, %c0_i32_77 : i32
      %119 = arith.extui %118 : i1 to i32
      %c0_i32_78 = arith.constant 0 : i32
      %120 = arith.cmpi ne, %119, %c0_i32_78 : i32
      scf.if %120 {
        %c0_79 = arith.constant 0 : index
        %c0_80 = arith.constant 0 : index
        %121 = vector.load %arg16[%c0_79, %c0_80] : memref<8x128xf32, #tpu.memory_space<vmem>>, vector<8x128xf32>
        tpu.vector_store %arg16[%c0_79, %c0_80], %113 {strides = array<i32>} : memref<8x128xf32, #tpu.memory_space<vmem>>, vector<8x128xf32>,
      } else {
      }
    }
    %c8_i32_33 = arith.constant 8 : i32
    %c0_34 = arith.constant 0 : index
    %c0_35 = arith.constant 0 : index
    %26 = vector.load %arg12[%c0_34, %c0_35] : memref<8x128xf32, #tpu.memory_space<vmem>>, vector<8x128xf32>
    %c0_36 = arith.constant 0 : index
    %c0_37 = arith.constant 0 : index
    %27 = vector.load %arg7[%c0_36, %c0_37] : memref<256x128xf32, #tpu.memory_space<vmem>>, vector<128x128xf32>
    %cst_38 = arith.constant dense<0.000000e+00> : vector<8x128xf32>
    %28 = tpu.matmul %26, %27, %cst_38 {dimension_numbers = #tpu.dot_dimension_numbers<[1], [0], [0], [1], [0, 0, 1, 1], [], []>} : vector<8x128xf32>, vector<128x128xf32>, vector<8x128xf32> -> vector<8x128xf32>
    %c0_39 = arith.constant 0 : index
    %c0_40 = arith.constant 0 : index
    %29 = vector.load %arg16[%c0_39, %c0_40] : memref<8x128xf32, #tpu.memory_space<vmem>>, vector<8x128xf32>
    %c128 = arith.constant 128 : index
    %c0_41 = arith.constant 0 : index
    %30 = vector.load %arg7[%c128, %c0_41] : memref<256x128xf32, #tpu.memory_space<vmem>>, vector<128x128xf32>
    %cst_42 = arith.constant dense<0.000000e+00> : vector<8x128xf32>
    %31 = tpu.matmul %29, %30, %cst_42 {dimension_numbers = #tpu.dot_dimension_numbers<[1], [0], [0], [1], [0, 0, 1, 1], [], []>} : vector<8x128xf32>, vector<128x128xf32>, vector<8x128xf32> -> vector<8x128xf32>
    %32 = arith.addf %28, %31 : vector<8x128xf32>
    %c0_43 = arith.constant 0 : index
    %c0_44 = arith.constant 0 : index
    %33 = vector.load %arg8[%c0_43, %c0_44] : memref<1x128xf32, #tpu.memory_space<vmem>>, vector<1x128xf32>
    %34 = vector.broadcast %33 : vector<1x128xf32> to vector<8x128xf32>
    %35 = arith.addf %32, %34 : vector<8x128xf32>
    %cst_45 = arith.constant dense<0xFF800000> : vector<8xf32>
    %36 = vector.multi_reduction <maximumf>, %35, %cst_45 [1] : vector<8x128xf32> to vector<8xf32>
    %37 = vector.shape_cast %36 : vector<8xf32> to vector<8x1xf32>
    %38 = vector.broadcast %37 : vector<8x1xf32> to vector<8x128xf32>
    %39 = arith.subf %35, %38 : vector<8x128xf32>
    %40 = math.exp %39 : vector<8x128xf32>
    %cst_46 = arith.constant dense<0.000000e+00> : vector<8xf32>
    %41 = vector.multi_reduction <add>, %40, %cst_46 [1] : vector<8x128xf32> to vector<8xf32>
    %42 = vector.shape_cast %41 : vector<8xf32> to vector<8x1xf32>
    %43 = tpu.reciprocal %42 {approx = true} : vector<8x1xf32> -> vector<8x1xf32>
    %44 = vector.broadcast %43 : vector<8x1xf32> to vector<8x128xf32>
    %45 = arith.mulf %40, %44 : vector<8x128xf32>
    %c0_47 = arith.constant 0 : index
    %c0_48 = arith.constant 0 : index
    %46 = vector.load %arg9[%c0_47, %c0_48] : memref<8x128xf32, #tpu.memory_space<vmem>>, vector<8x128xf32>
    tpu.vector_store %arg9[%c0_47, %c0_48], %45 {strides = array<i32>} : memref<8x128xf32, #tpu.memory_space<vmem>>, vector<8x128xf32>,
    return
  }
}

</mosaic_0001>

<llo_original>
// kernel: bilstm_forward.2
$region0: #{bilstm_forward.2}
  #allocation0 [shape = 'u32[]', space=smem, size = 0x4, offset = 0x4, fixed_abs, tag = 'smem constant byte address 0x4 - core index']
  #allocation1 [shape = 'u32[144,128]{1,0:T(1,128)}', space=vmem, size = 0x12000, scoped, tag = 'internal scratch']
  #allocation2 [shape = 'f32[64,512]{1,0:T(8,128)}', space=vmem, size = 0x20000, scoped, tag = 'scratch operand']
  #allocation3 [shape = 'f32[64,512]{1,0:T(8,128)}', space=vmem, size = 0x20000, scoped, tag = 'scratch operand']
  #allocation4 [shape = 'f32[8,128]{1,0:T(8,128)}', space=vmem, size = 0x1000, scoped, tag = 'scratch operand']
  #allocation5 [shape = 'f32[8,128]{1,0:T(8,128)}', space=vmem, size = 0x1000, scoped, tag = 'scratch operand']
  #allocation6 [shape = 'f32[8,128]{1,0:T(8,128)}', space=vmem, size = 0x1000, scoped, tag = 'scratch operand']
  #allocation7 [shape = 'f32[8,128]{1,0:T(8,128)}', space=vmem, size = 0x1000, scoped, tag = 'scratch operand']
  %s0 = inlined_call_operand.vmem [shape: f32[64,128], index: 0, kind: input, shape index: {}]
  %s1 = inlined_call_operand.hbm [shape: f32[128,512], index: 1, kind: input, shape index: {}]
  %s2 = inlined_call_operand.hbm [shape: f32[128,512], index: 2, kind: input, shape index: {}]
  %s3 = inlined_call_operand.vmem [shape: f32[1,512], index: 3, kind: input, shape index: {}]
  %s4 = inlined_call_operand.hbm [shape: f32[128,512], index: 4, kind: input, shape index: {}]
  %s5 = inlined_call_operand.hbm [shape: f32[128,512], index: 5, kind: input, shape index: {}]
  %s6 = inlined_call_operand.vmem [shape: f32[1,512], index: 6, kind: input, shape index: {}]
  %s7 = inlined_call_operand.vmem [shape: f32[64,256], index: 7, kind: output, shape index: {}]
  %s8 = sld [smem:[#allocation0]]
  $region61: #{bilstm_forward.2} parent=0
    _
  %s10 = ssub.s32 1, %s8
  %s11 = scalar_select 0, %s10, %s8
  $region1: #{bilstm_forward.2} parent=0
    #allocation8 [shape = 'u8[262144]{0}', space=vmem, size = 0x40000, scoped, tag = 'input window, operand 1, single buffered']
    #allocation9 [shape = 's32[1]{0}', space=sflag, size = 0x4, scoped, tag = 'scoped memory for bilstm_forward.2']
    #allocation10 [shape = 'u8[262144]{0}', space=vmem, size = 0x40000, scoped, tag = 'input window, operand 2, single buffered']
    #allocation11 [shape = 's32[1]{0}', space=sflag, size = 0x4, scoped, tag = 'scoped memory for bilstm_forward.2']
    #allocation12 [shape = 'u8[262144]{0}', space=vmem, size = 0x40000, scoped, tag = 'input window, operand 4, single buffered']
    #allocation13 [shape = 'u8[262144]{0}', space=vmem, size = 0x40000, scoped, tag = 'input window, operand 5, single buffered']
    #allocation14 [shape = 's32[1]{0}', space=sflag, size = 0x4, scoped, tag = 'scoped memory for bilstm_forward.2']
    %12 = vsyncpa [#allocation9], 0
    %13 = vsyncpa [#allocation11], 0
    %14 = vsyncpa [#allocation14], 0
    // Predicated region
    $region2: #{bilstm_forward.2} parent=1 // pred_check
      _
    $region3: #{bilstm_forward.2} parent=1 // pred_check_branch
      %16 = sbr.rel (0) target = $region5
    $region4: #{bilstm_forward.2} parent=1 // pred_region
      _
    $region5: #{bilstm_forward.2} parent=1 // pred_fallthru
      _
    // Predicated region
    $region6: #{bilstm_forward.2} parent=1 // pred_check
      _
    $region7: #{bilstm_forward.2} parent=1 // pred_check_branch
      %18 = sbr.rel (0) target = $region9
    $region8: #{bilstm_forward.2} parent=1 // pred_region
      %s20 = ssub.s32 8192, 8192
      %21 = vsyncadd [#allocation9], %s20
      %s22 = sshll.u32 [#allocation8], 4
      %s23 = int_to_ptr.vmem [resolvable:$true] %s22
      %28 = dma.hbm_to_vmem [thread:$0]  %s1, 8192, %s23, [#allocation9], 512, 512, 32
    $region9: #{bilstm_forward.2} parent=1 // pred_fallthru
      _
    // Predicated region
    $region10: #{bilstm_forward.2} parent=1 // pred_check
      _
    $region11: #{bilstm_forward.2} parent=1 // pred_check_branch
      %30 = sbr.rel (0) target = $region13
    $region12: #{bilstm_forward.2} parent=1 // pred_region
      %s32 = ssub.s32 8192, 8192
      %33 = vsyncadd [#allocation11], %s32
      %s34 = sshll.u32 [#allocation10], 4
      %s35 = int_to_ptr.vmem [resolvable:$true] %s34
      %40 = dma.hbm_to_vmem [thread:$0]  %s2, 8192, %s35, [#allocation11], 512, 512, 32
    $region13: #{bilstm_forward.2} parent=1 // pred_fallthru
      _
    // Predicated region
    $region14: #{bilstm_forward.2} parent=1 // pred_check
      _
    $region15: #{bilstm_forward.2} parent=1 // pred_check_branch
      %42 = sbr.rel (0) target = $region17
    $region16: #{bilstm_forward.2} parent=1 // pred_region
      _
    $region17: #{bilstm_forward.2} parent=1 // pred_fallthru
      _
    // Predicated region
    $region18: #{bilstm_forward.2} parent=1 // pred_check
      _
    $region19: #{bilstm_forward.2} parent=1 // pred_check_branch
      %44 = sbr.rel (0) target = $region21
    $region20: #{bilstm_forward.2} parent=1 // pred_region
      %s46 = ssub.s32 8192, 8192
      %47 = vsyncadd [#allocation11], %s46
      %s48 = sshll.u32 [#allocation12], 4
      %s49 = int_to_ptr.vmem [resolvable:$true] %s48
      %54 = dma.hbm_to_vmem [thread:$0]  %s4, 8192, %s49, [#allocation11], 512, 512, 32
    $region21: #{bilstm_forward.2} parent=1 // pred_fallthru
      _
    // Predicated region
    $region22: #{bilstm_forward.2} parent=1 // pred_check
      _
    $region23: #{bilstm_forward.2} parent=1 // pred_check_branch
      %56 = sbr.rel (0) target = $region25
    $region24: #{bilstm_forward.2} parent=1 // pred_region
      %s58 = ssub.s32 8192, 8192
      %59 = vsyncadd [#allocation14], %s58
      %s60 = sshll.u32 [#allocation13], 4
      %s61 = int_to_ptr.vmem [resolvable:$true] %s60
      %66 = dma.hbm_to_vmem [thread:$0]  %s5, 8192, %s61, [#allocation14], 512, 512, 32
    $region25: #{bilstm_forward.2} parent=1 // pred_fallthru
      _
    // Predicated region
    $region26: #{bilstm_forward.2} parent=1 // pred_check
      _
    $region27: #{bilstm_forward.2} parent=1 // pred_check_branch
      %68 = sbr.rel (0) target = $region29
    $region28: #{bilstm_forward.2} parent=1 // pred_region
      _
    $region29: #{bilstm_forward.2} parent=1 // pred_fallthru
      _
    // Predicated region
    $region30: #{bilstm_forward.2} parent=1 // pred_check
      _
    $region31: #{bilstm_forward.2} parent=1 // pred_check_branch
      %70 = sbr.rel (0) target = $region33
    $region32: #{bilstm_forward.2} parent=1 // pred_region
      %71 = dma.done [#allocation9], 8192
    $region33: #{bilstm_forward.2} parent=1 // pred_fallthru
      _
    // Predicated region
    $region34: #{bilstm_forward.2} parent=1 // pred_check
      _
    $region35: #{bilstm_forward.2} parent=1 // pred_check_branch
      %73 = sbr.rel (0) target = $region37
    $region36: #{bilstm_forward.2} parent=1 // pred_region
      %74 = dma.done [#allocation11], 8192
    $region37: #{bilstm_forward.2} parent=1 // pred_fallthru
      _
    // Predicated region
    $region38: #{bilstm_forward.2} parent=1 // pred_check
      _
    $region39: #{bilstm_forward.2} parent=1 // pred_check_branch
      %76 = sbr.rel (0) target = $region41
    $region40: #{bilstm_forward.2} parent=1 // pred_region
      %77 = dma.done [#allocation11], 8192
    $region41: #{bilstm_forward.2} parent=1 // pred_fallthru
      _
    // Predicated region
    $region42: #{bilstm_forward.2} parent=1 // pred_check
      _
    $region43: #{bilstm_forward.2} parent=1 // pred_check_branch
      %79 = sbr.rel (0) target = $region45
    $region44: #{bilstm_forward.2} parent=1 // pred_region
      %80 = dma.done [#allocation14], 8192
    $region45: #{bilstm_forward.2} parent=1 // pred_fallthru
      _
    %v81 = vld [vmem:[%s0] sm:$0xff]
    %v82 = vld [vmem:[%s0 + $0x8] sm:$0xff]
    %v83 = vld [vmem:[%s0 + $0x10] sm:$0xff]
    %v84 = vld [vmem:[%s0 + $0x18] sm:$0xff]
    %v85 = vld [vmem:[%s0 + $0x20] sm:$0xff]
    %v86 = vld [vmem:[%s0 + $0x28] sm:$0xff]
    %v87 = vld [vmem:[%s0 + $0x30] sm:$0xff]
    %v88 = vld [vmem:[%s0 + $0x38] sm:$0xff]
    %v89 = vld [vmem:[#allocation8] sm:$0xff]
    %v90 = vld [vmem:[#allocation8 + $0x8] sm:$0xff]
    %v91 = vld [vmem:[#allocation8 + $0x10] sm:$0xff]
    %v92 = vld [vmem:[#allocation8 + $0x18] sm:$0xff]
    %v93 = vld [vmem:[#allocation8 + $0x20] sm:$0xff]
    %v94 = vld [vmem:[#allocation8 + $0x28] sm:$0xff]
    %v95 = vld [vmem:[#allocation8 + $0x30] sm:$0xff]
    %v96 = vld [vmem:[#allocation8 + $0x38] sm:$0xff]
    %v97 = vld [vmem:[#allocation8 + $0x40] sm:$0xff]
    %v98 = vld [vmem:[#allocation8 + $0x48] sm:$0xff]
    %v99 = vld [vmem:[#allocation8 + $0x50] sm:$0xff]
    %v100 = vld [vmem:[#allocation8 + $0x58] sm:$0xff]
    %v101 = vld [vmem:[#allocation8 + $0x60] sm:$0xff]
    %v102 = vld [vmem:[#allocation8 + $0x68] sm:$0xff]
    %v103 = vld [vmem:[#allocation8 + $0x70] sm:$0xff]
    %v104 = vld [vmem:[#allocation8 + $0x78] sm:$0xff]
    %v105 = vld [vmem:[#allocation8 + $0x80] sm:$0xff]
    %v106 = vld [vmem:[#allocation8 + $0x88] sm:$0xff]
    %v107 = vld [vmem:[#allocation8 + $0x90] sm:$0xff]
    %v108 = vld [vmem:[#allocation8 + $0x98] sm:$0xff]
    %v109 = vld [vmem:[#allocation8 + $0xa0] sm:$0xff]
    %v110 = vld [vmem:[#allocation8 + $0xa8] sm:$0xff]
    %v111 = vld [vmem:[#allocation8 + $0xb0] sm:$0xff]
    %v112 = vld [vmem:[#allocation8 + $0xb8] sm:$0xff]
    %v113 = vld [vmem:[#allocation8 + $0xc0] sm:$0xff]
    %v114 = vld [vmem:[#allocation8 + $0xc8] sm:$0xff]
    %v115 = vld [vmem:[#allocation8 + $0xd0] sm:$0xff]
    %v116 = vld [vmem:[#allocation8 + $0xd8] sm:$0xff]
    %v117 = vld [vmem:[#allocation8 + $0xe0] sm:$0xff]
    %v118 = vld [vmem:[#allocation8 + $0xe8] sm:$0xff]
    %v119 = vld [vmem:[#allocation8 + $0xf0] sm:$0xff]
    %v120 = vld [vmem:[#allocation8 + $0xf8] sm:$0xff]
    %v121 = vld [vmem:[#allocation8 + $0x100] sm:$0xff]
    %v122 = vld [vmem:[#allocation8 + $0x108] sm:$0xff]
    %v123 = vld [vmem:[#allocation8 + $0x110] sm:$0xff]
    %v124 = vld [vmem:[#allocation8 + $0x118] sm:$0xff]
    %v125 = vld [vmem:[#allocation8 + $0x120] sm:$0xff]
    %v126 = vld [vmem:[#allocation8 + $0x128] sm:$0xff]
    %v127 = vld [vmem:[#allocation8 + $0x130] sm:$0xff]
    %v128 = vld [vmem:[#allocation8 + $0x138] sm:$0xff]
    %v129 = vld [vmem:[#allocation8 + $0x140] sm:$0xff]
    %v130 = vld [vmem:[#allocation8 + $0x148] sm:$0xff]
    %v131 = vld [vmem:[#allocation8 + $0x150] sm:$0xff]
    %v132 = vld [vmem:[#allocation8 + $0x158] sm:$0xff]
    %v133 = vld [vmem:[#allocation8 + $0x160] sm:$0xff]
    %v134 = vld [vmem:[#allocation8 + $0x168] sm:$0xff]
    %v135 = vld [vmem:[#allocation8 + $0x170] sm:$0xff]
    %v136 = vld [vmem:[#allocation8 + $0x178] sm:$0xff]
    %v137 = vld [vmem:[#allocation8 + $0x180] sm:$0xff]
    %v138 = vld [vmem:[#allocation8 + $0x188] sm:$0xff]
    %v139 = vld [vmem:[#allocation8 + $0x190] sm:$0xff]
    %v140 = vld [vmem:[#allocation8 + $0x198] sm:$0xff]
    %v141 = vld [vmem:[#allocation8 + $0x1a0] sm:$0xff]
    %v142 = vld [vmem:[#allocation8 + $0x1a8] sm:$0xff]
    %v143 = vld [vmem:[#allocation8 + $0x1b0] sm:$0xff]
    %v144 = vld [vmem:[#allocation8 + $0x1b8] sm:$0xff]
    %v145 = vld [vmem:[#allocation8 + $0x1c0] sm:$0xff]
    %v146 = vld [vmem:[#allocation8 + $0x1c8] sm:$0xff]
    %v147 = vld [vmem:[#allocation8 + $0x1d0] sm:$0xff]
    %v148 = vld [vmem:[#allocation8 + $0x1d8] sm:$0xff]
    %v149 = vld [vmem:[#allocation8 + $0x1e0] sm:$0xff]
    %v150 = vld [vmem:[#allocation8 + $0x1e8] sm:$0xff]
    %v151 = vld [vmem:[#allocation8 + $0x1f0] sm:$0xff]
    %v152 = vld [vmem:[#allocation8 + $0x1f8] sm:$0xff]
    %v153 = vld [vmem:[%s3] sm:$0xf]
    %v155 = vlaneseq
    %v156 = vshrl.u32 %v155, 7
    %v157 = vsub.s32 0, %v156
    %v158 = vrot.slane %v153, %v157
    %v159 = vlaneseq
    %v160 = vshrl.u32 %v159, 7
    %v161 = vsub.s32 1, %v160
    %v162 = vrot.slane %v153, %v161
    %v163 = vlaneseq
    %v164 = vshrl.u32 %v163, 7
    %v165 = vsub.s32 2, %v164
    %v166 = vrot.slane %v153, %v165
    %v167 = vlaneseq
    %v168 = vshrl.u32 %v167, 7
    %v169 = vsub.s32 3, %v168
    %v170 = vrot.slane %v153, %v169
    %175 = vmatprep.subr.mxu0 %v90
    %176 = vmatpush1.msra.mxu0 %v89
    %177 = vmatprep.subr.mxu0 %v94
    %178 = vmatpush1.msra.mxu0 %v93
    %179 = vmatprep.subr.mxu0 %v98
    %180 = vmatpush1.msra.mxu0 %v97
    %181 = vmatprep.subr.mxu0 %v102
    %182 = vmatpush1.msra.mxu0 %v101
    %183 = vmatprep.subr.mxu0 %v106
    %184 = vmatpush1.msra.mxu0 %v105
    %185 = vmatprep.subr.mxu0 %v110
    %186 = vmatpush1.msra.mxu0 %v109
    %187 = vmatprep.subr.mxu0 %v114
    %188 = vmatpush1.msra.mxu0 %v113
    %189 = vmatprep.subr.mxu0 %v118
    %190 = vmatpush1.msra.mxu0 %v117
    %191 = vmatprep.subr.mxu0 %v122
    %192 = vmatpush1.msra.mxu0 %v121
    %193 = vmatprep.subr.mxu0 %v126
    %194 = vmatpush1.msra.mxu0 %v125
    %195 = vmatprep.subr.mxu0 %v130
    %196 = vmatpush1.msra.mxu0 %v129
    %197 = vmatprep.subr.mxu0 %v134
    %198 = vmatpush1.msra.mxu0 %v133
    %199 = vmatprep.subr.mxu0 %v138
    %200 = vmatpush1.msra.mxu0 %v137
    %201 = vmatprep.subr.mxu0 %v142
    %202 = vmatpush1.msra.mxu0 %v141
    %203 = vmatprep.subr.mxu0 %v146
    %204 = vmatpush1.msra.mxu0 %v145
    %205 = vmatprep.subr.mxu0 %v150
    %206 = vmatpush1.msra.mxu0 %v149
    %207 = vmatprep.subr.mxu0 0.0
    %208 = vmatpush1.msra.mxu0 0.0
    %209 = vmatprep.subr.mxu0 0.0
    %210 = vmatpush1.msra.mxu0 0.0
    %211 = vmatprep.subr.mxu0 0.0
    %212 = vmatpush1.msra.mxu0 0.0
    %213 = vmatprep.subr.mxu0 0.0
    %214 = vmatpush1.msra.mxu0 0.0
    %215 = vmatprep.subr.mxu0 0.0
    %216 = vmatpush1.msra.mxu0 0.0
    %217 = vmatprep.subr.mxu0 0.0
    %218 = vmatpush1.msra.mxu0 0.0
    %219 = vmatprep.subr.mxu0 0.0
    %220 = vmatpush1.msra.mxu0 0.0
    %221 = vmatprep.subr.mxu0 0.0
    %222 = vmatpush1.msra.mxu0 0.0
    %223 = vmatprep.subr.mxu0 0.0
    %224 = vmatpush1.msra.mxu0 0.0
    %225 = vmatprep.subr.mxu0 0.0
    %226 = vmatpush1.msra.mxu0 0.0
    %227 = vmatprep.subr.mxu0 0.0
    %228 = vmatpush1.msra.mxu0 0.0
    %229 = vmatprep.subr.mxu0 0.0
    %230 = vmatpush1.msra.mxu0 0.0
    %231 = vmatprep.subr.mxu0 0.0
    %232 = vmatpush1.msra.mxu0 0.0
    %233 = vmatprep.subr.mxu0 0.0
    %234 = vmatpush1.msra.mxu0 0.0
    %235 = vmatprep.subr.mxu0 0.0
    %236 = vmatpush1.msra.mxu0 0.0
    %237 = vmatprep.subr.mxu0 0.0
    %238 = vmatpush1.msra.mxu0 0.0
    %239 = vmatprep.mubr.f32.mxu0 0.0
    %240 = vmatmul.mubr.f32.gmra.mrb[0].mxu0 %v81
    %v241 = vpop.f32.mrb[0].mxu0
    %v242 = vadd.f32 %v158, %v241
    %v243 = vpop.f32.mrb[0].mxu0
    %v244 = vadd.f32 %v162, %v243
    %245 = vmatprep.mubr.f32.mxu0 0.0
    %246 = vmatmul.mubr.f32.gmra.mrb[0].mxu0 %v82
    %v247 = vpop.f32.mrb[0].mxu0
    %v248 = vadd.f32 %v158, %v247
    %v249 = vpop.f32.mrb[0].mxu0
    %v250 = vadd.f32 %v162, %v249
    %251 = vmatprep.mubr.f32.mxu0 0.0
    %252 = vmatmul.mubr.f32.gmra.mrb[0].mxu0 %v83
    %v253 = vpop.f32.mrb[0].mxu0
    %v254 = vadd.f32 %v158, %v253
    %v255 = vpop.f32.mrb[0].mxu0
    %v256 = vadd.f32 %v162, %v255
    %257 = vmatprep.mubr.f32.mxu0 0.0
    %258 = vmatmul.mubr.f32.gmra.mrb[0].mxu0 %v84
    %v259 = vpop.f32.mrb[0].mxu0
    %v260 = vadd.f32 %v158, %v259
    %v261 = vpop.f32.mrb[0].mxu0
    %v262 = vadd.f32 %v162, %v261
    %263 = vmatprep.mubr.f32.mxu0 0.0
    %264 = vmatmul.mubr.f32.gmra.mrb[0].mxu0 %v85
    %v265 = vpop.f32.mrb[0].mxu0
    %v266 = vadd.f32 %v158, %v265
    %v267 = vpop.f32.mrb[0].mxu0
    %v268 = vadd.f32 %v162, %v267
    %269 = vmatprep.mubr.f32.mxu0 0.0
    %270 = vmatmul.mubr.f32.gmra.mrb[0].mxu0 %v86
    %v271 = vpop.f32.mrb[0].mxu0
    %v272 = vadd.f32 %v158, %v271
    %v273 = vpop.f32.mrb[0].mxu0
    %v274 = vadd.f32 %v162, %v273
    %275 = vmatprep.mubr.f32.mxu0 0.0
    %276 = vmatmul.mubr.f32.gmra.mrb[0].mxu0 %v87
    %v277 = vpop.f32.mrb[0].mxu0
    %v278 = vadd.f32 %v158, %v277
    %v279 = vpop.f32.mrb[0].mxu0
    %v280 = vadd.f32 %v162, %v279
    %281 = vmatprep.mubr.f32.mxu0 0.0
    %282 = vmatmul.mubr.f32.gmra.mrb[0].mxu0 %v88
    %v283 = vpop.f32.mrb[0].mxu0
    %v284 = vadd.f32 %v158, %v283
    %v285 = vpop.f32.mrb[0].mxu0
    %v286 = vadd.f32 %v162, %v285
    %287 = vdwg.mxu0
    %288 = vmatprep.subr.mxu0 %v92
    %289 = vmatpush1.msra.mxu0 %v91
    %290 = vmatprep.subr.mxu0 %v96
    %291 = vmatpush1.msra.mxu0 %v95
    %292 = vmatprep.subr.mxu0 %v100
    %293 = vmatpush1.msra.mxu0 %v99
    %294 = vmatprep.subr.mxu0 %v104
    %295 = vmatpush1.msra.mxu0 %v103
    %296 = vmatprep.subr.mxu0 %v108
    %297 = vmatpush1.msra.mxu0 %v107
    %298 = vmatprep.subr.mxu0 %v112
    %299 = vmatpush1.msra.mxu0 %v111
    %300 = vmatprep.subr.mxu0 %v116
    %301 = vmatpush1.msra.mxu0 %v115
    %302 = vmatprep.subr.mxu0 %v120
    %303 = vmatpush1.msra.mxu0 %v119
    %304 = vmatprep.subr.mxu0 %v124
    %305 = vmatpush1.msra.mxu0 %v123
    %306 = vmatprep.subr.mxu0 %v128
    %307 = vmatpush1.msra.mxu0 %v127
    %308 = vmatprep.subr.mxu0 %v132
    %309 = vmatpush1.msra.mxu0 %v131
    %310 = vmatprep.subr.mxu0 %v136
    %311 = vmatpush1.msra.mxu0 %v135
    %312 = vmatprep.subr.mxu0 %v140
    %313 = vmatpush1.msra.mxu0 %v139
    %314 = vmatprep.subr.mxu0 %v144
    %315 = vmatpush1.msra.mxu0 %v143
    %316 = vmatprep.subr.mxu0 %v148
    %317 = vmatpush1.msra.mxu0 %v147
    %318 = vmatprep.subr.mxu0 %v152
    %319 = vmatpush1.msra.mxu0 %v151
    %320 = vmatprep.subr.mxu0 0.0
    %321 = vmatpush1.msra.mxu0 0.0
    %322 = vmatprep.subr.mxu0 0.0
    %323 = vmatpush1.msra.mxu0 0.0
    %324 = vmatprep.subr.mxu0 0.0
    %325 = vmatpush1.msra.mxu0 0.0
    %326 = vmatprep.subr.mxu0 0.0
    %327 = vmatpush1.msra.mxu0 0.0
    %328 = vmatprep.subr.mxu0 0.0
    %329 = vmatpush1.msra.mxu0 0.0
    %330 = vmatprep.subr.mxu0 0.0
    %331 = vmatpush1.msra.mxu0 0.0
    %332 = vmatprep.subr.mxu0 0.0
    %333 = vmatpush1.msra.mxu0 0.0
    %334 = vmatprep.subr.mxu0 0.0
    %335 = vmatpush1.msra.mxu0 0.0
    %336 = vmatprep.subr.mxu0 0.0
    %337 = vmatpush1.msra.mxu0 0.0
    %338 = vmatprep.subr.mxu0 0.0
    %339 = vmatpush1.msra.mxu0 0.0
    %340 = vmatprep.subr.mxu0 0.0
    %341 = vmatpush1.msra.mxu0 0.0
    %342 = vmatprep.subr.mxu0 0.0
    %343 = vmatpush1.msra.mxu0 0.0
    %344 = vmatprep.subr.mxu0 0.0
    %345 = vmatpush1.msra.mxu0 0.0
    %346 = vmatprep.subr.mxu0 0.0
    %347 = vmatpush1.msra.mxu0 0.0
    %348 = vmatprep.subr.mxu0 0.0
    %349 = vmatpush1.msra.mxu0 0.0
    %350 = vmatprep.subr.mxu0 0.0
    %351 = vmatpush1.msra.mxu0 0.0
    %352 = vmatprep.mubr.f32.mxu0 0.0
    %353 = vmatmul.mubr.f32.gmra.mrb[0].mxu0 %v81
    %v354 = vpop.f32.mrb[0].mxu0
    %v355 = vadd.f32 %v166, %v354
    %v356 = vpop.f32.mrb[0].mxu0
    %v357 = vadd.f32 %v170, %v356
    %358 = vmatprep.mubr.f32.mxu0 0.0
    %359 = vmatmul.mubr.f32.gmra.mrb[0].mxu0 %v82
    %v360 = vpop.f32.mrb[0].mxu0
    %v361 = vadd.f32 %v166, %v360
    %v362 = vpop.f32.mrb[0].mxu0
    %v363 = vadd.f32 %v170, %v362
    %364 = vmatprep.mubr.f32.mxu0 0.0
    %365 = vmatmul.mubr.f32.gmra.mrb[0].mxu0 %v83
    %v366 = vpop.f32.mrb[0].mxu0
    %v367 = vadd.f32 %v166, %v366
    %v368 = vpop.f32.mrb[0].mxu0
    %v369 = vadd.f32 %v170, %v368
    %370 = vmatprep.mubr.f32.mxu0 0.0
    %371 = vmatmul.mubr.f32.gmra.mrb[0].mxu0 %v84
    %v372 = vpop.f32.mrb[0].mxu0
    %v373 = vadd.f32 %v166, %v372
    %v374 = vpop.f32.mrb[0].mxu0
    %v375 = vadd.f32 %v170, %v374
    %376 = vmatprep.mubr.f32.mxu0 0.0
    %377 = vmatmul.mubr.f32.gmra.mrb[0].mxu0 %v85
    %v378 = vpop.f32.mrb[0].mxu0
    %v379 = vadd.f32 %v166, %v378
    %v380 = vpop.f32.mrb[0].mxu0
    %v381 = vadd.f32 %v170, %v380
    %382 = vmatprep.mubr.f32.mxu0 0.0
    %383 = vmatmul.mubr.f32.gmra.mrb[0].mxu0 %v86
    %v384 = vpop.f32.mrb[0].mxu0
    %v385 = vadd.f32 %v166, %v384
    %v386 = vpop.f32.mrb[0].mxu0
    %v387 = vadd.f32 %v170, %v386
    %388 = vmatprep.mubr.f32.mxu0 0.0
    %389 = vmatmul.mubr.f32.gmra.mrb[0].mxu0 %v87
    %v390 = vpop.f32.mrb[0].mxu0
    %v391 = vadd.f32 %v166, %v390
    %v392 = vpop.f32.mrb[0].mxu0
    %v393 = vadd.f32 %v170, %v392
    %394 = vmatprep.mubr.f32.mxu0 0.0
    %395 = vmatmul.mubr.f32.gmra.mrb[0].mxu0 %v88
    %v396 = vpop.f32.mrb[0].mxu0
    %v397 = vadd.f32 %v166, %v396
    %v398 = vpop.f32.mrb[0].mxu0
    %v399 = vadd.f32 %v170, %v398
    %400 = vdwg.mxu0
    %401 = vst [vmem:[#allocation2] sm:$0xff] %v242
    %402 = vst [vmem:[#allocation2 + $0x8] sm:$0xff] %v244
    %403 = vst [vmem:[#allocation2 + $0x10] sm:$0xff] %v355
    %404 = vst [vmem:[#allocation2 + $0x18] sm:$0xff] %v357
    %405 = vst [vmem:[#allocation2 + $0x20] sm:$0xff] %v248
    %406 = vst [vmem:[#allocation2 + $0x28] sm:$0xff] %v250
    %407 = vst [vmem:[#allocation2 + $0x30] sm:$0xff] %v361
    %408 = vst [vmem:[#allocation2 + $0x38] sm:$0xff] %v363
    %409 = vst [vmem:[#allocation2 + $0x40] sm:$0xff] %v254
    %410 = vst [vmem:[#allocation2 + $0x48] sm:$0xff] %v256
    %411 = vst [vmem:[#allocation2 + $0x50] sm:$0xff] %v367
    %412 = vst [vmem:[#allocation2 + $0x58] sm:$0xff] %v369
    %413 = vst [vmem:[#allocation2 + $0x60] sm:$0xff] %v260
    %414 = vst [vmem:[#allocation2 + $0x68] sm:$0xff] %v262
    %415 = vst [vmem:[#allocation2 + $0x70] sm:$0xff] %v373
    %416 = vst [vmem:[#allocation2 + $0x78] sm:$0xff] %v375
    %417 = vst [vmem:[#allocation2 + $0x80] sm:$0xff] %v266
    %418 = vst [vmem:[#allocation2 + $0x88] sm:$0xff] %v268
    %419 = vst [vmem:[#allocation2 + $0x90] sm:$0xff] %v379
    %420 = vst [vmem:[#allocation2 + $0x98] sm:$0xff] %v381
    %421 = vst [vmem:[#allocation2 + $0xa0] sm:$0xff] %v272
    %422 = vst [vmem:[#allocation2 + $0xa8] sm:$0xff] %v274
    %423 = vst [vmem:[#allocation2 + $0xb0] sm:$0xff] %v385
    %424 = vst [vmem:[#allocation2 + $0xb8] sm:$0xff] %v387
    %425 = vst [vmem:[#allocation2 + $0xc0] sm:$0xff] %v278
    %426 = vst [vmem:[#allocation2 + $0xc8] sm:$0xff] %v280
    %427 = vst [vmem:[#allocation2 + $0xd0] sm:$0xff] %v391
    %428 = vst [vmem:[#allocation2 + $0xd8] sm:$0xff] %v393
    %429 = vst [vmem:[#allocation2 + $0xe0] sm:$0xff] %v284
    %430 = vst [vmem:[#allocation2 + $0xe8] sm:$0xff] %v286
    %431 = vst [vmem:[#allocation2 + $0xf0] sm:$0xff] %v397
    %432 = vst [vmem:[#allocation2 + $0xf8] sm:$0xff] %v399
    %v433 = vld [vmem:[#allocation12] sm:$0xff]
    %v434 = vld [vmem:[#allocation12 + $0x8] sm:$0xff]
    %v435 = vld [vmem:[#allocation12 + $0x10] sm:$0xff]
    %v436 = vld [vmem:[#allocation12 + $0x18] sm:$0xff]
    %v437 = vld [vmem:[#allocation12 + $0x20] sm:$0xff]
    %v438 = vld [vmem:[#allocation12 + $0x28] sm:$0xff]
    %v439 = vld [vmem:[#allocation12 + $0x30] sm:$0xff]
    %v440 = vld [vmem:[#allocation12 + $0x38] sm:$0xff]
    %v441 = vld [vmem:[#allocation12 + $0x40] sm:$0xff]
    %v442 = vld [vmem:[#allocation12 + $0x48] sm:$0xff]
    %v443 = vld [vmem:[#allocation12 + $0x50] sm:$0xff]
    %v444 = vld [vmem:[#allocation12 + $0x58] sm:$0xff]
    %v445 = vld [vmem:[#allocation12 + $0x60] sm:$0xff]
    %v446 = vld [vmem:[#allocation12 + $0x68] sm:$0xff]
    %v447 = vld [vmem:[#allocation12 + $0x70] sm:$0xff]
    %v448 = vld [vmem:[#allocation12 + $0x78] sm:$0xff]
    %v449 = vld [vmem:[#allocation12 + $0x80] sm:$0xff]
    %v450 = vld [vmem:[#allocation12 + $0x88] sm:$0xff]
    %v451 = vld [vmem:[#allocation12 + $0x90] sm:$0xff]
    %v452 = vld [vmem:[#allocation12 + $0x98] sm:$0xff]
    %v453 = vld [vmem:[#allocation12 + $0xa0] sm:$0xff]
    %v454 = vld [vmem:[#allocation12 + $0xa8] sm:$0xff]
    %v455 = vld [vmem:[#allocation12 + $0xb0] sm:$0xff]
    %v456 = vld [vmem:[#allocation12 + $0xb8] sm:$0xff]
    %v457 = vld [vmem:[#allocation12 + $0xc0] sm:$0xff]
    %v458 = vld [vmem:[#allocation12 + $0xc8] sm:$0xff]
    %v459 = vld [vmem:[#allocation12 + $0xd0] sm:$0xff]
    %v460 = vld [vmem:[#allocation12 + $0xd8] sm:$0xff]
    %v461 = vld [vmem:[#allocation12 + $0xe0] sm:$0xff]
    %v462 = vld [vmem:[#allocation12 + $0xe8] sm:$0xff]
    %v463 = vld [vmem:[#allocation12 + $0xf0] sm:$0xff]
    %v464 = vld [vmem:[#allocation12 + $0xf8] sm:$0xff]
    %v465 = vld [vmem:[#allocation12 + $0x100] sm:$0xff]
    %v466 = vld [vmem:[#allocation12 + $0x108] sm:$0xff]
    %v467 = vld [vmem:[#allocation12 + $0x110] sm:$0xff]
    %v468 = vld [vmem:[#allocation12 + $0x118] sm:$0xff]
    %v469 = vld [vmem:[#allocation12 + $0x120] sm:$0xff]
    %v470 = vld [vmem:[#allocation12 + $0x128] sm:$0xff]
    %v471 = vld [vmem:[#allocation12 + $0x130] sm:$0xff]
    %v472 = vld [vmem:[#allocation12 + $0x138] sm:$0xff]
    %v473 = vld [vmem:[#allocation12 + $0x140] sm:$0xff]
    %v474 = vld [vmem:[#allocation12 + $0x148] sm:$0xff]
    %v475 = vld [vmem:[#allocation12 + $0x150] sm:$0xff]
    %v476 = vld [vmem:[#allocation12 + $0x158] sm:$0xff]
    %v477 = vld [vmem:[#allocation12 + $0x160] sm:$0xff]
    %v478 = vld [vmem:[#allocation12 + $0x168] sm:$0xff]
    %v479 = vld [vmem:[#allocation12 + $0x170] sm:$0xff]
    %v480 = vld [vmem:[#allocation12 + $0x178] sm:$0xff]
    %v481 = vld [vmem:[#allocation12 + $0x180] sm:$0xff]
    %v482 = vld [vmem:[#allocation12 + $0x188] sm:$0xff]
    %v483 = vld [vmem:[#allocation12 + $0x190] sm:$0xff]
    %v484 = vld [vmem:[#allocation12 + $0x198] sm:$0xff]
    %v485 = vld [vmem:[#allocation12 + $0x1a0] sm:$0xff]
    %v486 = vld [vmem:[#allocation12 + $0x1a8] sm:$0xff]
    %v487 = vld [vmem:[#allocation12 + $0x1b0] sm:$0xff]
    %v488 = vld [vmem:[#allocation12 + $0x1b8] sm:$0xff]
    %v489 = vld [vmem:[#allocation12 + $0x1c0] sm:$0xff]
    %v490 = vld [vmem:[#allocation12 + $0x1c8] sm:$0xff]
    %v491 = vld [vmem:[#allocation12 + $0x1d0] sm:$0xff]
    %v492 = vld [vmem:[#allocation12 + $0x1d8] sm:$0xff]
    %v493 = vld [vmem:[#allocation12 + $0x1e0] sm:$0xff]
    %v494 = vld [vmem:[#allocation12 + $0x1e8] sm:$0xff]
    %v495 = vld [vmem:[#allocation12 + $0x1f0] sm:$0xff]
    %v496 = vld [vmem:[#allocation12 + $0x1f8] sm:$0xff]
    %v497 = vld [vmem:[%s6] sm:$0xf]
    %v499 = vlaneseq
    %v500 = vshrl.u32 %v499, 7
    %v501 = vsub.s32 0, %v500
    %v502 = vrot.slane %v497, %v501
    %v503 = vlaneseq
    %v504 = vshrl.u32 %v503, 7
    %v505 = vsub.s32 1, %v504
    %v506 = vrot.slane %v497, %v505
    %v507 = vlaneseq
    %v508 = vshrl.u32 %v507, 7
    %v509 = vsub.s32 2, %v508
    %v510 = vrot.slane %v497, %v509
    %v511 = vlaneseq
    %v512 = vshrl.u32 %v511, 7
    %v513 = vsub.s32 3, %v512
    %v514 = vrot.slane %v497, %v513
    %519 = vmatprep.subr.mxu0 %v434
    %520 = vmatpush1.msra.mxu0 %v433
    %521 = vmatprep.subr.mxu0 %v438
    %522 = vmatpush1.msra.mxu0 %v437
    %523 = vmatprep.subr.mxu0 %v442
    %524 = vmatpush1.msra.mxu0 %v441
    %525 = vmatprep.subr.mxu0 %v446
    %526 = vmatpush1.msra.mxu0 %v445
    %527 = vmatprep.subr.mxu0 %v450
    %528 = vmatpush1.msra.mxu0 %v449
    %529 = vmatprep.subr.mxu0 %v454
    %530 = vmatpush1.msra.mxu0 %v453
    %531 = vmatprep.subr.mxu0 %v458
    %532 = vmatpush1.msra.mxu0 %v457
    %533 = vmatprep.subr.mxu0 %v462
    %534 = vmatpush1.msra.mxu0 %v461
    %535 = vmatprep.subr.mxu0 %v466
    %536 = vmatpush1.msra.mxu0 %v465
    %537 = vmatprep.subr.mxu0 %v470
    %538 = vmatpush1.msra.mxu0 %v469
    %539 = vmatprep.subr.mxu0 %v474
    %540 = vmatpush1.msra.mxu0 %v473
    %541 = vmatprep.subr.mxu0 %v478
    %542 = vmatpush1.msra.mxu0 %v477
    %543 = vmatprep.subr.mxu0 %v482
    %544 = vmatpush1.msra.mxu0 %v481
    %545 = vmatprep.subr.mxu0 %v486
    %546 = vmatpush1.msra.mxu0 %v485
    %547 = vmatprep.subr.mxu0 %v490
    %548 = vmatpush1.msra.mxu0 %v489
    %549 = vmatprep.subr.mxu0 %v494
    %550 = vmatpush1.msra.mxu0 %v493
    %551 = vmatprep.subr.mxu0 0.0
    %552 = vmatpush1.msra.mxu0 0.0
    %553 = vmatprep.subr.mxu0 0.0
    %554 = vmatpush1.msra.mxu0 0.0
    %555 = vmatprep.subr.mxu0 0.0
    %556 = vmatpush1.msra.mxu0 0.0
    %557 = vmatprep.subr.mxu0 0.0
    %558 = vmatpush1.msra.mxu0 0.0
    %559 = vmatprep.subr.mxu0 0.0
    %560 = vmatpush1.msra.mxu0 0.0
    %561 = vmatprep.subr.mxu0 0.0
    %562 = vmatpush1.msra.mxu0 0.0
    %563 = vmatprep.subr.mxu0 0.0
    %564 = vmatpush1.msra.mxu0 0.0
    %565 = vmatprep.subr.mxu0 0.0
    %566 = vmatpush1.msra.mxu0 0.0
    %567 = vmatprep.subr.mxu0 0.0
    %568 = vmatpush1.msra.mxu0 0.0
    %569 = vmatprep.subr.mxu0 0.0
    %570 = vmatpush1.msra.mxu0 0.0
    %571 = vmatprep.subr.mxu0 0.0
    %572 = vmatpush1.msra.mxu0 0.0
    %573 = vmatprep.subr.mxu0 0.0
    %574 = vmatpush1.msra.mxu0 0.0
    %575 = vmatprep.subr.mxu0 0.0
    %576 = vmatpush1.msra.mxu0 0.0
    %577 = vmatprep.subr.mxu0 0.0
    %578 = vmatpush1.msra.mxu0 0.0
    %579 = vmatprep.subr.mxu0 0.0
    %580 = vmatpush1.msra.mxu0 0.0
    %581 = vmatprep.subr.mxu0 0.0
    %582 = vmatpush1.msra.mxu0 0.0
    %583 = vmatprep.mubr.f32.mxu0 0.0
    %584 = vmatmul.mubr.f32.gmra.mrb[0].mxu0 %v81
    %v585 = vpop.f32.mrb[0].mxu0
    %v586 = vadd.f32 %v502, %v585
    %v587 = vpop.f32.mrb[0].mxu0
    %v588 = vadd.f32 %v506, %v587
    %589 = vmatprep.mubr.f32.mxu0 0.0
    %590 = vmatmul.mubr.f32.gmra.mrb[0].mxu0 %v82
    %v591 = vpop.f32.mrb[0].mxu0
    %v592 = vadd.f32 %v502, %v591
    %v593 = vpop.f32.mrb[0].mxu0
    %v594 = vadd.f32 %v506, %v593
    %595 = vmatprep.mubr.f32.mxu0 0.0
    %596 = vmatmul.mubr.f32.gmra.mrb[0].mxu0 %v83
    %v597 = vpop.f32.mrb[0].mxu0
    %v598 = vadd.f32 %v502, %v597
    %v599 = vpop.f32.mrb[0].mxu0
    %v600 = vadd.f32 %v506, %v599
    %601 = vmatprep.mubr.f32.mxu0 0.0
    %602 = vmatmul.mubr.f32.gmra.mrb[0].mxu0 %v84
    %v603 = vpop.f32.mrb[0].mxu0
    %v604 = vadd.f32 %v502, %v603
    %v605 = vpop.f32.mrb[0].mxu0
    %v606 = vadd.f32 %v506, %v605
    %607 = vmatprep.mubr.f32.mxu0 0.0
    %608 = vmatmul.mubr.f32.gmra.mrb[0].mxu0 %v85
    %v609 = vpop.f32.mrb[0].mxu0
    %v610 = vadd.f32 %v502, %v609
    %v611 = vpop.f32.mrb[0].mxu0
    %v612 = vadd.f32 %v506, %v611
    %613 = vmatprep.mubr.f32.mxu0 0.0
    %614 = vmatmul.mubr.f32.gmra.mrb[0].mxu0 %v86
    %v615 = vpop.f32.mrb[0].mxu0
    %v616 = vadd.f32 %v502, %v615
    %v617 = vpop.f32.mrb[0].mxu0
    %v618 = vadd.f32 %v506, %v617
    %619 = vmatprep.mubr.f32.mxu0 0.0
    %620 = vmatmul.mubr.f32.gmra.mrb[0].mxu0 %v87
    %v621 = vpop.f32.mrb[0].mxu0
    %v622 = vadd.f32 %v502, %v621
    %v623 = vpop.f32.mrb[0].mxu0
    %v624 = vadd.f32 %v506, %v623
    %625 = vmatprep.mubr.f32.mxu0 0.0
    %626 = vmatmul.mubr.f32.gmra.mrb[0].mxu0 %v88
    %v627 = vpop.f32.mrb[0].mxu0
    %v628 = vadd.f32 %v502, %v627
    %v629 = vpop.f32.mrb[0].mxu0
    %v630 = vadd.f32 %v506, %v629
    %631 = vdwg.mxu0
    %632 = vmatprep.subr.mxu0 %v436
    %633 = vmatpush1.msra.mxu0 %v435
    %634 = vmatprep.subr.mxu0 %v440
    %635 = vmatpush1.msra.mxu0 %v439
    %636 = vmatprep.subr.mxu0 %v444
    %637 = vmatpush1.msra.mxu0 %v443
    %638 = vmatprep.subr.mxu0 %v448
    %639 = vmatpush1.msra.mxu0 %v447
    %640 = vmatprep.subr.mxu0 %v452
    %641 = vmatpush1.msra.mxu0 %v451
    %642 = vmatprep.subr.mxu0 %v456
    %643 = vmatpush1.msra.mxu0 %v455
    %644 = vmatprep.subr.mxu0 %v460
    %645 = vmatpush1.msra.mxu0 %v459
    %646 = vmatprep.subr.mxu0 %v464
    %647 = vmatpush1.msra.mxu0 %v463
    %648 = vmatprep.subr.mxu0 %v468
    %649 = vmatpush1.msra.mxu0 %v467
    %650 = vmatprep.subr.mxu0 %v472
    %651 = vmatpush1.msra.mxu0 %v471
    %652 = vmatprep.subr.mxu0 %v476
    %653 = vmatpush1.msra.mxu0 %v475
    %654 = vmatprep.subr.mxu0 %v480
    %655 = vmatpush1.msra.mxu0 %v479
    %656 = vmatprep.subr.mxu0 %v484
    %657 = vmatpush1.msra.mxu0 %v483
    %658 = vmatprep.subr.mxu0 %v488
    %659 = vmatpush1.msra.mxu0 %v487
    %660 = vmatprep.subr.mxu0 %v492
    %661 = vmatpush1.msra.mxu0 %v491
    %662 = vmatprep.subr.mxu0 %v496
    %663 = vmatpush1.msra.mxu0 %v495
    %664 = vmatprep.subr.mxu0 0.0
    %665 = vmatpush1.msra.mxu0 0.0
    %666 = vmatprep.subr.mxu0 0.0
    %667 = vmatpush1.msra.mxu0 0.0
    %668 = vmatprep.subr.mxu0 0.0
    %669 = vmatpush1.msra.mxu0 0.0
    %670 = vmatprep.subr.mxu0 0.0
    %671 = vmatpush1.msra.mxu0 0.0
    %672 = vmatprep.subr.mxu0 0.0
    %673 = vmatpush1.msra.mxu0 0.0
    %674 = vmatprep.subr.mxu0 0.0
    %675 = vmatpush1.msra.mxu0 0.0
    %676 = vmatprep.subr.mxu0 0.0
    %677 = vmatpush1.msra.mxu0 0.0
    %678 = vmatprep.subr.mxu0 0.0
    %679 = vmatpush1.msra.mxu0 0.0
    %680 = vmatprep.subr.mxu0 0.0
    %681 = vmatpush1.msra.mxu0 0.0
    %682 = vmatprep.subr.mxu0 0.0
    %683 = vmatpush1.msra.mxu0 0.0
    %684 = vmatprep.subr.mxu0 0.0
    %685 = vmatpush1.msra.mxu0 0.0
    %686 = vmatprep.subr.mxu0 0.0
    %687 = vmatpush1.msra.mxu0 0.0
    %688 = vmatprep.subr.mxu0 0.0
    %689 = vmatpush1.msra.mxu0 0.0
    %690 = vmatprep.subr.mxu0 0.0
    %691 = vmatpush1.msra.mxu0 0.0
    %692 = vmatprep.subr.mxu0 0.0
    %693 = vmatpush1.msra.mxu0 0.0
    %694 = vmatprep.subr.mxu0 0.0
    %695 = vmatpush1.msra.mxu0 0.0
    %696 = vmatprep.mubr.f32.mxu0 0.0
    %697 = vmatmul.mubr.f32.gmra.mrb[0].mxu0 %v81
    %v698 = vpop.f32.mrb[0].mxu0
    %v699 = vadd.f32 %v510, %v698
    %v700 = vpop.f32.mrb[0].mxu0
    %v701 = vadd.f32 %v514, %v700
    %702 = vmatprep.mubr.f32.mxu0 0.0
    %703 = vmatmul.mubr.f32.gmra.mrb[0].mxu0 %v82
    %v704 = vpop.f32.mrb[0].mxu0
    %v705 = vadd.f32 %v510, %v704
    %v706 = vpop.f32.mrb[0].mxu0
    %v707 = vadd.f32 %v514, %v706
    %708 = vmatprep.mubr.f32.mxu0 0.0
    %709 = vmatmul.mubr.f32.gmra.mrb[0].mxu0 %v83
    %v710 = vpop.f32.mrb[0].mxu0
    %v711 = vadd.f32 %v510, %v710
    %v712 = vpop.f32.mrb[0].mxu0
    %v713 = vadd.f32 %v514, %v712
    %714 = vmatprep.mubr.f32.mxu0 0.0
    %715 = vmatmul.mubr.f32.gmra.mrb[0].mxu0 %v84
    %v716 = vpop.f32.mrb[0].mxu0
    %v717 = vadd.f32 %v510, %v716
    %v718 = vpop.f32.mrb[0].mxu0
    %v719 = vadd.f32 %v514, %v718
    %720 = vmatprep.mubr.f32.mxu0 0.0
    %721 = vmatmul.mubr.f32.gmra.mrb[0].mxu0 %v85
    %v722 = vpop.f32.mrb[0].mxu0
    %v723 = vadd.f32 %v510, %v722
    %v724 = vpop.f32.mrb[0].mxu0
    %v725 = vadd.f32 %v514, %v724
    %726 = vmatprep.mubr.f32.mxu0 0.0
    %727 = vmatmul.mubr.f32.gmra.mrb[0].mxu0 %v86
    %v728 = vpop.f32.mrb[0].mxu0
    %v729 = vadd.f32 %v510, %v728
    %v730 = vpop.f32.mrb[0].mxu0
    %v731 = vadd.f32 %v514, %v730
    %732 = vmatprep.mubr.f32.mxu0 0.0
    %733 = vmatmul.mubr.f32.gmra.mrb[0].mxu0 %v87
    %v734 = vpop.f32.mrb[0].mxu0
    %v735 = vadd.f32 %v510, %v734
    %v736 = vpop.f32.mrb[0].mxu0
    %v737 = vadd.f32 %v514, %v736
    %738 = vmatprep.mubr.f32.mxu0 0.0
    %739 = vmatmul.mubr.f32.gmra.mrb[0].mxu0 %v88
    %v740 = vpop.f32.mrb[0].mxu0
    %v741 = vadd.f32 %v510, %v740
    %v742 = vpop.f32.mrb[0].mxu0
    %v743 = vadd.f32 %v514, %v742
    %744 = vdwg.mxu0
    %745 = vst [vmem:[#allocation3] sm:$0xff] %v586
    %746 = vst [vmem:[#allocation3 + $0x8] sm:$0xff] %v588
    %747 = vst [vmem:[#allocation3 + $0x10] sm:$0xff] %v699
    %748 = vst [vmem:[#allocation3 + $0x18] sm:$0xff] %v701
    %749 = vst [vmem:[#allocation3 + $0x20] sm:$0xff] %v592
    %750 = vst [vmem:[#allocation3 + $0x28] sm:$0xff] %v594
    %751 = vst [vmem:[#allocation3 + $0x30] sm:$0xff] %v705
    %752 = vst [vmem:[#allocation3 + $0x38] sm:$0xff] %v707
    %753 = vst [vmem:[#allocation3 + $0x40] sm:$0xff] %v598
    %754 = vst [vmem:[#allocation3 + $0x48] sm:$0xff] %v600
    %755 = vst [vmem:[#allocation3 + $0x50] sm:$0xff] %v711
    %756 = vst [vmem:[#allocation3 + $0x58] sm:$0xff] %v713
    %757 = vst [vmem:[#allocation3 + $0x60] sm:$0xff] %v604
    %758 = vst [vmem:[#allocation3 + $0x68] sm:$0xff] %v606
    %759 = vst [vmem:[#allocation3 + $0x70] sm:$0xff] %v717
    %760 = vst [vmem:[#allocation3 + $0x78] sm:$0xff] %v719
    %761 = vst [vmem:[#allocation3 + $0x80] sm:$0xff] %v610
    %762 = vst [vmem:[#allocation3 + $0x88] sm:$0xff] %v612
    %763 = vst [vmem:[#allocation3 + $0x90] sm:$0xff] %v723
    %764 = vst [vmem:[#allocation3 + $0x98] sm:$0xff] %v725
    %765 = vst [vmem:[#allocation3 + $0xa0] sm:$0xff] %v616
    %766 = vst [vmem:[#allocation3 + $0xa8] sm:$0xff] %v618
    %767 = vst [vmem:[#allocation3 + $0xb0] sm:$0xff] %v729
    %768 = vst [vmem:[#allocation3 + $0xb8] sm:$0xff] %v731
    %769 = vst [vmem:[#allocation3 + $0xc0] sm:$0xff] %v622
    %770 = vst [vmem:[#allocation3 + $0xc8] sm:$0xff] %v624
    %771 = vst [vmem:[#allocation3 + $0xd0] sm:$0xff] %v735
    %772 = vst [vmem:[#allocation3 + $0xd8] sm:$0xff] %v737
    %773 = vst [vmem:[#allocation3 + $0xe0] sm:$0xff] %v628
    %774 = vst [vmem:[#allocation3 + $0xe8] sm:$0xff] %v630
    %775 = vst [vmem:[#allocation3 + $0xf0] sm:$0xff] %v741
    %776 = vst [vmem:[#allocation3 + $0xf8] sm:$0xff] %v743
    %777 = vst [vmem:[#allocation4] sm:$0xff] 0.0
    %778 = vst [vmem:[#allocation5] sm:$0xff] 0.0
    %779 = vst [vmem:[#allocation6] sm:$0xff] 0.0
    %780 = vst [vmem:[#allocation7] sm:$0xff] 0.0
    %v781 = vld [vmem:[#allocation10] sm:$0xff]
    %v782 = vld [vmem:[#allocation10 + $0x8] sm:$0xff]
    %v783 = vld [vmem:[#allocation10 + $0x10] sm:$0xff]
    %v784 = vld [vmem:[#allocation10 + $0x18] sm:$0xff]
    %v785 = vld [vmem:[#allocation10 + $0x20] sm:$0xff]
    %v786 = vld [vmem:[#allocation10 + $0x28] sm:$0xff]
    %v787 = vld [vmem:[#allocation10 + $0x30] sm:$0xff]
    %v788 = vld [vmem:[#allocation10 + $0x38] sm:$0xff]
    %v789 = vld [vmem:[#allocation10 + $0x40] sm:$0xff]
    %v790 = vld [vmem:[#allocation10 + $0x48] sm:$0xff]
    %v791 = vld [vmem:[#allocation10 + $0x50] sm:$0xff]
    %v792 = vld [vmem:[#allocation10 + $0x58] sm:$0xff]
    %v793 = vld [vmem:[#allocation10 + $0x60] sm:$0xff]
    %v794 = vld [vmem:[#allocation10 + $0x68] sm:$0xff]
    %v795 = vld [vmem:[#allocation10 + $0x70] sm:$0xff]
    %v796 = vld [vmem:[#allocation10 + $0x78] sm:$0xff]
    %v797 = vld [vmem:[#allocation10 + $0x80] sm:$0xff]
    %v798 = vld [vmem:[#allocation10 + $0x88] sm:$0xff]
    %v799 = vld [vmem:[#allocation10 + $0x90] sm:$0xff]
    %v800 = vld [vmem:[#allocation10 + $0x98] sm:$0xff]
    %v801 = vld [vmem:[#allocation10 + $0xa0] sm:$0xff]
    %v802 = vld [vmem:[#allocation10 + $0xa8] sm:$0xff]
    %v803 = vld [vmem:[#allocation10 + $0xb0] sm:$0xff]
    %v804 = vld [vmem:[#allocation10 + $0xb8] sm:$0xff]
    %v805 = vld [vmem:[#allocation10 + $0xc0] sm:$0xff]
    %v806 = vld [vmem:[#allocation10 + $0xc8] sm:$0xff]
    %v807 = vld [vmem:[#allocation10 + $0xd0] sm:$0xff]
    %v808 = vld [vmem:[#allocation10 + $0xd8] sm:$0xff]
    %v809 = vld [vmem:[#allocation10 + $0xe0] sm:$0xff]
    %v810 = vld [vmem:[#allocation10 + $0xe8] sm:$0xff]
    %v811 = vld [vmem:[#allocation10 + $0xf0] sm:$0xff]
    %v812 = vld [vmem:[#allocation10 + $0xf8] sm:$0xff]
    %v813 = vld [vmem:[#allocation10 + $0x100] sm:$0xff]
    %v814 = vld [vmem:[#allocation10 + $0x108] sm:$0xff]
    %v815 = vld [vmem:[#allocation10 + $0x110] sm:$0xff]
    %v816 = vld [vmem:[#allocation10 + $0x118] sm:$0xff]
    %v817 = vld [vmem:[#allocation10 + $0x120] sm:$0xff]
    %v818 = vld [vmem:[#allocation10 + $0x128] sm:$0xff]
    %v819 = vld [vmem:[#allocation10 + $0x130] sm:$0xff]
    %v820 = vld [vmem:[#allocation10 + $0x138] sm:$0xff]
    %v821 = vld [vmem:[#allocation10 + $0x140] sm:$0xff]
    %v822 = vld [vmem:[#allocation10 + $0x148] sm:$0xff]
    %v823 = vld [vmem:[#allocation10 + $0x150] sm:$0xff]
    %v824 = vld [vmem:[#allocation10 + $0x158] sm:$0xff]
    %v825 = vld [vmem:[#allocation10 + $0x160] sm:$0xff]
    %v826 = vld [vmem:[#allocation10 + $0x168] sm:$0xff]
    %v827 = vld [vmem:[#allocation10 + $0x170] sm:$0xff]
    %v828 = vld [vmem:[#allocation10 + $0x178] sm:$0xff]
    %v829 = vld [vmem:[#allocation10 + $0x180] sm:$0xff]
    %v830 = vld [vmem:[#allocation10 + $0x188] sm:$0xff]
    %v831 = vld [vmem:[#allocation10 + $0x190] sm:$0xff]
    %v832 = vld [vmem:[#allocation10 + $0x198] sm:$0xff]
    %v833 = vld [vmem:[#allocation10 + $0x1a0] sm:$0xff]
    %v834 = vld [vmem:[#allocation10 + $0x1a8] sm:$0xff]
    %v835 = vld [vmem:[#allocation10 + $0x1b0] sm:$0xff]
    %v836 = vld [vmem:[#allocation10 + $0x1b8] sm:$0xff]
    %v837 = vld [vmem:[#allocation10 + $0x1c0] sm:$0xff]
    %v838 = vld [vmem:[#allocation10 + $0x1c8] sm:$0xff]
    %v839 = vld [vmem:[#allocation10 + $0x1d0] sm:$0xff]
    %v840 = vld [vmem:[#allocation10 + $0x1d8] sm:$0xff]
    %v841 = vld [vmem:[#allocation10 + $0x1e0] sm:$0xff]
    %v842 = vld [vmem:[#allocation10 + $0x1e8] sm:$0xff]
    %v843 = vld [vmem:[#allocation10 + $0x1f0] sm:$0xff]
    %v844 = vld [vmem:[#allocation10 + $0x1f8] sm:$0xff]
    %v845 = vld [vmem:[#allocation13] sm:$0xff]
    %v846 = vld [vmem:[#allocation13 + $0x8] sm:$0xff]
    %v847 = vld [vmem:[#allocation13 + $0x10] sm:$0xff]
    %v848 = vld [vmem:[#allocation13 + $0x18] sm:$0xff]
    %v849 = vld [vmem:[#allocation13 + $0x20] sm:$0xff]
    %v850 = vld [vmem:[#allocation13 + $0x28] sm:$0xff]
    %v851 = vld [vmem:[#allocation13 + $0x30] sm:$0xff]
    %v852 = vld [vmem:[#allocation13 + $0x38] sm:$0xff]
    %v853 = vld [vmem:[#allocation13 + $0x40] sm:$0xff]
    %v854 = vld [vmem:[#allocation13 + $0x48] sm:$0xff]
    %v855 = vld [vmem:[#allocation13 + $0x50] sm:$0xff]
    %v856 = vld [vmem:[#allocation13 + $0x58] sm:$0xff]
    %v857 = vld [vmem:[#allocation13 + $0x60] sm:$0xff]
    %v858 = vld [vmem:[#allocation13 + $0x68] sm:$0xff]
    %v859 = vld [vmem:[#allocation13 + $0x70] sm:$0xff]
    %v860 = vld [vmem:[#allocation13 + $0x78] sm:$0xff]
    %v861 = vld [vmem:[#allocation13 + $0x80] sm:$0xff]
    %v862 = vld [vmem:[#allocation13 + $0x88] sm:$0xff]
    %v863 = vld [vmem:[#allocation13 + $0x90] sm:$0xff]
    %v864 = vld [vmem:[#allocation13 + $0x98] sm:$0xff]
    %v865 = vld [vmem:[#allocation13 + $0xa0] sm:$0xff]
    %v866 = vld [vmem:[#allocation13 + $0xa8] sm:$0xff]
    %v867 = vld [vmem:[#allocation13 + $0xb0] sm:$0xff]
    %v868 = vld [vmem:[#allocation13 + $0xb8] sm:$0xff]
    %v869 = vld [vmem:[#allocation13 + $0xc0] sm:$0xff]
    %v870 = vld [vmem:[#allocation13 + $0xc8] sm:$0xff]
    %v871 = vld [vmem:[#allocation13 + $0xd0] sm:$0xff]
    %v872 = vld [vmem:[#allocation13 + $0xd8] sm:$0xff]
    %v873 = vld [vmem:[#allocation13 + $0xe0] sm:$0xff]
    %v874 = vld [vmem:[#allocation13 + $0xe8] sm:$0xff]
    %v875 = vld [vmem:[#allocation13 + $0xf0] sm:$0xff]
    %v876 = vld [vmem:[#allocation13 + $0xf8] sm:$0xff]
    %v877 = vld [vmem:[#allocation13 + $0x100] sm:$0xff]
    %v878 = vld [vmem:[#allocation13 + $0x108] sm:$0xff]
    %v879 = vld [vmem:[#allocation13 + $0x110] sm:$0xff]
    %v880 = vld [vmem:[#allocation13 + $0x118] sm:$0xff]
    %v881 = vld [vmem:[#allocation13 + $0x120] sm:$0xff]
    %v882 = vld [vmem:[#allocation13 + $0x128] sm:$0xff]
    %v883 = vld [vmem:[#allocation13 + $0x130] sm:$0xff]
    %v884 = vld [vmem:[#allocation13 + $0x138] sm:$0xff]
    %v885 = vld [vmem:[#allocation13 + $0x140] sm:$0xff]
    %v886 = vld [vmem:[#allocation13 + $0x148] sm:$0xff]
    %v887 = vld [vmem:[#allocation13 + $0x150] sm:$0xff]
    %v888 = vld [vmem:[#allocation13 + $0x158] sm:$0xff]
    %v889 = vld [vmem:[#allocation13 + $0x160] sm:$0xff]
    %v890 = vld [vmem:[#allocation13 + $0x168] sm:$0xff]
    %v891 = vld [vmem:[#allocation13 + $0x170] sm:$0xff]
    %v892 = vld [vmem:[#allocation13 + $0x178] sm:$0xff]
    %v893 = vld [vmem:[#allocation13 + $0x180] sm:$0xff]
    %v894 = vld [vmem:[#allocation13 + $0x188] sm:$0xff]
    %v895 = vld [vmem:[#allocation13 + $0x190] sm:$0xff]
    %v896 = vld [vmem:[#allocation13 + $0x198] sm:$0xff]
    %v897 = vld [vmem:[#allocation13 + $0x1a0] sm:$0xff]
    %v898 = vld [vmem:[#allocation13 + $0x1a8] sm:$0xff]
    %v899 = vld [vmem:[#allocation13 + $0x1b0] sm:$0xff]
    %v900 = vld [vmem:[#allocation13 + $0x1b8] sm:$0xff]
    %v901 = vld [vmem:[#allocation13 + $0x1c0] sm:$0xff]
    %v902 = vld [vmem:[#allocation13 + $0x1c8] sm:$0xff]
    %v903 = vld [vmem:[#allocation13 + $0x1d0] sm:$0xff]
    %v904 = vld [vmem:[#allocation13 + $0x1d8] sm:$0xff]
    %v905 = vld [vmem:[#allocation13 + $0x1e0] sm:$0xff]
    %v906 = vld [vmem:[#allocation13 + $0x1e8] sm:$0xff]
    %v907 = vld [vmem:[#allocation13 + $0x1f0] sm:$0xff]
    %v908 = vld [vmem:[#allocation13 + $0x1f8] sm:$0xff]
    loop: start=0, step=1, limit=8
    $region46: #{bilstm_forward.2} parent=1 // loop_pre_header
      _
    $region47: #{bilstm_forward.2} parent=1 // loop_header
      %s910 = sphi 0, %s914
      %p911 = scmp.ge.s32.totalorder %s910, 8
    $region48: #{bilstm_forward.2} parent=1 // loop_header_branch
      %913 = sbr.rel (%p911) target = $region52
    $region49: #{bilstm_forward.2} parent=1 // loop_body
      %s915 = ssub.s32 7, %s910
      %s916 = smul.u32 %s910, 8
      %s917 = smul.u32 %s915, 8
      %s918 = sshra.s32 %s916, 3
      %s919 = sand.u32 %s916, 7
      %s920 = smul.u32 %s918, 4
      %s921 = smul.addr %s920, 8
      %s922 = scalar_lea.vmem [#allocation2], %s921
      %v923 = vld [vmem:[%s922] sm:$0xff]
      %v924 = vld [vmem:[%s922 + $0x8] sm:$0xff]
      %v925 = vld [vmem:[%s922 + $0x10] sm:$0xff]
      %v926 = vld [vmem:[%s922 + $0x18] sm:$0xff]
      %v927 = vld [vmem:[#allocation4] sm:$0xff]
      %928 = vmatprep.subr.mxu0 %v782
      %929 = vmatpush1.msra.mxu0 %v781
      %930 = vmatprep.subr.mxu0 %v786
      %931 = vmatpush1.msra.mxu0 %v785
      %932 = vmatprep.subr.mxu0 %v790
      %933 = vmatpush1.msra.mxu0 %v789
      %934 = vmatprep.subr.mxu0 %v794
      %935 = vmatpush1.msra.mxu0 %v793
      %936 = vmatprep.subr.mxu0 %v798
      %937 = vmatpush1.msra.mxu0 %v797
      %938 = vmatprep.subr.mxu0 %v802
      %939 = vmatpush1.msra.mxu0 %v801
      %940 = vmatprep.subr.mxu0 %v806
      %941 = vmatpush1.msra.mxu0 %v805
      %942 = vmatprep.subr.mxu0 %v810
      %943 = vmatpush1.msra.mxu0 %v809
      %944 = vmatprep.subr.mxu0 %v814
      %945 = vmatpush1.msra.mxu0 %v813
      %946 = vmatprep.subr.mxu0 %v818
      %947 = vmatpush1.msra.mxu0 %v817
      %948 = vmatprep.subr.mxu0 %v822
      %949 = vmatpush1.msra.mxu0 %v821
      %950 = vmatprep.subr.mxu0 %v826
      %951 = vmatpush1.msra.mxu0 %v825
      %952 = vmatprep.subr.mxu0 %v830
      %953 = vmatpush1.msra.mxu0 %v829
      %954 = vmatprep.subr.mxu0 %v834
      %955 = vmatpush1.msra.mxu0 %v833
      %956 = vmatprep.subr.mxu0 %v838
      %957 = vmatpush1.msra.mxu0 %v837
      %958 = vmatprep.subr.mxu0 %v842
      %959 = vmatpush1.msra.mxu0 %v841
      %960 = vmatprep.subr.mxu0 0.0
      %961 = vmatpush1.msra.mxu0 0.0
      %962 = vmatprep.subr.mxu0 0.0
      %963 = vmatpush1.msra.mxu0 0.0
      %964 = vmatprep.subr.mxu0 0.0
      %965 = vmatpush1.msra.mxu0 0.0
      %966 = vmatprep.subr.mxu0 0.0
      %967 = vmatpush1.msra.mxu0 0.0
      %968 = vmatprep.subr.mxu0 0.0
      %969 = vmatpush1.msra.mxu0 0.0
      %970 = vmatprep.subr.mxu0 0.0
      %971 = vmatpush1.msra.mxu0 0.0
      %972 = vmatprep.subr.mxu0 0.0
      %973 = vmatpush1.msra.mxu0 0.0
      %974 = vmatprep.subr.mxu0 0.0
      %975 = vmatpush1.msra.mxu0 0.0
      %976 = vmatprep.subr.mxu0 0.0
      %977 = vmatpush1.msra.mxu0 0.0
      %978 = vmatprep.subr.mxu0 0.0
      %979 = vmatpush1.msra.mxu0 0.0
      %980 = vmatprep.subr.mxu0 0.0
      %981 = vmatpush1.msra.mxu0 0.0
      %982 = vmatprep.subr.mxu0 0.0
      %983 = vmatpush1.msra.mxu0 0.0
      %984 = vmatprep.subr.mxu0 0.0
      %985 = vmatpush1.msra.mxu0 0.0
      %986 = vmatprep.subr.mxu0 0.0
      %987 = vmatpush1.msra.mxu0 0.0
      %988 = vmatprep.subr.mxu0 0.0
      %989 = vmatpush1.msra.mxu0 0.0
      %990 = vmatprep.subr.mxu0 0.0
      %991 = vmatpush1.msra.mxu0 0.0
      %992 = vmatprep.mubr.f32.mxu0 0.0
      %993 = vmatmul.mubr.f32.gmra.mrb[0].mxu0 %v927
      %v994 = vpop.f32.mrb[0].mxu0
      %v995 = vadd.f32 0.0, %v994
      %v996 = vpop.f32.mrb[0].mxu0
      %v997 = vadd.f32 0.0, %v996
      %998 = vdwg.mxu0
      %999 = vmatprep.subr.mxu0 %v784
      %1000 = vmatpush1.msra.mxu0 %v783
      %1001 = vmatprep.subr.mxu0 %v788
      %1002 = vmatpush1.msra.mxu0 %v787
      %1003 = vmatprep.subr.mxu0 %v792
      %1004 = vmatpush1.msra.mxu0 %v791
      %1005 = vmatprep.subr.mxu0 %v796
      %1006 = vmatpush1.msra.mxu0 %v795
      %1007 = vmatprep.subr.mxu0 %v800
      %1008 = vmatpush1.msra.mxu0 %v799
      %1009 = vmatprep.subr.mxu0 %v804
      %1010 = vmatpush1.msra.mxu0 %v803
      %1011 = vmatprep.subr.mxu0 %v808
      %1012 = vmatpush1.msra.mxu0 %v807
      %1013 = vmatprep.subr.mxu0 %v812
      %1014 = vmatpush1.msra.mxu0 %v811
      %1015 = vmatprep.subr.mxu0 %v816
      %1016 = vmatpush1.msra.mxu0 %v815
      %1017 = vmatprep.subr.mxu0 %v820
      %1018 = vmatpush1.msra.mxu0 %v819
      %1019 = vmatprep.subr.mxu0 %v824
      %1020 = vmatpush1.msra.mxu0 %v823
      %1021 = vmatprep.subr.mxu0 %v828
      %1022 = vmatpush1.msra.mxu0 %v827
      %1023 = vmatprep.subr.mxu0 %v832
      %1024 = vmatpush1.msra.mxu0 %v831
      %1025 = vmatprep.subr.mxu0 %v836
      %1026 = vmatpush1.msra.mxu0 %v835
      %1027 = vmatprep.subr.mxu0 %v840
      %1028 = vmatpush1.msra.mxu0 %v839
      %1029 = vmatprep.subr.mxu0 %v844
      %1030 = vmatpush1.msra.mxu0 %v843
      %1031 = vmatprep.subr.mxu0 0.0
      %1032 = vmatpush1.msra.mxu0 0.0
      %1033 = vmatprep.subr.mxu0 0.0
      %1034 = vmatpush1.msra.mxu0 0.0
      %1035 = vmatprep.subr.mxu0 0.0
      %1036 = vmatpush1.msra.mxu0 0.0
      %1037 = vmatprep.subr.mxu0 0.0
      %1038 = vmatpush1.msra.mxu0 0.0
      %1039 = vmatprep.subr.mxu0 0.0
      %1040 = vmatpush1.msra.mxu0 0.0
      %1041 = vmatprep.subr.mxu0 0.0
      %1042 = vmatpush1.msra.mxu0 0.0
      %1043 = vmatprep.subr.mxu0 0.0
      %1044 = vmatpush1.msra.mxu0 0.0
      %1045 = vmatprep.subr.mxu0 0.0
      %1046 = vmatpush1.msra.mxu0 0.0
      %1047 = vmatprep.subr.mxu0 0.0
      %1048 = vmatpush1.msra.mxu0 0.0
      %1049 = vmatprep.subr.mxu0 0.0
      %1050 = vmatpush1.msra.mxu0 0.0
      %1051 = vmatprep.subr.mxu0 0.0
      %1052 = vmatpush1.msra.mxu0 0.0
      %1053 = vmatprep.subr.mxu0 0.0
      %1054 = vmatpush1.msra.mxu0 0.0
      %1055 = vmatprep.subr.mxu0 0.0
      %1056 = vmatpush1.msra.mxu0 0.0
      %1057 = vmatprep.subr.mxu0 0.0
      %1058 = vmatpush1.msra.mxu0 0.0
      %1059 = vmatprep.subr.mxu0 0.0
      %1060 = vmatpush1.msra.mxu0 0.0
      %1061 = vmatprep.subr.mxu0 0.0
      %1062 = vmatpush1.msra.mxu0 0.0
      %1063 = vmatprep.mubr.f32.mxu0 0.0
      %1064 = vmatmul.mubr.f32.gmra.mrb[0].mxu0 %v927
      %v1065 = vpop.f32.mrb[0].mxu0
      %v1066 = vadd.f32 0.0, %v1065
      %v1067 = vpop.f32.mrb[0].mxu0
      %v1068 = vadd.f32 0.0, %v1067
      %1069 = vdwg.mxu0
      %v1070 = vadd.f32 %v923, %v995
      %v1071 = vadd.f32 %v924, %v997
      %v1072 = vadd.f32 %v925, %v1066
      %v1073 = vadd.f32 %v926, %v1068
      %s1074 = sshra.s32 %s917, 3
      %s1075 = sand.u32 %s917, 7
      %s1076 = smul.u32 %s1074, 4
      %s1077 = smul.addr %s1076, 8
      %s1078 = scalar_lea.vmem [#allocation3], %s1077
      %v1079 = vld [vmem:[%s1078] sm:$0xff]
      %v1080 = vld [vmem:[%s1078 + $0x8] sm:$0xff]
      %v1081 = vld [vmem:[%s1078 + $0x10] sm:$0xff]
      %v1082 = vld [vmem:[%s1078 + $0x18] sm:$0xff]
      %v1083 = vld [vmem:[#allocation6] sm:$0xff]
      %1084 = vmatprep.subr.mxu0 %v846
      %1085 = vmatpush1.msra.mxu0 %v845
      %1086 = vmatprep.subr.mxu0 %v850
      %1087 = vmatpush1.msra.mxu0 %v849
      %1088 = vmatprep.subr.mxu0 %v854
      %1089 = vmatpush1.msra.mxu0 %v853
      %1090 = vmatprep.subr.mxu0 %v858
      %1091 = vmatpush1.msra.mxu0 %v857
      %1092 = vmatprep.subr.mxu0 %v862
      %1093 = vmatpush1.msra.mxu0 %v861
      %1094 = vmatprep.subr.mxu0 %v866
      %1095 = vmatpush1.msra.mxu0 %v865
      %1096 = vmatprep.subr.mxu0 %v870
      %1097 = vmatpush1.msra.mxu0 %v869
      %1098 = vmatprep.subr.mxu0 %v874
      %1099 = vmatpush1.msra.mxu0 %v873
      %1100 = vmatprep.subr.mxu0 %v878
      %1101 = vmatpush1.msra.mxu0 %v877
      %1102 = vmatprep.subr.mxu0 %v882
      %1103 = vmatpush1.msra.mxu0 %v881
      %1104 = vmatprep.subr.mxu0 %v886
      %1105 = vmatpush1.msra.mxu0 %v885
      %1106 = vmatprep.subr.mxu0 %v890
      %1107 = vmatpush1.msra.mxu0 %v889
      %1108 = vmatprep.subr.mxu0 %v894
      %1109 = vmatpush1.msra.mxu0 %v893
      %1110 = vmatprep.subr.mxu0 %v898
      %1111 = vmatpush1.msra.mxu0 %v897
      %1112 = vmatprep.subr.mxu0 %v902
      %1113 = vmatpush1.msra.mxu0 %v901
      %1114 = vmatprep.subr.mxu0 %v906
      %1115 = vmatpush1.msra.mxu0 %v905
      %1116 = vmatprep.subr.mxu0 0.0
      %1117 = vmatpush1.msra.mxu0 0.0
      %1118 = vmatprep.subr.mxu0 0.0
      %1119 = vmatpush1.msra.mxu0 0.0
      %1120 = vmatprep.subr.mxu0 0.0
      %1121 = vmatpush1.msra.mxu0 0.0
      %1122 = vmatprep.subr.mxu0 0.0
      %1123 = vmatpush1.msra.mxu0 0.0
      %1124 = vmatprep.subr.mxu0 0.0
      %1125 = vmatpush1.msra.mxu0 0.0
      %1126 = vmatprep.subr.mxu0 0.0
      %1127 = vmatpush1.msra.mxu0 0.0
      %1128 = vmatprep.subr.mxu0 0.0
      %1129 = vmatpush1.msra.mxu0 0.0
      %1130 = vmatprep.subr.mxu0 0.0
      %1131 = vmatpush1.msra.mxu0 0.0
      %1132 = vmatprep.subr.mxu0 0.0
      %1133 = vmatpush1.msra.mxu0 0.0
      %1134 = vmatprep.subr.mxu0 0.0
      %1135 = vmatpush1.msra.mxu0 0.0
      %1136 = vmatprep.subr.mxu0 0.0
      %1137 = vmatpush1.msra.mxu0 0.0
      %1138 = vmatprep.subr.mxu0 0.0
      %1139 = vmatpush1.msra.mxu0 0.0
      %1140 = vmatprep.subr.mxu0 0.0
      %1141 = vmatpush1.msra.mxu0 0.0
      %1142 = vmatprep.subr.mxu0 0.0
      %1143 = vmatpush1.msra.mxu0 0.0
      %1144 = vmatprep.subr.mxu0 0.0
      %1145 = vmatpush1.msra.mxu0 0.0
      %1146 = vmatprep.subr.mxu0 0.0
      %1147 = vmatpush1.msra.mxu0 0.0
      %1148 = vmatprep.mubr.f32.mxu0 0.0
      %1149 = vmatmul.mubr.f32.gmra.mrb[0].mxu0 %v1083
      %v1150 = vpop.f32.mrb[0].mxu0
      %v1151 = vadd.f32 0.0, %v1150
      %v1152 = vpop.f32.mrb[0].mxu0
      %v1153 = vadd.f32 0.0, %v1152
      %1154 = vdwg.mxu0
      %1155 = vmatprep.subr.mxu0 %v848
      %1156 = vmatpush1.msra.mxu0 %v847
      %1157 = vmatprep.subr.mxu0 %v852
      %1158 = vmatpush1.msra.mxu0 %v851
      %1159 = vmatprep.subr.mxu0 %v856
      %1160 = vmatpush1.msra.mxu0 %v855
      %1161 = vmatprep.subr.mxu0 %v860
      %1162 = vmatpush1.msra.mxu0 %v859
      %1163 = vmatprep.subr.mxu0 %v864
      %1164 = vmatpush1.msra.mxu0 %v863
      %1165 = vmatprep.subr.mxu0 %v868
      %1166 = vmatpush1.msra.mxu0 %v867
      %1167 = vmatprep.subr.mxu0 %v872
      %1168 = vmatpush1.msra.mxu0 %v871
      %1169 = vmatprep.subr.mxu0 %v876
      %1170 = vmatpush1.msra.mxu0 %v875
      %1171 = vmatprep.subr.mxu0 %v880
      %1172 = vmatpush1.msra.mxu0 %v879
      %1173 = vmatprep.subr.mxu0 %v884
      %1174 = vmatpush1.msra.mxu0 %v883
      %1175 = vmatprep.subr.mxu0 %v888
      %1176 = vmatpush1.msra.mxu0 %v887
      %1177 = vmatprep.subr.mxu0 %v892
      %1178 = vmatpush1.msra.mxu0 %v891
      %1179 = vmatprep.subr.mxu0 %v896
      %1180 = vmatpush1.msra.mxu0 %v895
      %1181 = vmatprep.subr.mxu0 %v900
      %1182 = vmatpush1.msra.mxu0 %v899
      %1183 = vmatprep.subr.mxu0 %v904
      %1184 = vmatpush1.msra.mxu0 %v903
      %1185 = vmatprep.subr.mxu0 %v908
      %1186 = vmatpush1.msra.mxu0 %v907
      %1187 = vmatprep.subr.mxu0 0.0
      %1188 = vmatpush1.msra.mxu0 0.0
      %1189 = vmatprep.subr.mxu0 0.0
      %1190 = vmatpush1.msra.mxu0 0.0
      %1191 = vmatprep.subr.mxu0 0.0
      %1192 = vmatpush1.msra.mxu0 0.0
      %1193 = vmatprep.subr.mxu0 0.0
      %1194 = vmatpush1.msra.mxu0 0.0
      %1195 = vmatprep.subr.mxu0 0.0
      %1196 = vmatpush1.msra.mxu0 0.0
      %1197 = vmatprep.subr.mxu0 0.0
      %1198 = vmatpush1.msra.mxu0 0.0
      %1199 = vmatprep.subr.mxu0 0.0
      %1200 = vmatpush1.msra.mxu0 0.0
      %1201 = vmatprep.subr.mxu0 0.0
      %1202 = vmatpush1.msra.mxu0 0.0
      %1203 = vmatprep.subr.mxu0 0.0
      %1204 = vmatpush1.msra.mxu0 0.0
      %1205 = vmatprep.subr.mxu0 0.0
      %1206 = vmatpush1.msra.mxu0 0.0
      %1207 = vmatprep.subr.mxu0 0.0
      %1208 = vmatpush1.msra.mxu0 0.0
      %1209 = vmatprep.subr.mxu0 0.0
      %1210 = vmatpush1.msra.mxu0 0.0
      %1211 = vmatprep.subr.mxu0 0.0
      %1212 = vmatpush1.msra.mxu0 0.0
      %1213 = vmatprep.subr.mxu0 0.0
      %1214 = vmatpush1.msra.mxu0 0.0
      %1215 = vmatprep.subr.mxu0 0.0
      %1216 = vmatpush1.msra.mxu0 0.0
      %1217 = vmatprep.subr.mxu0 0.0
      %1218 = vmatpush1.msra.mxu0 0.0
      %1219 = vmatprep.mubr.f32.mxu0 0.0
      %1220 = vmatmul.mubr.f32.gmra.mrb[0].mxu0 %v1083
      %v1221 = vpop.f32.mrb[0].mxu0
      %v1222 = vadd.f32 0.0, %v1221
      %v1223 = vpop.f32.mrb[0].mxu0
      %v1224 = vadd.f32 0.0, %v1223
      %1225 = vdwg.mxu0
      %v1226 = vadd.f32 %v1079, %v1151
      %v1227 = vadd.f32 %v1080, %v1153
      %v1228 = vadd.f32 %v1081, %v1222
      %v1229 = vadd.f32 %v1082, %v1224
      %v1230 = vld [vmem:[#allocation5] sm:$0xff]
      %v1231 = vxor.u32 %v1070, 2147483648
      %v1232 = vmul.f32 %v1231, 1.442695
      %v1233 = vpow.pop %v1232
      %v1234 = vadd.f32 %v1233, 1.0
      %v1235 = vrcp.pop %v1234
      %v1236 = vmul.f32 1.0, %v1235
      %v1237 = vxor.u32 %v1071, 2147483648
      %v1238 = vmul.f32 %v1237, 1.442695
      %v1239 = vpow.pop %v1238
      %v1240 = vadd.f32 %v1239, 1.0
      %v1241 = vrcp.pop %v1240
      %v1242 = vmul.f32 1.0, %v1241
      %v1243 = vtanh.pop %v1072
      %v1244 = vxor.u32 %v1073, 2147483648
      %v1245 = vmul.f32 %v1244, 1.442695
      %v1246 = vpow.pop %v1245
      %v1247 = vadd.f32 %v1246, 1.0
      %v1248 = vrcp.pop %v1247
      %v1249 = vmul.f32 1.0, %v1248
      %v1250 = vmul.f32 %v1242, %v1230
      %v1251 = vmul.f32 %v1236, %v1243
      %v1252 = vadd.f32 %v1250, %v1251
      %v1253 = vtanh.pop %v1252
      %v1254 = vmul.f32 %v1249, %v1253
      %v1255 = vld [vmem:[#allocation7] sm:$0xff]
      %v1256 = vxor.u32 %v1226, 2147483648
      %v1257 = vmul.f32 %v1256, 1.442695
      %v1258 = vpow.pop %v1257
      %v1259 = vadd.f32 %v1258, 1.0
      %v1260 = vrcp.pop %v1259
      %v1261 = vmul.f32 1.0, %v1260
      %v1262 = vxor.u32 %v1227, 2147483648
      %v1263 = vmul.f32 %v1262, 1.442695
      %v1264 = vpow.pop %v1263
      %v1265 = vadd.f32 %v1264, 1.0
      %v1266 = vrcp.pop %v1265
      %v1267 = vmul.f32 1.0, %v1266
      %v1268 = vtanh.pop %v1228
      %v1269 = vxor.u32 %v1229, 2147483648
      %v1270 = vmul.f32 %v1269, 1.442695
      %v1271 = vpow.pop %v1270
      %v1272 = vadd.f32 %v1271, 1.0
      %v1273 = vrcp.pop %v1272
      %v1274 = vmul.f32 1.0, %v1273
      %v1275 = vmul.f32 %v1267, %v1255
      %v1276 = vmul.f32 %v1261, %v1268
      %v1277 = vadd.f32 %v1275, %v1276
      %v1278 = vtanh.pop %v1277
      %v1279 = vmul.f32 %v1274, %v1278
      %1280 = vst [vmem:[#allocation4] sm:$0xff] %v1254
      %1281 = vst [vmem:[#allocation5] sm:$0xff] %v1252
      %1282 = vst [vmem:[#allocation6] sm:$0xff] %v1279
      %1283 = vst [vmem:[#allocation7] sm:$0xff] %v1277
      %s1284 = smul.u32 %s918, 2
      %s1285 = smul.addr %s1284, 8
      %s1286 = scalar_lea.vmem %s7, %s1285
      %1287 = vst [vmem:[%s1286] sm:$0xff] %v1254
      %s1288 = smul.u32 %s1074, 2
      %s1289 = smul.addr %s1288, 8
      %s1290 = scalar_lea.vmem %s7, %s1289
      %1291 = vst [vmem:[%s1290 + $0x8] sm:$0xff] %v1279
    $region50: #{bilstm_forward.2} parent=1 // loop_footer
      %s914 = sadd.s32 1, %s910
    $region51: #{bilstm_forward.2} parent=1 // loop_footer_branch
      %909 = sbr.rel target = $region47
    $region52: #{bilstm_forward.2} parent=1 // loop_exit
      _
    // Predicated region
    $region53: #{bilstm_forward.2} parent=1 // pred_check
      _
    $region54: #{bilstm_forward.2} parent=1 // pred_check_branch
      %1293 = sbr.rel (0) target = $region56
    $region55: #{bilstm_forward.2} parent=1 // pred_region
      _
    $region56: #{bilstm_forward.2} parent=1 // pred_fallthru
      _
    // Predicated region
    $region57: #{bilstm_forward.2} parent=1 // pred_check
      _
    $region58: #{bilstm_forward.2} parent=1 // pred_check_branch
      %1295 = sbr.rel (0) target = $region60
    $region59: #{bilstm_forward.2} parent=1 // pred_region
      _
    $region60: #{bilstm_forward.2} parent=1 // pred_fallthru
      _
    %1296 = vsyncpa [#allocation9], 1
    %1297 = vsyncpa [#allocation11], 1
    %1298 = vsyncpa [#allocation14], 1

// kernel: bilstm_forward.3
$region0: #{bilstm_forward.3}
  #allocation0 [shape = 'u32[]', space=smem, size = 0x4, offset = 0x4, fixed_abs, tag = 'smem constant byte address 0x4 - core index']
  #allocation1 [shape = 'u32[144,128]{1,0:T(1,128)}', space=vmem, size = 0x12000, scoped, tag = 'internal scratch']
  #allocation2 [shape = 'f32[64,512]{1,0:T(8,128)}', space=vmem, size = 0x20000, scoped, tag = 'scratch operand']
  #allocation3 [shape = 'f32[64,512]{1,0:T(8,128)}', space=vmem, size = 0x20000, scoped, tag = 'scratch operand']
  #allocation4 [shape = 'f32[8,128]{1,0:T(8,128)}', space=vmem, size = 0x1000, scoped, tag = 'scratch operand']
  #allocation5 [shape = 'f32[8,128]{1,0:T(8,128)}', space=vmem, size = 0x1000, scoped, tag = 'scratch operand']
  #allocation6 [shape = 'f32[8,128]{1,0:T(8,128)}', space=vmem, size = 0x1000, scoped, tag = 'scratch operand']
  #allocation7 [shape = 'f32[8,128]{1,0:T(8,128)}', space=vmem, size = 0x1000, scoped, tag = 'scratch operand']
  #allocation8 [shape = 'f32[8,128]{1,0:T(8,128)}', space=vmem, size = 0x1000, scoped, tag = 'scratch operand']
  %s0 = inlined_call_operand.vmem [shape: f32[64,256], index: 0, kind: input, shape index: {}]
  %s1 = inlined_call_operand.vmem [shape: f32[256,512], index: 1, kind: input, shape index: {}]
  %s2 = inlined_call_operand.hbm [shape: f32[128,512], index: 2, kind: input, shape index: {}]
  %s3 = inlined_call_operand.vmem [shape: f32[1,512], index: 3, kind: input, shape index: {}]
  %s4 = inlined_call_operand.vmem [shape: f32[256,512], index: 4, kind: input, shape index: {}]
  %s5 = inlined_call_operand.hbm [shape: f32[128,512], index: 5, kind: input, shape index: {}]
  %s6 = inlined_call_operand.vmem [shape: f32[1,512], index: 6, kind: input, shape index: {}]
  %s7 = inlined_call_operand.vmem [shape: f32[256,128], index: 7, kind: input, shape index: {}]
  %s8 = inlined_call_operand.vmem [shape: f32[1,128], index: 8, kind: input, shape index: {}]
  %s9 = inlined_call_operand.vmem [shape: f32[8,128], index: 9, kind: output, shape index: {}]
  %s10 = sld [smem:[#allocation0]]
  $region65: #{bilstm_forward.3} parent=0
    _
  %s12 = ssub.s32 1, %s10
  %s13 = scalar_select 0, %s12, %s10
  $region1: #{bilstm_forward.3} parent=0
    #allocation9 [shape = 'u8[262144]{0}', space=vmem, size = 0x40000, scoped, tag = 'input window, operand 2, single buffered']
    #allocation10 [shape = 's32[1]{0}', space=sflag, size = 0x4, scoped, tag = 'scoped memory for bilstm_forward.3']
    #allocation11 [shape = 'u8[262144]{0}', space=vmem, size = 0x40000, scoped, tag = 'input window, operand 5, single buffered']
    #allocation12 [shape = 's32[1]{0}', space=sflag, size = 0x4, scoped, tag = 'scoped memory for bilstm_forward.3']
    %14 = vsyncpa [#allocation10], 0
    %15 = vsyncpa [#allocation12], 0
    // Predicated region
    $region2: #{bilstm_forward.3} parent=1 // pred_check
      _
    $region3: #{bilstm_forward.3} parent=1 // pred_check_branch
      %17 = sbr.rel (0) target = $region5
    $region4: #{bilstm_forward.3} parent=1 // pred_region
      _
    $region5: #{bilstm_forward.3} parent=1 // pred_fallthru
      _
    // Predicated region
    $region6: #{bilstm_forward.3} parent=1 // pred_check
      _
    $region7: #{bilstm_forward.3} parent=1 // pred_check_branch
      %19 = sbr.rel (0) target = $region9
    $region8: #{bilstm_forward.3} parent=1 // pred_region
      _
    $region9: #{bilstm_forward.3} parent=1 // pred_fallthru
      _
    // Predicated region
    $region10: #{bilstm_forward.3} parent=1 // pred_check
      _
    $region11: #{bilstm_forward.3} parent=1 // pred_check_branch
      %21 = sbr.rel (0) target = $region13
    $region12: #{bilstm_forward.3} parent=1 // pred_region
      %s23 = ssub.s32 8192, 8192
      %24 = vsyncadd [#allocation10], %s23
      %s25 = sshll.u32 [#allocation9], 4
      %s26 = int_to_ptr.vmem [resolvable:$true] %s25
      %31 = dma.hbm_to_vmem [thread:$0]  %s2, 8192, %s26, [#allocation10], 512, 512, 32
    $region13: #{bilstm_forward.3} parent=1 // pred_fallthru
      _
    // Predicated region
    $region14: #{bilstm_forward.3} parent=1 // pred_check
      _
    $region15: #{bilstm_forward.3} parent=1 // pred_check_branch
      %33 = sbr.rel (0) target = $region17
    $region16: #{bilstm_forward.3} parent=1 // pred_region
      _
    $region17: #{bilstm_forward.3} parent=1 // pred_fallthru
      _
    // Predicated region
    $region18: #{bilstm_forward.3} parent=1 // pred_check
      _
    $region19: #{bilstm_forward.3} parent=1 // pred_check_branch
      %35 = sbr.rel (0) target = $region21
    $region20: #{bilstm_forward.3} parent=1 // pred_region
      _
    $region21: #{bilstm_forward.3} parent=1 // pred_fallthru
      _
    // Predicated region
    $region22: #{bilstm_forward.3} parent=1 // pred_check
      _
    $region23: #{bilstm_forward.3} parent=1 // pred_check_branch
      %37 = sbr.rel (0) target = $region25
    $region24: #{bilstm_forward.3} parent=1 // pred_region
      %s39 = ssub.s32 8192, 8192
      %40 = vsyncadd [#allocation12], %s39
      %s41 = sshll.u32 [#allocation11], 4
      %s42 = int_to_ptr.vmem [resolvable:$true] %s41
      %47 = dma.hbm_to_vmem [thread:$0]  %s5, 8192, %s42, [#allocation12], 512, 512, 32
    $region25: #{bilstm_forward.3} parent=1 // pred_fallthru
      _
    // Predicated region
    $region26: #{bilstm_forward.3} parent=1 // pred_check
      _
    $region27: #{bilstm_forward.3} parent=1 // pred_check_branch
      %49 = sbr.rel (0) target = $region29
    $region28: #{bilstm_forward.3} parent=1 // pred_region
      _
    $region29: #{bilstm_forward.3} parent=1 // pred_fallthru
      _
    // Predicated region
    $region30: #{bilstm_forward.3} parent=1 // pred_check
      _
    $region31: #{bilstm_forward.3} parent=1 // pred_check_branch
      %51 = sbr.rel (0) target = $region33
    $region32: #{bilstm_forward.3} parent=1 // pred_region
      _
    $region33: #{bilstm_forward.3} parent=1 // pred_fallthru
      _
    // Predicated region
    $region34: #{bilstm_forward.3} parent=1 // pred_check
      _
    $region35: #{bilstm_forward.3} parent=1 // pred_check_branch
      %53 = sbr.rel (0) target = $region37
    $region36: #{bilstm_forward.3} parent=1 // pred_region
      _
    $region37: #{bilstm_forward.3} parent=1 // pred_fallthru
      _
    // Predicated region
    $region38: #{bilstm_forward.3} parent=1 // pred_check
      _
    $region39: #{bilstm_forward.3} parent=1 // pred_check_branch
      %55 = sbr.rel (0) target = $region41
    $region40: #{bilstm_forward.3} parent=1 // pred_region
      %56 = dma.done [#allocation10], 8192
    $region41: #{bilstm_forward.3} parent=1 // pred_fallthru
      _
    // Predicated region
    $region42: #{bilstm_forward.3} parent=1 // pred_check
      _
    $region43: #{bilstm_forward.3} parent=1 // pred_check_branch
      %58 = sbr.rel (0) target = $region45
    $region44: #{bilstm_forward.3} parent=1 // pred_region
      %59 = dma.done [#allocation12], 8192
    $region45: #{bilstm_forward.3} parent=1 // pred_fallthru
      _
    %v60 = vld [vmem:[%s0] sm:$0xff]
    %v61 = vld [vmem:[%s0 + $0x8] sm:$0xff]
    %v62 = vld [vmem:[%s0 + $0x10] sm:$0xff]
    %v63 = vld [vmem:[%s0 + $0x18] sm:$0xff]
    %v64 = vld [vmem:[%s0 + $0x20] sm:$0xff]
    %v65 = vld [vmem:[%s0 + $0x28] sm:$0xff]
    %v66 = vld [vmem:[%s0 + $0x30] sm:$0xff]
    %v67 = vld [vmem:[%s0 + $0x38] sm:$0xff]
    %v68 = vld [vmem:[%s0 + $0x40] sm:$0xff]
    %v69 = vld [vmem:[%s0 + $0x48] sm:$0xff]
    %v70 = vld [vmem:[%s0 + $0x50] sm:$0xff]
    %v71 = vld [vmem:[%s0 + $0x58] sm:$0xff]
    %v72 = vld [vmem:[%s0 + $0x60] sm:$0xff]
    %v73 = vld [vmem:[%s0 + $0x68] sm:$0xff]
    %v74 = vld [vmem:[%s0 + $0x70] sm:$0xff]
    %v75 = vld [vmem:[%s0 + $0x78] sm:$0xff]
    %v76 = vld [vmem:[%s1] sm:$0xff]
    %v77 = vld [vmem:[%s1 + $0x8] sm:$0xff]
    %v78 = vld [vmem:[%s1 + $0x10] sm:$0xff]
    %v79 = vld [vmem:[%s1 + $0x18] sm:$0xff]
    %v80 = vld [vmem:[%s1 + $0x20] sm:$0xff]
    %v81 = vld [vmem:[%s1 + $0x28] sm:$0xff]
    %v82 = vld [vmem:[%s1 + $0x30] sm:$0xff]
    %v83 = vld [vmem:[%s1 + $0x38] sm:$0xff]
    %v84 = vld [vmem:[%s1 + $0x40] sm:$0xff]
    %v85 = vld [vmem:[%s1 + $0x48] sm:$0xff]
    %v86 = vld [vmem:[%s1 + $0x50] sm:$0xff]
    %v87 = vld [vmem:[%s1 + $0x58] sm:$0xff]
    %v88 = vld [vmem:[%s1 + $0x60] sm:$0xff]
    %v89 = vld [vmem:[%s1 + $0x68] sm:$0xff]
    %v90 = vld [vmem:[%s1 + $0x70] sm:$0xff]
    %v91 = vld [vmem:[%s1 + $0x78] sm:$0xff]
    %v92 = vld [vmem:[%s1 + $0x80] sm:$0xff]
    %v93 = vld [vmem:[%s1 + $0x88] sm:$0xff]
    %v94 = vld [vmem:[%s1 + $0x90] sm:$0xff]
    %v95 = vld [vmem:[%s1 + $0x98] sm:$0xff]
    %v96 = vld [vmem:[%s1 + $0xa0] sm:$0xff]
    %v97 = vld [vmem:[%s1 + $0xa8] sm:$0xff]
    %v98 = vld [vmem:[%s1 + $0xb0] sm:$0xff]
    %v99 = vld [vmem:[%s1 + $0xb8] sm:$0xff]
    %v100 = vld [vmem:[%s1 + $0xc0] sm:$0xff]
    %v101 = vld [vmem:[%s1 + $0xc8] sm:$0xff]
    %v102 = vld [vmem:[%s1 + $0xd0] sm:$0xff]
    %v103 = vld [vmem:[%s1 + $0xd8] sm:$0xff]
    %v104 = vld [vmem:[%s1 + $0xe0] sm:$0xff]
    %v105 = vld [vmem:[%s1 + $0xe8] sm:$0xff]
    %v106 = vld [vmem:[%s1 + $0xf0] sm:$0xff]
    %v107 = vld [vmem:[%s1 + $0xf8] sm:$0xff]
    %v108 = vld [vmem:[%s1 + $0x100] sm:$0xff]
    %v109 = vld [vmem:[%s1 + $0x108] sm:$0xff]
    %v110 = vld [vmem:[%s1 + $0x110] sm:$0xff]
    %v111 = vld [vmem:[%s1 + $0x118] sm:$0xff]
    %v112 = vld [vmem:[%s1 + $0x120] sm:$0xff]
    %v113 = vld [vmem:[%s1 + $0x128] sm:$0xff]
    %v114 = vld [vmem:[%s1 + $0x130] sm:$0xff]
    %v115 = vld [vmem:[%s1 + $0x138] sm:$0xff]
    %v116 = vld [vmem:[%s1 + $0x140] sm:$0xff]
    %v117 = vld [vmem:[%s1 + $0x148] sm:$0xff]
    %v118 = vld [vmem:[%s1 + $0x150] sm:$0xff]
    %v119 = vld [vmem:[%s1 + $0x158] sm:$0xff]
    %v120 = vld [vmem:[%s1 + $0x160] sm:$0xff]
    %v121 = vld [vmem:[%s1 + $0x168] sm:$0xff]
    %v122 = vld [vmem:[%s1 + $0x170] sm:$0xff]
    %v123 = vld [vmem:[%s1 + $0x178] sm:$0xff]
    %v124 = vld [vmem:[%s1 + $0x180] sm:$0xff]
    %v125 = vld [vmem:[%s1 + $0x188] sm:$0xff]
    %v126 = vld [vmem:[%s1 + $0x190] sm:$0xff]
    %v127 = vld [vmem:[%s1 + $0x198] sm:$0xff]
    %v128 = vld [vmem:[%s1 + $0x1a0] sm:$0xff]
    %v129 = vld [vmem:[%s1 + $0x1a8] sm:$0xff]
    %v130 = vld [vmem:[%s1 + $0x1b0] sm:$0xff]
    %v131 = vld [vmem:[%s1 + $0x1b8] sm:$0xff]
    %v132 = vld [vmem:[%s1 + $0x1c0] sm:$0xff]
    %v133 = vld [vmem:[%s1 + $0x1c8] sm:$0xff]
    %v134 = vld [vmem:[%s1 + $0x1d0] sm:$0xff]
    %v135 = vld [vmem:[%s1 + $0x1d8] sm:$0xff]
    %v136 = vld [vmem:[%s1 + $0x1e0] sm:$0xff]
    %v137 = vld [vmem:[%s1 + $0x1e8] sm:$0xff]
    %v138 = vld [vmem:[%s1 + $0x1f0] sm:$0xff]
    %v139 = vld [vmem:[%s1 + $0x1f8] sm:$0xff]
    %v140 = vld [vmem:[%s1 + $0x200] sm:$0xff]
    %v141 = vld [vmem:[%s1 + $0x208] sm:$0xff]
    %v142 = vld [vmem:[%s1 + $0x210] sm:$0xff]
    %v143 = vld [vmem:[%s1 + $0x218] sm:$0xff]
    %v144 = vld [vmem:[%s1 + $0x220] sm:$0xff]
    %v145 = vld [vmem:[%s1 + $0x228] sm:$0xff]
    %v146 = vld [vmem:[%s1 + $0x230] sm:$0xff]
    %v147 = vld [vmem:[%s1 + $0x238] sm:$0xff]
    %v148 = vld [vmem:[%s1 + $0x240] sm:$0xff]
    %v149 = vld [vmem:[%s1 + $0x248] sm:$0xff]
    %v150 = vld [vmem:[%s1 + $0x250] sm:$0xff]
    %v151 = vld [vmem:[%s1 + $0x258] sm:$0xff]
    %v152 = vld [vmem:[%s1 + $0x260] sm:$0xff]
    %v153 = vld [vmem:[%s1 + $0x268] sm:$0xff]
    %v154 = vld [vmem:[%s1 + $0x270] sm:$0xff]
    %v155 = vld [vmem:[%s1 + $0x278] sm:$0xff]
    %v156 = vld [vmem:[%s1 + $0x280] sm:$0xff]
    %v157 = vld [vmem:[%s1 + $0x288] sm:$0xff]
    %v158 = vld [vmem:[%s1 + $0x290] sm:$0xff]
    %v159 = vld [vmem:[%s1 + $0x298] sm:$0xff]
    %v160 = vld [vmem:[%s1 + $0x2a0] sm:$0xff]
    %v161 = vld [vmem:[%s1 + $0x2a8] sm:$0xff]
    %v162 = vld [vmem:[%s1 + $0x2b0] sm:$0xff]
    %v163 = vld [vmem:[%s1 + $0x2b8] sm:$0xff]
    %v164 = vld [vmem:[%s1 + $0x2c0] sm:$0xff]
    %v165 = vld [vmem:[%s1 + $0x2c8] sm:$0xff]
    %v166 = vld [vmem:[%s1 + $0x2d0] sm:$0xff]
    %v167 = vld [vmem:[%s1 + $0x2d8] sm:$0xff]
    %v168 = vld [vmem:[%s1 + $0x2e0] sm:$0xff]
    %v169 = vld [vmem:[%s1 + $0x2e8] sm:$0xff]
    %v170 = vld [vmem:[%s1 + $0x2f0] sm:$0xff]
    %v171 = vld [vmem:[%s1 + $0x2f8] sm:$0xff]
    %v172 = vld [vmem:[%s1 + $0x300] sm:$0xff]
    %v173 = vld [vmem:[%s1 + $0x308] sm:$0xff]
    %v174 = vld [vmem:[%s1 + $0x310] sm:$0xff]
    %v175 = vld [vmem:[%s1 + $0x318] sm:$0xff]
    %v176 = vld [vmem:[%s1 + $0x320] sm:$0xff]
    %v177 = vld [vmem:[%s1 + $0x328] sm:$0xff]
    %v178 = vld [vmem:[%s1 + $0x330] sm:$0xff]
    %v179 = vld [vmem:[%s1 + $0x338] sm:$0xff]
    %v180 = vld [vmem:[%s1 + $0x340] sm:$0xff]
    %v181 = vld [vmem:[%s1 + $0x348] sm:$0xff]
    %v182 = vld [vmem:[%s1 + $0x350] sm:$0xff]
    %v183 = vld [vmem:[%s1 + $0x358] sm:$0xff]
    %v184 = vld [vmem:[%s1 + $0x360] sm:$0xff]
    %v185 = vld [vmem:[%s1 + $0x368] sm:$0xff]
    %v186 = vld [vmem:[%s1 + $0x370] sm:$0xff]
    %v187 = vld [vmem:[%s1 + $0x378] sm:$0xff]
    %v188 = vld [vmem:[%s1 + $0x380] sm:$0xff]
    %v189 = vld [vmem:[%s1 + $0x388] sm:$0xff]
    %v190 = vld [vmem:[%s1 + $0x390] sm:$0xff]
    %v191 = vld [vmem:[%s1 + $0x398] sm:$0xff]
    %v192 = vld [vmem:[%s1 + $0x3a0] sm:$0xff]
    %v193 = vld [vmem:[%s1 + $0x3a8] sm:$0xff]
    %v194 = vld [vmem:[%s1 + $0x3b0] sm:$0xff]
    %v195 = vld [vmem:[%s1 + $0x3b8] sm:$0xff]
    %v196 = vld [vmem:[%s1 + $0x3c0] sm:$0xff]
    %v197 = vld [vmem:[%s1 + $0x3c8] sm:$0xff]
    %v198 = vld [vmem:[%s1 + $0x3d0] sm:$0xff]
    %v199 = vld [vmem:[%s1 + $0x3d8] sm:$0xff]
    %v200 = vld [vmem:[%s1 + $0x3e0] sm:$0xff]
    %v201 = vld [vmem:[%s1 + $0x3e8] sm:$0xff]
    %v202 = vld [vmem:[%s1 + $0x3f0] sm:$0xff]
    %v203 = vld [vmem:[%s1 + $0x3f8] sm:$0xff]
    %v204 = vld [vmem:[%s3] sm:$0xf]
    %v206 = vlaneseq
    %v207 = vshrl.u32 %v206, 7
    %v208 = vsub.s32 0, %v207
    %v209 = vrot.slane %v204, %v208
    %v210 = vlaneseq
    %v211 = vshrl.u32 %v210, 7
    %v212 = vsub.s32 1, %v211
    %v213 = vrot.slane %v204, %v212
    %v214 = vlaneseq
    %v215 = vshrl.u32 %v214, 7
    %v216 = vsub.s32 2, %v215
    %v217 = vrot.slane %v204, %v216
    %v218 = vlaneseq
    %v219 = vshrl.u32 %v218, 7
    %v220 = vsub.s32 3, %v219
    %v221 = vrot.slane %v204, %v220
    %226 = vmatprep.subr.mxu0 %v77
    %227 = vmatpush1.msra.mxu0 %v76
    %228 = vmatprep.subr.mxu0 %v81
    %229 = vmatpush1.msra.mxu0 %v80
    %230 = vmatprep.subr.mxu0 %v85
    %231 = vmatpush1.msra.mxu0 %v84
    %232 = vmatprep.subr.mxu0 %v89
    %233 = vmatpush1.msra.mxu0 %v88
    %234 = vmatprep.subr.mxu0 %v93
    %235 = vmatpush1.msra.mxu0 %v92
    %236 = vmatprep.subr.mxu0 %v97
    %237 = vmatpush1.msra.mxu0 %v96
    %238 = vmatprep.subr.mxu0 %v101
    %239 = vmatpush1.msra.mxu0 %v100
    %240 = vmatprep.subr.mxu0 %v105
    %241 = vmatpush1.msra.mxu0 %v104
    %242 = vmatprep.subr.mxu0 %v109
    %243 = vmatpush1.msra.mxu0 %v108
    %244 = vmatprep.subr.mxu0 %v113
    %245 = vmatpush1.msra.mxu0 %v112
    %246 = vmatprep.subr.mxu0 %v117
    %247 = vmatpush1.msra.mxu0 %v116
    %248 = vmatprep.subr.mxu0 %v121
    %249 = vmatpush1.msra.mxu0 %v120
    %250 = vmatprep.subr.mxu0 %v125
    %251 = vmatpush1.msra.mxu0 %v124
    %252 = vmatprep.subr.mxu0 %v129
    %253 = vmatpush1.msra.mxu0 %v128
    %254 = vmatprep.subr.mxu0 %v133
    %255 = vmatpush1.msra.mxu0 %v132
    %256 = vmatprep.subr.mxu0 %v137
    %257 = vmatpush1.msra.mxu0 %v136
    %258 = vmatprep.subr.mxu0 %v141
    %259 = vmatpush1.msra.mxu0 %v140
    %260 = vmatprep.subr.mxu0 %v145
    %261 = vmatpush1.msra.mxu0 %v144
    %262 = vmatprep.subr.mxu0 %v149
    %263 = vmatpush1.msra.mxu0 %v148
    %264 = vmatprep.subr.mxu0 %v153
    %265 = vmatpush1.msra.mxu0 %v152
    %266 = vmatprep.subr.mxu0 %v157
    %267 = vmatpush1.msra.mxu0 %v156
    %268 = vmatprep.subr.mxu0 %v161
    %269 = vmatpush1.msra.mxu0 %v160
    %270 = vmatprep.subr.mxu0 %v165
    %271 = vmatpush1.msra.mxu0 %v164
    %272 = vmatprep.subr.mxu0 %v169
    %273 = vmatpush1.msra.mxu0 %v168
    %274 = vmatprep.subr.mxu0 %v173
    %275 = vmatpush1.msra.mxu0 %v172
    %276 = vmatprep.subr.mxu0 %v177
    %277 = vmatpush1.msra.mxu0 %v176
    %278 = vmatprep.subr.mxu0 %v181
    %279 = vmatpush1.msra.mxu0 %v180
    %280 = vmatprep.subr.mxu0 %v185
    %281 = vmatpush1.msra.mxu0 %v184
    %282 = vmatprep.subr.mxu0 %v189
    %283 = vmatpush1.msra.mxu0 %v188
    %284 = vmatprep.subr.mxu0 %v193
    %285 = vmatpush1.msra.mxu0 %v192
    %286 = vmatprep.subr.mxu0 %v197
    %287 = vmatpush1.msra.mxu0 %v196
    %288 = vmatprep.subr.mxu0 %v201
    %289 = vmatpush1.msra.mxu0 %v200
    %290 = vmatprep.mubr.f32.mxu0 %v61
    %291 = vmatmul.mubr.f32.gmra.mrb[0].mxu0 %v60
    %v292 = vpop.f32.mrb[0].mxu0
    %v293 = vadd.f32 %v209, %v292
    %v294 = vpop.f32.mrb[0].mxu0
    %v295 = vadd.f32 %v213, %v294
    %296 = vmatprep.mubr.f32.mxu0 %v63
    %297 = vmatmul.mubr.f32.gmra.mrb[0].mxu0 %v62
    %v298 = vpop.f32.mrb[0].mxu0
    %v299 = vadd.f32 %v209, %v298
    %v300 = vpop.f32.mrb[0].mxu0
    %v301 = vadd.f32 %v213, %v300
    %302 = vmatprep.mubr.f32.mxu0 %v65
    %303 = vmatmul.mubr.f32.gmra.mrb[0].mxu0 %v64
    %v304 = vpop.f32.mrb[0].mxu0
    %v305 = vadd.f32 %v209, %v304
    %v306 = vpop.f32.mrb[0].mxu0
    %v307 = vadd.f32 %v213, %v306
    %308 = vmatprep.mubr.f32.mxu0 %v67
    %309 = vmatmul.mubr.f32.gmra.mrb[0].mxu0 %v66
    %v310 = vpop.f32.mrb[0].mxu0
    %v311 = vadd.f32 %v209, %v310
    %v312 = vpop.f32.mrb[0].mxu0
    %v313 = vadd.f32 %v213, %v312
    %314 = vmatprep.mubr.f32.mxu0 %v69
    %315 = vmatmul.mubr.f32.gmra.mrb[0].mxu0 %v68
    %v316 = vpop.f32.mrb[0].mxu0
    %v317 = vadd.f32 %v209, %v316
    %v318 = vpop.f32.mrb[0].mxu0
    %v319 = vadd.f32 %v213, %v318
    %320 = vmatprep.mubr.f32.mxu0 %v71
    %321 = vmatmul.mubr.f32.gmra.mrb[0].mxu0 %v70
    %v322 = vpop.f32.mrb[0].mxu0
    %v323 = vadd.f32 %v209, %v322
    %v324 = vpop.f32.mrb[0].mxu0
    %v325 = vadd.f32 %v213, %v324
    %326 = vmatprep.mubr.f32.mxu0 %v73
    %327 = vmatmul.mubr.f32.gmra.mrb[0].mxu0 %v72
    %v328 = vpop.f32.mrb[0].mxu0
    %v329 = vadd.f32 %v209, %v328
    %v330 = vpop.f32.mrb[0].mxu0
    %v331 = vadd.f32 %v213, %v330
    %332 = vmatprep.mubr.f32.mxu0 %v75
    %333 = vmatmul.mubr.f32.gmra.mrb[0].mxu0 %v74
    %v334 = vpop.f32.mrb[0].mxu0
    %v335 = vadd.f32 %v209, %v334
    %v336 = vpop.f32.mrb[0].mxu0
    %v337 = vadd.f32 %v213, %v336
    %338 = vdwg.mxu0
    %339 = vmatprep.subr.mxu0 %v79
    %340 = vmatpush1.msra.mxu0 %v78
    %341 = vmatprep.subr.mxu0 %v83
    %342 = vmatpush1.msra.mxu0 %v82
    %343 = vmatprep.subr.mxu0 %v87
    %344 = vmatpush1.msra.mxu0 %v86
    %345 = vmatprep.subr.mxu0 %v91
    %346 = vmatpush1.msra.mxu0 %v90
    %347 = vmatprep.subr.mxu0 %v95
    %348 = vmatpush1.msra.mxu0 %v94
    %349 = vmatprep.subr.mxu0 %v99
    %350 = vmatpush1.msra.mxu0 %v98
    %351 = vmatprep.subr.mxu0 %v103
    %352 = vmatpush1.msra.mxu0 %v102
    %353 = vmatprep.subr.mxu0 %v107
    %354 = vmatpush1.msra.mxu0 %v106
    %355 = vmatprep.subr.mxu0 %v111
    %356 = vmatpush1.msra.mxu0 %v110
    %357 = vmatprep.subr.mxu0 %v115
    %358 = vmatpush1.msra.mxu0 %v114
    %359 = vmatprep.subr.mxu0 %v119
    %360 = vmatpush1.msra.mxu0 %v118
    %361 = vmatprep.subr.mxu0 %v123
    %362 = vmatpush1.msra.mxu0 %v122
    %363 = vmatprep.subr.mxu0 %v127
    %364 = vmatpush1.msra.mxu0 %v126
    %365 = vmatprep.subr.mxu0 %v131
    %366 = vmatpush1.msra.mxu0 %v130
    %367 = vmatprep.subr.mxu0 %v135
    %368 = vmatpush1.msra.mxu0 %v134
    %369 = vmatprep.subr.mxu0 %v139
    %370 = vmatpush1.msra.mxu0 %v138
    %371 = vmatprep.subr.mxu0 %v143
    %372 = vmatpush1.msra.mxu0 %v142
    %373 = vmatprep.subr.mxu0 %v147
    %374 = vmatpush1.msra.mxu0 %v146
    %375 = vmatprep.subr.mxu0 %v151
    %376 = vmatpush1.msra.mxu0 %v150
    %377 = vmatprep.subr.mxu0 %v155
    %378 = vmatpush1.msra.mxu0 %v154
    %379 = vmatprep.subr.mxu0 %v159
    %380 = vmatpush1.msra.mxu0 %v158
    %381 = vmatprep.subr.mxu0 %v163
    %382 = vmatpush1.msra.mxu0 %v162
    %383 = vmatprep.subr.mxu0 %v167
    %384 = vmatpush1.msra.mxu0 %v166
    %385 = vmatprep.subr.mxu0 %v171
    %386 = vmatpush1.msra.mxu0 %v170
    %387 = vmatprep.subr.mxu0 %v175
    %388 = vmatpush1.msra.mxu0 %v174
    %389 = vmatprep.subr.mxu0 %v179
    %390 = vmatpush1.msra.mxu0 %v178
    %391 = vmatprep.subr.mxu0 %v183
    %392 = vmatpush1.msra.mxu0 %v182
    %393 = vmatprep.subr.mxu0 %v187
    %394 = vmatpush1.msra.mxu0 %v186
    %395 = vmatprep.subr.mxu0 %v191
    %396 = vmatpush1.msra.mxu0 %v190
    %397 = vmatprep.subr.mxu0 %v195
    %398 = vmatpush1.msra.mxu0 %v194
    %399 = vmatprep.subr.mxu0 %v199
    %400 = vmatpush1.msra.mxu0 %v198
    %401 = vmatprep.subr.mxu0 %v203
    %402 = vmatpush1.msra.mxu0 %v202
    %403 = vmatprep.mubr.f32.mxu0 %v61
    %404 = vmatmul.mubr.f32.gmra.mrb[0].mxu0 %v60
    %v405 = vpop.f32.mrb[0].mxu0
    %v406 = vadd.f32 %v217, %v405
    %v407 = vpop.f32.mrb[0].mxu0
    %v408 = vadd.f32 %v221, %v407
    %409 = vmatprep.mubr.f32.mxu0 %v63
    %410 = vmatmul.mubr.f32.gmra.mrb[0].mxu0 %v62
    %v411 = vpop.f32.mrb[0].mxu0
    %v412 = vadd.f32 %v217, %v411
    %v413 = vpop.f32.mrb[0].mxu0
    %v414 = vadd.f32 %v221, %v413
    %415 = vmatprep.mubr.f32.mxu0 %v65
    %416 = vmatmul.mubr.f32.gmra.mrb[0].mxu0 %v64
    %v417 = vpop.f32.mrb[0].mxu0
    %v418 = vadd.f32 %v217, %v417
    %v419 = vpop.f32.mrb[0].mxu0
    %v420 = vadd.f32 %v221, %v419
    %421 = vmatprep.mubr.f32.mxu0 %v67
    %422 = vmatmul.mubr.f32.gmra.mrb[0].mxu0 %v66
    %v423 = vpop.f32.mrb[0].mxu0
    %v424 = vadd.f32 %v217, %v423
    %v425 = vpop.f32.mrb[0].mxu0
    %v426 = vadd.f32 %v221, %v425
    %427 = vmatprep.mubr.f32.mxu0 %v69
    %428 = vmatmul.mubr.f32.gmra.mrb[0].mxu0 %v68
    %v429 = vpop.f32.mrb[0].mxu0
    %v430 = vadd.f32 %v217, %v429
    %v431 = vpop.f32.mrb[0].mxu0
    %v432 = vadd.f32 %v221, %v431
    %433 = vmatprep.mubr.f32.mxu0 %v71
    %434 = vmatmul.mubr.f32.gmra.mrb[0].mxu0 %v70
    %v435 = vpop.f32.mrb[0].mxu0
    %v436 = vadd.f32 %v217, %v435
    %v437 = vpop.f32.mrb[0].mxu0
    %v438 = vadd.f32 %v221, %v437
    %439 = vmatprep.mubr.f32.mxu0 %v73
    %440 = vmatmul.mubr.f32.gmra.mrb[0].mxu0 %v72
    %v441 = vpop.f32.mrb[0].mxu0
    %v442 = vadd.f32 %v217, %v441
    %v443 = vpop.f32.mrb[0].mxu0
    %v444 = vadd.f32 %v221, %v443
    %445 = vmatprep.mubr.f32.mxu0 %v75
    %446 = vmatmul.mubr.f32.gmra.mrb[0].mxu0 %v74
    %v447 = vpop.f32.mrb[0].mxu0
    %v448 = vadd.f32 %v217, %v447
    %v449 = vpop.f32.mrb[0].mxu0
    %v450 = vadd.f32 %v221, %v449
    %451 = vdwg.mxu0
    %452 = vst [vmem:[#allocation2] sm:$0xff] %v293
    %453 = vst [vmem:[#allocation2 + $0x8] sm:$0xff] %v295
    %454 = vst [vmem:[#allocation2 + $0x10] sm:$0xff] %v406
    %455 = vst [vmem:[#allocation2 + $0x18] sm:$0xff] %v408
    %456 = vst [vmem:[#allocation2 + $0x20] sm:$0xff] %v299
    %457 = vst [vmem:[#allocation2 + $0x28] sm:$0xff] %v301
    %458 = vst [vmem:[#allocation2 + $0x30] sm:$0xff] %v412
    %459 = vst [vmem:[#allocation2 + $0x38] sm:$0xff] %v414
    %460 = vst [vmem:[#allocation2 + $0x40] sm:$0xff] %v305
    %461 = vst [vmem:[#allocation2 + $0x48] sm:$0xff] %v307
    %462 = vst [vmem:[#allocation2 + $0x50] sm:$0xff] %v418
    %463 = vst [vmem:[#allocation2 + $0x58] sm:$0xff] %v420
    %464 = vst [vmem:[#allocation2 + $0x60] sm:$0xff] %v311
    %465 = vst [vmem:[#allocation2 + $0x68] sm:$0xff] %v313
    %466 = vst [vmem:[#allocation2 + $0x70] sm:$0xff] %v424
    %467 = vst [vmem:[#allocation2 + $0x78] sm:$0xff] %v426
    %468 = vst [vmem:[#allocation2 + $0x80] sm:$0xff] %v317
    %469 = vst [vmem:[#allocation2 + $0x88] sm:$0xff] %v319
    %470 = vst [vmem:[#allocation2 + $0x90] sm:$0xff] %v430
    %471 = vst [vmem:[#allocation2 + $0x98] sm:$0xff] %v432
    %472 = vst [vmem:[#allocation2 + $0xa0] sm:$0xff] %v323
    %473 = vst [vmem:[#allocation2 + $0xa8] sm:$0xff] %v325
    %474 = vst [vmem:[#allocation2 + $0xb0] sm:$0xff] %v436
    %475 = vst [vmem:[#allocation2 + $0xb8] sm:$0xff] %v438
    %476 = vst [vmem:[#allocation2 + $0xc0] sm:$0xff] %v329
    %477 = vst [vmem:[#allocation2 + $0xc8] sm:$0xff] %v331
    %478 = vst [vmem:[#allocation2 + $0xd0] sm:$0xff] %v442
    %479 = vst [vmem:[#allocation2 + $0xd8] sm:$0xff] %v444
    %480 = vst [vmem:[#allocation2 + $0xe0] sm:$0xff] %v335
    %481 = vst [vmem:[#allocation2 + $0xe8] sm:$0xff] %v337
    %482 = vst [vmem:[#allocation2 + $0xf0] sm:$0xff] %v448
    %483 = vst [vmem:[#allocation2 + $0xf8] sm:$0xff] %v450
    %v484 = vld [vmem:[%s4] sm:$0xff]
    %v485 = vld [vmem:[%s4 + $0x8] sm:$0xff]
    %v486 = vld [vmem:[%s4 + $0x10] sm:$0xff]
    %v487 = vld [vmem:[%s4 + $0x18] sm:$0xff]
    %v488 = vld [vmem:[%s4 + $0x20] sm:$0xff]
    %v489 = vld [vmem:[%s4 + $0x28] sm:$0xff]
    %v490 = vld [vmem:[%s4 + $0x30] sm:$0xff]
    %v491 = vld [vmem:[%s4 + $0x38] sm:$0xff]
    %v492 = vld [vmem:[%s4 + $0x40] sm:$0xff]
    %v493 = vld [vmem:[%s4 + $0x48] sm:$0xff]
    %v494 = vld [vmem:[%s4 + $0x50] sm:$0xff]
    %v495 = vld [vmem:[%s4 + $0x58] sm:$0xff]
    %v496 = vld [vmem:[%s4 + $0x60] sm:$0xff]
    %v497 = vld [vmem:[%s4 + $0x68] sm:$0xff]
    %v498 = vld [vmem:[%s4 + $0x70] sm:$0xff]
    %v499 = vld [vmem:[%s4 + $0x78] sm:$0xff]
    %v500 = vld [vmem:[%s4 + $0x80] sm:$0xff]
    %v501 = vld [vmem:[%s4 + $0x88] sm:$0xff]
    %v502 = vld [vmem:[%s4 + $0x90] sm:$0xff]
    %v503 = vld [vmem:[%s4 + $0x98] sm:$0xff]
    %v504 = vld [vmem:[%s4 + $0xa0] sm:$0xff]
    %v505 = vld [vmem:[%s4 + $0xa8] sm:$0xff]
    %v506 = vld [vmem:[%s4 + $0xb0] sm:$0xff]
    %v507 = vld [vmem:[%s4 + $0xb8] sm:$0xff]
    %v508 = vld [vmem:[%s4 + $0xc0] sm:$0xff]
    %v509 = vld [vmem:[%s4 + $0xc8] sm:$0xff]
    %v510 = vld [vmem:[%s4 + $0xd0] sm:$0xff]
    %v511 = vld [vmem:[%s4 + $0xd8] sm:$0xff]
    %v512 = vld [vmem:[%s4 + $0xe0] sm:$0xff]
    %v513 = vld [vmem:[%s4 + $0xe8] sm:$0xff]
    %v514 = vld [vmem:[%s4 + $0xf0] sm:$0xff]
    %v515 = vld [vmem:[%s4 + $0xf8] sm:$0xff]
    %v516 = vld [vmem:[%s4 + $0x100] sm:$0xff]
    %v517 = vld [vmem:[%s4 + $0x108] sm:$0xff]
    %v518 = vld [vmem:[%s4 + $0x110] sm:$0xff]
    %v519 = vld [vmem:[%s4 + $0x118] sm:$0xff]
    %v520 = vld [vmem:[%s4 + $0x120] sm:$0xff]
    %v521 = vld [vmem:[%s4 + $0x128] sm:$0xff]
    %v522 = vld [vmem:[%s4 + $0x130] sm:$0xff]
    %v523 = vld [vmem:[%s4 + $0x138] sm:$0xff]
    %v524 = vld [vmem:[%s4 + $0x140] sm:$0xff]
    %v525 = vld [vmem:[%s4 + $0x148] sm:$0xff]
    %v526 = vld [vmem:[%s4 + $0x150] sm:$0xff]
    %v527 = vld [vmem:[%s4 + $0x158] sm:$0xff]
    %v528 = vld [vmem:[%s4 + $0x160] sm:$0xff]
    %v529 = vld [vmem:[%s4 + $0x168] sm:$0xff]
    %v530 = vld [vmem:[%s4 + $0x170] sm:$0xff]
    %v531 = vld [vmem:[%s4 + $0x178] sm:$0xff]
    %v532 = vld [vmem:[%s4 + $0x180] sm:$0xff]
    %v533 = vld [vmem:[%s4 + $0x188] sm:$0xff]
    %v534 = vld [vmem:[%s4 + $0x190] sm:$0xff]
    %v535 = vld [vmem:[%s4 + $0x198] sm:$0xff]
    %v536 = vld [vmem:[%s4 + $0x1a0] sm:$0xff]
    %v537 = vld [vmem:[%s4 + $0x1a8] sm:$0xff]
    %v538 = vld [vmem:[%s4 + $0x1b0] sm:$0xff]
    %v539 = vld [vmem:[%s4 + $0x1b8] sm:$0xff]
    %v540 = vld [vmem:[%s4 + $0x1c0] sm:$0xff]
    %v541 = vld [vmem:[%s4 + $0x1c8] sm:$0xff]
    %v542 = vld [vmem:[%s4 + $0x1d0] sm:$0xff]
    %v543 = vld [vmem:[%s4 + $0x1d8] sm:$0xff]
    %v544 = vld [vmem:[%s4 + $0x1e0] sm:$0xff]
    %v545 = vld [vmem:[%s4 + $0x1e8] sm:$0xff]
    %v546 = vld [vmem:[%s4 + $0x1f0] sm:$0xff]
    %v547 = vld [vmem:[%s4 + $0x1f8] sm:$0xff]
    %v548 = vld [vmem:[%s4 + $0x200] sm:$0xff]
    %v549 = vld [vmem:[%s4 + $0x208] sm:$0xff]
    %v550 = vld [vmem:[%s4 + $0x210] sm:$0xff]
    %v551 = vld [vmem:[%s4 + $0x218] sm:$0xff]
    %v552 = vld [vmem:[%s4 + $0x220] sm:$0xff]
    %v553 = vld [vmem:[%s4 + $0x228] sm:$0xff]
    %v554 = vld [vmem:[%s4 + $0x230] sm:$0xff]
    %v555 = vld [vmem:[%s4 + $0x238] sm:$0xff]
    %v556 = vld [vmem:[%s4 + $0x240] sm:$0xff]
    %v557 = vld [vmem:[%s4 + $0x248] sm:$0xff]
    %v558 = vld [vmem:[%s4 + $0x250] sm:$0xff]
    %v559 = vld [vmem:[%s4 + $0x258] sm:$0xff]
    %v560 = vld [vmem:[%s4 + $0x260] sm:$0xff]
    %v561 = vld [vmem:[%s4 + $0x268] sm:$0xff]
    %v562 = vld [vmem:[%s4 + $0x270] sm:$0xff]
    %v563 = vld [vmem:[%s4 + $0x278] sm:$0xff]
    %v564 = vld [vmem:[%s4 + $0x280] sm:$0xff]
    %v565 = vld [vmem:[%s4 + $0x288] sm:$0xff]
    %v566 = vld [vmem:[%s4 + $0x290] sm:$0xff]
    %v567 = vld [vmem:[%s4 + $0x298] sm:$0xff]
    %v568 = vld [vmem:[%s4 + $0x2a0] sm:$0xff]
    %v569 = vld [vmem:[%s4 + $0x2a8] sm:$0xff]
    %v570 = vld [vmem:[%s4 + $0x2b0] sm:$0xff]
    %v571 = vld [vmem:[%s4 + $0x2b8] sm:$0xff]
    %v572 = vld [vmem:[%s4 + $0x2c0] sm:$0xff]
    %v573 = vld [vmem:[%s4 + $0x2c8] sm:$0xff]
    %v574 = vld [vmem:[%s4 + $0x2d0] sm:$0xff]
    %v575 = vld [vmem:[%s4 + $0x2d8] sm:$0xff]
    %v576 = vld [vmem:[%s4 + $0x2e0] sm:$0xff]
    %v577 = vld [vmem:[%s4 + $0x2e8] sm:$0xff]
    %v578 = vld [vmem:[%s4 + $0x2f0] sm:$0xff]
    %v579 = vld [vmem:[%s4 + $0x2f8] sm:$0xff]
    %v580 = vld [vmem:[%s4 + $0x300] sm:$0xff]
    %v581 = vld [vmem:[%s4 + $0x308] sm:$0xff]
    %v582 = vld [vmem:[%s4 + $0x310] sm:$0xff]
    %v583 = vld [vmem:[%s4 + $0x318] sm:$0xff]
    %v584 = vld [vmem:[%s4 + $0x320] sm:$0xff]
    %v585 = vld [vmem:[%s4 + $0x328] sm:$0xff]
    %v586 = vld [vmem:[%s4 + $0x330] sm:$0xff]
    %v587 = vld [vmem:[%s4 + $0x338] sm:$0xff]
    %v588 = vld [vmem:[%s4 + $0x340] sm:$0xff]
    %v589 = vld [vmem:[%s4 + $0x348] sm:$0xff]
    %v590 = vld [vmem:[%s4 + $0x350] sm:$0xff]
    %v591 = vld [vmem:[%s4 + $0x358] sm:$0xff]
    %v592 = vld [vmem:[%s4 + $0x360] sm:$0xff]
    %v593 = vld [vmem:[%s4 + $0x368] sm:$0xff]
    %v594 = vld [vmem:[%s4 + $0x370] sm:$0xff]
    %v595 = vld [vmem:[%s4 + $0x378] sm:$0xff]
    %v596 = vld [vmem:[%s4 + $0x380] sm:$0xff]
    %v597 = vld [vmem:[%s4 + $0x388] sm:$0xff]
    %v598 = vld [vmem:[%s4 + $0x390] sm:$0xff]
    %v599 = vld [vmem:[%s4 + $0x398] sm:$0xff]
    %v600 = vld [vmem:[%s4 + $0x3a0] sm:$0xff]
    %v601 = vld [vmem:[%s4 + $0x3a8] sm:$0xff]
    %v602 = vld [vmem:[%s4 + $0x3b0] sm:$0xff]
    %v603 = vld [vmem:[%s4 + $0x3b8] sm:$0xff]
    %v604 = vld [vmem:[%s4 + $0x3c0] sm:$0xff]
    %v605 = vld [vmem:[%s4 + $0x3c8] sm:$0xff]
    %v606 = vld [vmem:[%s4 + $0x3d0] sm:$0xff]
    %v607 = vld [vmem:[%s4 + $0x3d8] sm:$0xff]
    %v608 = vld [vmem:[%s4 + $0x3e0] sm:$0xff]
    %v609 = vld [vmem:[%s4 + $0x3e8] sm:$0xff]
    %v610 = vld [vmem:[%s4 + $0x3f0] sm:$0xff]
    %v611 = vld [vmem:[%s4 + $0x3f8] sm:$0xff]
    %v612 = vld [vmem:[%s6] sm:$0xf]
    %v614 = vlaneseq
    %v615 = vshrl.u32 %v614, 7
    %v616 = vsub.s32 0, %v615
    %v617 = vrot.slane %v612, %v616
    %v618 = vlaneseq
    %v619 = vshrl.u32 %v618, 7
    %v620 = vsub.s32 1, %v619
    %v621 = vrot.slane %v612, %v620
    %v622 = vlaneseq
    %v623 = vshrl.u32 %v622, 7
    %v624 = vsub.s32 2, %v623
    %v625 = vrot.slane %v612, %v624
    %v626 = vlaneseq
    %v627 = vshrl.u32 %v626, 7
    %v628 = vsub.s32 3, %v627
    %v629 = vrot.slane %v612, %v628
    %634 = vmatprep.subr.mxu0 %v485
    %635 = vmatpush1.msra.mxu0 %v484
    %636 = vmatprep.subr.mxu0 %v489
    %637 = vmatpush1.msra.mxu0 %v488
    %638 = vmatprep.subr.mxu0 %v493
    %639 = vmatpush1.msra.mxu0 %v492
    %640 = vmatprep.subr.mxu0 %v497
    %641 = vmatpush1.msra.mxu0 %v496
    %642 = vmatprep.subr.mxu0 %v501
    %643 = vmatpush1.msra.mxu0 %v500
    %644 = vmatprep.subr.mxu0 %v505
    %645 = vmatpush1.msra.mxu0 %v504
    %646 = vmatprep.subr.mxu0 %v509
    %647 = vmatpush1.msra.mxu0 %v508
    %648 = vmatprep.subr.mxu0 %v513
    %649 = vmatpush1.msra.mxu0 %v512
    %650 = vmatprep.subr.mxu0 %v517
    %651 = vmatpush1.msra.mxu0 %v516
    %652 = vmatprep.subr.mxu0 %v521
    %653 = vmatpush1.msra.mxu0 %v520
    %654 = vmatprep.subr.mxu0 %v525
    %655 = vmatpush1.msra.mxu0 %v524
    %656 = vmatprep.subr.mxu0 %v529
    %657 = vmatpush1.msra.mxu0 %v528
    %658 = vmatprep.subr.mxu0 %v533
    %659 = vmatpush1.msra.mxu0 %v532
    %660 = vmatprep.subr.mxu0 %v537
    %661 = vmatpush1.msra.mxu0 %v536
    %662 = vmatprep.subr.mxu0 %v541
    %663 = vmatpush1.msra.mxu0 %v540
    %664 = vmatprep.subr.mxu0 %v545
    %665 = vmatpush1.msra.mxu0 %v544
    %666 = vmatprep.subr.mxu0 %v549
    %667 = vmatpush1.msra.mxu0 %v548
    %668 = vmatprep.subr.mxu0 %v553
    %669 = vmatpush1.msra.mxu0 %v552
    %670 = vmatprep.subr.mxu0 %v557
    %671 = vmatpush1.msra.mxu0 %v556
    %672 = vmatprep.subr.mxu0 %v561
    %673 = vmatpush1.msra.mxu0 %v560
    %674 = vmatprep.subr.mxu0 %v565
    %675 = vmatpush1.msra.mxu0 %v564
    %676 = vmatprep.subr.mxu0 %v569
    %677 = vmatpush1.msra.mxu0 %v568
    %678 = vmatprep.subr.mxu0 %v573
    %679 = vmatpush1.msra.mxu0 %v572
    %680 = vmatprep.subr.mxu0 %v577
    %681 = vmatpush1.msra.mxu0 %v576
    %682 = vmatprep.subr.mxu0 %v581
    %683 = vmatpush1.msra.mxu0 %v580
    %684 = vmatprep.subr.mxu0 %v585
    %685 = vmatpush1.msra.mxu0 %v584
    %686 = vmatprep.subr.mxu0 %v589
    %687 = vmatpush1.msra.mxu0 %v588
    %688 = vmatprep.subr.mxu0 %v593
    %689 = vmatpush1.msra.mxu0 %v592
    %690 = vmatprep.subr.mxu0 %v597
    %691 = vmatpush1.msra.mxu0 %v596
    %692 = vmatprep.subr.mxu0 %v601
    %693 = vmatpush1.msra.mxu0 %v600
    %694 = vmatprep.subr.mxu0 %v605
    %695 = vmatpush1.msra.mxu0 %v604
    %696 = vmatprep.subr.mxu0 %v609
    %697 = vmatpush1.msra.mxu0 %v608
    %698 = vmatprep.mubr.f32.mxu0 %v61
    %699 = vmatmul.mubr.f32.gmra.mrb[0].mxu0 %v60
    %v700 = vpop.f32.mrb[0].mxu0
    %v701 = vadd.f32 %v617, %v700
    %v702 = vpop.f32.mrb[0].mxu0
    %v703 = vadd.f32 %v621, %v702
    %704 = vmatprep.mubr.f32.mxu0 %v63
    %705 = vmatmul.mubr.f32.gmra.mrb[0].mxu0 %v62
    %v706 = vpop.f32.mrb[0].mxu0
    %v707 = vadd.f32 %v617, %v706
    %v708 = vpop.f32.mrb[0].mxu0
    %v709 = vadd.f32 %v621, %v708
    %710 = vmatprep.mubr.f32.mxu0 %v65
    %711 = vmatmul.mubr.f32.gmra.mrb[0].mxu0 %v64
    %v712 = vpop.f32.mrb[0].mxu0
    %v713 = vadd.f32 %v617, %v712
    %v714 = vpop.f32.mrb[0].mxu0
    %v715 = vadd.f32 %v621, %v714
    %716 = vmatprep.mubr.f32.mxu0 %v67
    %717 = vmatmul.mubr.f32.gmra.mrb[0].mxu0 %v66
    %v718 = vpop.f32.mrb[0].mxu0
    %v719 = vadd.f32 %v617, %v718
    %v720 = vpop.f32.mrb[0].mxu0
    %v721 = vadd.f32 %v621, %v720
    %722 = vmatprep.mubr.f32.mxu0 %v69
    %723 = vmatmul.mubr.f32.gmra.mrb[0].mxu0 %v68
    %v724 = vpop.f32.mrb[0].mxu0
    %v725 = vadd.f32 %v617, %v724
    %v726 = vpop.f32.mrb[0].mxu0
    %v727 = vadd.f32 %v621, %v726
    %728 = vmatprep.mubr.f32.mxu0 %v71
    %729 = vmatmul.mubr.f32.gmra.mrb[0].mxu0 %v70
    %v730 = vpop.f32.mrb[0].mxu0
    %v731 = vadd.f32 %v617, %v730
    %v732 = vpop.f32.mrb[0].mxu0
    %v733 = vadd.f32 %v621, %v732
    %734 = vmatprep.mubr.f32.mxu0 %v73
    %735 = vmatmul.mubr.f32.gmra.mrb[0].mxu0 %v72
    %v736 = vpop.f32.mrb[0].mxu0
    %v737 = vadd.f32 %v617, %v736
    %v738 = vpop.f32.mrb[0].mxu0
    %v739 = vadd.f32 %v621, %v738
    %740 = vmatprep.mubr.f32.mxu0 %v75
    %741 = vmatmul.mubr.f32.gmra.mrb[0].mxu0 %v74
    %v742 = vpop.f32.mrb[0].mxu0
    %v743 = vadd.f32 %v617, %v742
    %v744 = vpop.f32.mrb[0].mxu0
    %v745 = vadd.f32 %v621, %v744
    %746 = vdwg.mxu0
    %747 = vmatprep.subr.mxu0 %v487
    %748 = vmatpush1.msra.mxu0 %v486
    %749 = vmatprep.subr.mxu0 %v491
    %750 = vmatpush1.msra.mxu0 %v490
    %751 = vmatprep.subr.mxu0 %v495
    %752 = vmatpush1.msra.mxu0 %v494
    %753 = vmatprep.subr.mxu0 %v499
    %754 = vmatpush1.msra.mxu0 %v498
    %755 = vmatprep.subr.mxu0 %v503
    %756 = vmatpush1.msra.mxu0 %v502
    %757 = vmatprep.subr.mxu0 %v507
    %758 = vmatpush1.msra.mxu0 %v506
    %759 = vmatprep.subr.mxu0 %v511
    %760 = vmatpush1.msra.mxu0 %v510
    %761 = vmatprep.subr.mxu0 %v515
    %762 = vmatpush1.msra.mxu0 %v514
    %763 = vmatprep.subr.mxu0 %v519
    %764 = vmatpush1.msra.mxu0 %v518
    %765 = vmatprep.subr.mxu0 %v523
    %766 = vmatpush1.msra.mxu0 %v522
    %767 = vmatprep.subr.mxu0 %v527
    %768 = vmatpush1.msra.mxu0 %v526
    %769 = vmatprep.subr.mxu0 %v531
    %770 = vmatpush1.msra.mxu0 %v530
    %771 = vmatprep.subr.mxu0 %v535
    %772 = vmatpush1.msra.mxu0 %v534
    %773 = vmatprep.subr.mxu0 %v539
    %774 = vmatpush1.msra.mxu0 %v538
    %775 = vmatprep.subr.mxu0 %v543
    %776 = vmatpush1.msra.mxu0 %v542
    %777 = vmatprep.subr.mxu0 %v547
    %778 = vmatpush1.msra.mxu0 %v546
    %779 = vmatprep.subr.mxu0 %v551
    %780 = vmatpush1.msra.mxu0 %v550
    %781 = vmatprep.subr.mxu0 %v555
    %782 = vmatpush1.msra.mxu0 %v554
    %783 = vmatprep.subr.mxu0 %v559
    %784 = vmatpush1.msra.mxu0 %v558
    %785 = vmatprep.subr.mxu0 %v563
    %786 = vmatpush1.msra.mxu0 %v562
    %787 = vmatprep.subr.mxu0 %v567
    %788 = vmatpush1.msra.mxu0 %v566
    %789 = vmatprep.subr.mxu0 %v571
    %790 = vmatpush1.msra.mxu0 %v570
    %791 = vmatprep.subr.mxu0 %v575
    %792 = vmatpush1.msra.mxu0 %v574
    %793 = vmatprep.subr.mxu0 %v579
    %794 = vmatpush1.msra.mxu0 %v578
    %795 = vmatprep.subr.mxu0 %v583
    %796 = vmatpush1.msra.mxu0 %v582
    %797 = vmatprep.subr.mxu0 %v587
    %798 = vmatpush1.msra.mxu0 %v586
    %799 = vmatprep.subr.mxu0 %v591
    %800 = vmatpush1.msra.mxu0 %v590
    %801 = vmatprep.subr.mxu0 %v595
    %802 = vmatpush1.msra.mxu0 %v594
    %803 = vmatprep.subr.mxu0 %v599
    %804 = vmatpush1.msra.mxu0 %v598
    %805 = vmatprep.subr.mxu0 %v603
    %806 = vmatpush1.msra.mxu0 %v602
    %807 = vmatprep.subr.mxu0 %v607
    %808 = vmatpush1.msra.mxu0 %v606
    %809 = vmatprep.subr.mxu0 %v611
    %810 = vmatpush1.msra.mxu0 %v610
    %811 = vmatprep.mubr.f32.mxu0 %v61
    %812 = vmatmul.mubr.f32.gmra.mrb[0].mxu0 %v60
    %v813 = vpop.f32.mrb[0].mxu0
    %v814 = vadd.f32 %v625, %v813
    %v815 = vpop.f32.mrb[0].mxu0
    %v816 = vadd.f32 %v629, %v815
    %817 = vmatprep.mubr.f32.mxu0 %v63
    %818 = vmatmul.mubr.f32.gmra.mrb[0].mxu0 %v62
    %v819 = vpop.f32.mrb[0].mxu0
    %v820 = vadd.f32 %v625, %v819
    %v821 = vpop.f32.mrb[0].mxu0
    %v822 = vadd.f32 %v629, %v821
    %823 = vmatprep.mubr.f32.mxu0 %v65
    %824 = vmatmul.mubr.f32.gmra.mrb[0].mxu0 %v64
    %v825 = vpop.f32.mrb[0].mxu0
    %v826 = vadd.f32 %v625, %v825
    %v827 = vpop.f32.mrb[0].mxu0
    %v828 = vadd.f32 %v629, %v827
    %829 = vmatprep.mubr.f32.mxu0 %v67
    %830 = vmatmul.mubr.f32.gmra.mrb[0].mxu0 %v66
    %v831 = vpop.f32.mrb[0].mxu0
    %v832 = vadd.f32 %v625, %v831
    %v833 = vpop.f32.mrb[0].mxu0
    %v834 = vadd.f32 %v629, %v833
    %835 = vmatprep.mubr.f32.mxu0 %v69
    %836 = vmatmul.mubr.f32.gmra.mrb[0].mxu0 %v68
    %v837 = vpop.f32.mrb[0].mxu0
    %v838 = vadd.f32 %v625, %v837
    %v839 = vpop.f32.mrb[0].mxu0
    %v840 = vadd.f32 %v629, %v839
    %841 = vmatprep.mubr.f32.mxu0 %v71
    %842 = vmatmul.mubr.f32.gmra.mrb[0].mxu0 %v70
    %v843 = vpop.f32.mrb[0].mxu0
    %v844 = vadd.f32 %v625, %v843
    %v845 = vpop.f32.mrb[0].mxu0
    %v846 = vadd.f32 %v629, %v845
    %847 = vmatprep.mubr.f32.mxu0 %v73
    %848 = vmatmul.mubr.f32.gmra.mrb[0].mxu0 %v72
    %v849 = vpop.f32.mrb[0].mxu0
    %v850 = vadd.f32 %v625, %v849
    %v851 = vpop.f32.mrb[0].mxu0
    %v852 = vadd.f32 %v629, %v851
    %853 = vmatprep.mubr.f32.mxu0 %v75
    %854 = vmatmul.mubr.f32.gmra.mrb[0].mxu0 %v74
    %v855 = vpop.f32.mrb[0].mxu0
    %v856 = vadd.f32 %v625, %v855
    %v857 = vpop.f32.mrb[0].mxu0
    %v858 = vadd.f32 %v629, %v857
    %859 = vdwg.mxu0
    %860 = vst [vmem:[#allocation3] sm:$0xff] %v701
    %861 = vst [vmem:[#allocation3 + $0x8] sm:$0xff] %v703
    %862 = vst [vmem:[#allocation3 + $0x10] sm:$0xff] %v814
    %863 = vst [vmem:[#allocation3 + $0x18] sm:$0xff] %v816
    %864 = vst [vmem:[#allocation3 + $0x20] sm:$0xff] %v707
    %865 = vst [vmem:[#allocation3 + $0x28] sm:$0xff] %v709
    %866 = vst [vmem:[#allocation3 + $0x30] sm:$0xff] %v820
    %867 = vst [vmem:[#allocation3 + $0x38] sm:$0xff] %v822
    %868 = vst [vmem:[#allocation3 + $0x40] sm:$0xff] %v713
    %869 = vst [vmem:[#allocation3 + $0x48] sm:$0xff] %v715
    %870 = vst [vmem:[#allocation3 + $0x50] sm:$0xff] %v826
    %871 = vst [vmem:[#allocation3 + $0x58] sm:$0xff] %v828
    %872 = vst [vmem:[#allocation3 + $0x60] sm:$0xff] %v719
    %873 = vst [vmem:[#allocation3 + $0x68] sm:$0xff] %v721
    %874 = vst [vmem:[#allocation3 + $0x70] sm:$0xff] %v832
    %875 = vst [vmem:[#allocation3 + $0x78] sm:$0xff] %v834
    %876 = vst [vmem:[#allocation3 + $0x80] sm:$0xff] %v725
    %877 = vst [vmem:[#allocation3 + $0x88] sm:$0xff] %v727
    %878 = vst [vmem:[#allocation3 + $0x90] sm:$0xff] %v838
    %879 = vst [vmem:[#allocation3 + $0x98] sm:$0xff] %v840
    %880 = vst [vmem:[#allocation3 + $0xa0] sm:$0xff] %v731
    %881 = vst [vmem:[#allocation3 + $0xa8] sm:$0xff] %v733
    %882 = vst [vmem:[#allocation3 + $0xb0] sm:$0xff] %v844
    %883 = vst [vmem:[#allocation3 + $0xb8] sm:$0xff] %v846
    %884 = vst [vmem:[#allocation3 + $0xc0] sm:$0xff] %v737
    %885 = vst [vmem:[#allocation3 + $0xc8] sm:$0xff] %v739
    %886 = vst [vmem:[#allocation3 + $0xd0] sm:$0xff] %v850
    %887 = vst [vmem:[#allocation3 + $0xd8] sm:$0xff] %v852
    %888 = vst [vmem:[#allocation3 + $0xe0] sm:$0xff] %v743
    %889 = vst [vmem:[#allocation3 + $0xe8] sm:$0xff] %v745
    %890 = vst [vmem:[#allocation3 + $0xf0] sm:$0xff] %v856
    %891 = vst [vmem:[#allocation3 + $0xf8] sm:$0xff] %v858
    %892 = vst [vmem:[#allocation4] sm:$0xff] 0.0
    %893 = vst [vmem:[#allocation5] sm:$0xff] 0.0
    %894 = vst [vmem:[#allocation6] sm:$0xff] 0.0
    %895 = vst [vmem:[#allocation7] sm:$0xff] 0.0
    %896 = vst [vmem:[#allocation8] sm:$0xff] 0.0
    %v897 = vld [vmem:[#allocation9] sm:$0xff]
    %v898 = vld [vmem:[#allocation9 + $0x8] sm:$0xff]
    %v899 = vld [vmem:[#allocation9 + $0x10] sm:$0xff]
    %v900 = vld [vmem:[#allocation9 + $0x18] sm:$0xff]
    %v901 = vld [vmem:[#allocation9 + $0x20] sm:$0xff]
    %v902 = vld [vmem:[#allocation9 + $0x28] sm:$0xff]
    %v903 = vld [vmem:[#allocation9 + $0x30] sm:$0xff]
    %v904 = vld [vmem:[#allocation9 + $0x38] sm:$0xff]
    %v905 = vld [vmem:[#allocation9 + $0x40] sm:$0xff]
    %v906 = vld [vmem:[#allocation9 + $0x48] sm:$0xff]
    %v907 = vld [vmem:[#allocation9 + $0x50] sm:$0xff]
    %v908 = vld [vmem:[#allocation9 + $0x58] sm:$0xff]
    %v909 = vld [vmem:[#allocation9 + $0x60] sm:$0xff]
    %v910 = vld [vmem:[#allocation9 + $0x68] sm:$0xff]
    %v911 = vld [vmem:[#allocation9 + $0x70] sm:$0xff]
    %v912 = vld [vmem:[#allocation9 + $0x78] sm:$0xff]
    %v913 = vld [vmem:[#allocation9 + $0x80] sm:$0xff]
    %v914 = vld [vmem:[#allocation9 + $0x88] sm:$0xff]
    %v915 = vld [vmem:[#allocation9 + $0x90] sm:$0xff]
    %v916 = vld [vmem:[#allocation9 + $0x98] sm:$0xff]
    %v917 = vld [vmem:[#allocation9 + $0xa0] sm:$0xff]
    %v918 = vld [vmem:[#allocation9 + $0xa8] sm:$0xff]
    %v919 = vld [vmem:[#allocation9 + $0xb0] sm:$0xff]
    %v920 = vld [vmem:[#allocation9 + $0xb8] sm:$0xff]
    %v921 = vld [vmem:[#allocation9 + $0xc0] sm:$0xff]
    %v922 = vld [vmem:[#allocation9 + $0xc8] sm:$0xff]
    %v923 = vld [vmem:[#allocation9 + $0xd0] sm:$0xff]
    %v924 = vld [vmem:[#allocation9 + $0xd8] sm:$0xff]
    %v925 = vld [vmem:[#allocation9 + $0xe0] sm:$0xff]
    %v926 = vld [vmem:[#allocation9 + $0xe8] sm:$0xff]
    %v927 = vld [vmem:[#allocation9 + $0xf0] sm:$0xff]
    %v928 = vld [vmem:[#allocation9 + $0xf8] sm:$0xff]
    %v929 = vld [vmem:[#allocation9 + $0x100] sm:$0xff]
    %v930 = vld [vmem:[#allocation9 + $0x108] sm:$0xff]
    %v931 = vld [vmem:[#allocation9 + $0x110] sm:$0xff]
    %v932 = vld [vmem:[#allocation9 + $0x118] sm:$0xff]
    %v933 = vld [vmem:[#allocation9 + $0x120] sm:$0xff]
    %v934 = vld [vmem:[#allocation9 + $0x128] sm:$0xff]
    %v935 = vld [vmem:[#allocation9 + $0x130] sm:$0xff]
    %v936 = vld [vmem:[#allocation9 + $0x138] sm:$0xff]
    %v937 = vld [vmem:[#allocation9 + $0x140] sm:$0xff]
    %v938 = vld [vmem:[#allocation9 + $0x148] sm:$0xff]
    %v939 = vld [vmem:[#allocation9 + $0x150] sm:$0xff]
    %v940 = vld [vmem:[#allocation9 + $0x158] sm:$0xff]
    %v941 = vld [vmem:[#allocation9 + $0x160] sm:$0xff]
    %v942 = vld [vmem:[#allocation9 + $0x168] sm:$0xff]
    %v943 = vld [vmem:[#allocation9 + $0x170] sm:$0xff]
    %v944 = vld [vmem:[#allocation9 + $0x178] sm:$0xff]
    %v945 = vld [vmem:[#allocation9 + $0x180] sm:$0xff]
    %v946 = vld [vmem:[#allocation9 + $0x188] sm:$0xff]
    %v947 = vld [vmem:[#allocation9 + $0x190] sm:$0xff]
    %v948 = vld [vmem:[#allocation9 + $0x198] sm:$0xff]
    %v949 = vld [vmem:[#allocation9 + $0x1a0] sm:$0xff]
    %v950 = vld [vmem:[#allocation9 + $0x1a8] sm:$0xff]
    %v951 = vld [vmem:[#allocation9 + $0x1b0] sm:$0xff]
    %v952 = vld [vmem:[#allocation9 + $0x1b8] sm:$0xff]
    %v953 = vld [vmem:[#allocation9 + $0x1c0] sm:$0xff]
    %v954 = vld [vmem:[#allocation9 + $0x1c8] sm:$0xff]
    %v955 = vld [vmem:[#allocation9 + $0x1d0] sm:$0xff]
    %v956 = vld [vmem:[#allocation9 + $0x1d8] sm:$0xff]
    %v957 = vld [vmem:[#allocation9 + $0x1e0] sm:$0xff]
    %v958 = vld [vmem:[#allocation9 + $0x1e8] sm:$0xff]
    %v959 = vld [vmem:[#allocation9 + $0x1f0] sm:$0xff]
    %v960 = vld [vmem:[#allocation9 + $0x1f8] sm:$0xff]
    %v961 = vld [vmem:[#allocation11] sm:$0xff]
    %v962 = vld [vmem:[#allocation11 + $0x8] sm:$0xff]
    %v963 = vld [vmem:[#allocation11 + $0x10] sm:$0xff]
    %v964 = vld [vmem:[#allocation11 + $0x18] sm:$0xff]
    %v965 = vld [vmem:[#allocation11 + $0x20] sm:$0xff]
    %v966 = vld [vmem:[#allocation11 + $0x28] sm:$0xff]
    %v967 = vld [vmem:[#allocation11 + $0x30] sm:$0xff]
    %v968 = vld [vmem:[#allocation11 + $0x38] sm:$0xff]
    %v969 = vld [vmem:[#allocation11 + $0x40] sm:$0xff]
    %v970 = vld [vmem:[#allocation11 + $0x48] sm:$0xff]
    %v971 = vld [vmem:[#allocation11 + $0x50] sm:$0xff]
    %v972 = vld [vmem:[#allocation11 + $0x58] sm:$0xff]
    %v973 = vld [vmem:[#allocation11 + $0x60] sm:$0xff]
    %v974 = vld [vmem:[#allocation11 + $0x68] sm:$0xff]
    %v975 = vld [vmem:[#allocation11 + $0x70] sm:$0xff]
    %v976 = vld [vmem:[#allocation11 + $0x78] sm:$0xff]
    %v977 = vld [vmem:[#allocation11 + $0x80] sm:$0xff]
    %v978 = vld [vmem:[#allocation11 + $0x88] sm:$0xff]
    %v979 = vld [vmem:[#allocation11 + $0x90] sm:$0xff]
    %v980 = vld [vmem:[#allocation11 + $0x98] sm:$0xff]
    %v981 = vld [vmem:[#allocation11 + $0xa0] sm:$0xff]
    %v982 = vld [vmem:[#allocation11 + $0xa8] sm:$0xff]
    %v983 = vld [vmem:[#allocation11 + $0xb0] sm:$0xff]
    %v984 = vld [vmem:[#allocation11 + $0xb8] sm:$0xff]
    %v985 = vld [vmem:[#allocation11 + $0xc0] sm:$0xff]
    %v986 = vld [vmem:[#allocation11 + $0xc8] sm:$0xff]
    %v987 = vld [vmem:[#allocation11 + $0xd0] sm:$0xff]
    %v988 = vld [vmem:[#allocation11 + $0xd8] sm:$0xff]
    %v989 = vld [vmem:[#allocation11 + $0xe0] sm:$0xff]
    %v990 = vld [vmem:[#allocation11 + $0xe8] sm:$0xff]
    %v991 = vld [vmem:[#allocation11 + $0xf0] sm:$0xff]
    %v992 = vld [vmem:[#allocation11 + $0xf8] sm:$0xff]
    %v993 = vld [vmem:[#allocation11 + $0x100] sm:$0xff]
    %v994 = vld [vmem:[#allocation11 + $0x108] sm:$0xff]
    %v995 = vld [vmem:[#allocation11 + $0x110] sm:$0xff]
    %v996 = vld [vmem:[#allocation11 + $0x118] sm:$0xff]
    %v997 = vld [vmem:[#allocation11 + $0x120] sm:$0xff]
    %v998 = vld [vmem:[#allocation11 + $0x128] sm:$0xff]
    %v999 = vld [vmem:[#allocation11 + $0x130] sm:$0xff]
    %v1000 = vld [vmem:[#allocation11 + $0x138] sm:$0xff]
    %v1001 = vld [vmem:[#allocation11 + $0x140] sm:$0xff]
    %v1002 = vld [vmem:[#allocation11 + $0x148] sm:$0xff]
    %v1003 = vld [vmem:[#allocation11 + $0x150] sm:$0xff]
    %v1004 = vld [vmem:[#allocation11 + $0x158] sm:$0xff]
    %v1005 = vld [vmem:[#allocation11 + $0x160] sm:$0xff]
    %v1006 = vld [vmem:[#allocation11 + $0x168] sm:$0xff]
    %v1007 = vld [vmem:[#allocation11 + $0x170] sm:$0xff]
    %v1008 = vld [vmem:[#allocation11 + $0x178] sm:$0xff]
    %v1009 = vld [vmem:[#allocation11 + $0x180] sm:$0xff]
    %v1010 = vld [vmem:[#allocation11 + $0x188] sm:$0xff]
    %v1011 = vld [vmem:[#allocation11 + $0x190] sm:$0xff]
    %v1012 = vld [vmem:[#allocation11 + $0x198] sm:$0xff]
    %v1013 = vld [vmem:[#allocation11 + $0x1a0] sm:$0xff]
    %v1014 = vld [vmem:[#allocation11 + $0x1a8] sm:$0xff]
    %v1015 = vld [vmem:[#allocation11 + $0x1b0] sm:$0xff]
    %v1016 = vld [vmem:[#allocation11 + $0x1b8] sm:$0xff]
    %v1017 = vld [vmem:[#allocation11 + $0x1c0] sm:$0xff]
    %v1018 = vld [vmem:[#allocation11 + $0x1c8] sm:$0xff]
    %v1019 = vld [vmem:[#allocation11 + $0x1d0] sm:$0xff]
    %v1020 = vld [vmem:[#allocation11 + $0x1d8] sm:$0xff]
    %v1021 = vld [vmem:[#allocation11 + $0x1e0] sm:$0xff]
    %v1022 = vld [vmem:[#allocation11 + $0x1e8] sm:$0xff]
    %v1023 = vld [vmem:[#allocation11 + $0x1f0] sm:$0xff]
    %v1024 = vld [vmem:[#allocation11 + $0x1f8] sm:$0xff]
    loop: start=0, step=1, limit=8
    $region46: #{bilstm_forward.3} parent=1 // loop_pre_header
      _
    $region47: #{bilstm_forward.3} parent=1 // loop_header
      %s1026 = sphi 0, %s1030
      %p1027 = scmp.ge.s32.totalorder %s1026, 8
    $region48: #{bilstm_forward.3} parent=1 // loop_header_branch
      %1029 = sbr.rel (%p1027) target = $region52
    $region49: #{bilstm_forward.3} parent=1 // loop_body
      %s1031 = ssub.s32 7, %s1026
      %s1032 = smul.u32 %s1026, 8
      %s1033 = smul.u32 %s1031, 8
      %s1034 = sshra.s32 %s1032, 3
      %s1035 = sand.u32 %s1032, 7
      %s1036 = smul.u32 %s1034, 4
      %s1037 = smul.addr %s1036, 8
      %s1038 = scalar_lea.vmem [#allocation2], %s1037
      %v1039 = vld [vmem:[%s1038] sm:$0xff]
      %v1040 = vld [vmem:[%s1038 + $0x8] sm:$0xff]
      %v1041 = vld [vmem:[%s1038 + $0x10] sm:$0xff]
      %v1042 = vld [vmem:[%s1038 + $0x18] sm:$0xff]
      %v1043 = vld [vmem:[#allocation4] sm:$0xff]
      %1044 = vmatprep.subr.mxu0 %v898
      %1045 = vmatpush1.msra.mxu0 %v897
      %1046 = vmatprep.subr.mxu0 %v902
      %1047 = vmatpush1.msra.mxu0 %v901
      %1048 = vmatprep.subr.mxu0 %v906
      %1049 = vmatpush1.msra.mxu0 %v905
      %1050 = vmatprep.subr.mxu0 %v910
      %1051 = vmatpush1.msra.mxu0 %v909
      %1052 = vmatprep.subr.mxu0 %v914
      %1053 = vmatpush1.msra.mxu0 %v913
      %1054 = vmatprep.subr.mxu0 %v918
      %1055 = vmatpush1.msra.mxu0 %v917
      %1056 = vmatprep.subr.mxu0 %v922
      %1057 = vmatpush1.msra.mxu0 %v921
      %1058 = vmatprep.subr.mxu0 %v926
      %1059 = vmatpush1.msra.mxu0 %v925
      %1060 = vmatprep.subr.mxu0 %v930
      %1061 = vmatpush1.msra.mxu0 %v929
      %1062 = vmatprep.subr.mxu0 %v934
      %1063 = vmatpush1.msra.mxu0 %v933
      %1064 = vmatprep.subr.mxu0 %v938
      %1065 = vmatpush1.msra.mxu0 %v937
      %1066 = vmatprep.subr.mxu0 %v942
      %1067 = vmatpush1.msra.mxu0 %v941
      %1068 = vmatprep.subr.mxu0 %v946
      %1069 = vmatpush1.msra.mxu0 %v945
      %1070 = vmatprep.subr.mxu0 %v950
      %1071 = vmatpush1.msra.mxu0 %v949
      %1072 = vmatprep.subr.mxu0 %v954
      %1073 = vmatpush1.msra.mxu0 %v953
      %1074 = vmatprep.subr.mxu0 %v958
      %1075 = vmatpush1.msra.mxu0 %v957
      %1076 = vmatprep.subr.mxu0 0.0
      %1077 = vmatpush1.msra.mxu0 0.0
      %1078 = vmatprep.subr.mxu0 0.0
      %1079 = vmatpush1.msra.mxu0 0.0
      %1080 = vmatprep.subr.mxu0 0.0
      %1081 = vmatpush1.msra.mxu0 0.0
      %1082 = vmatprep.subr.mxu0 0.0
      %1083 = vmatpush1.msra.mxu0 0.0
      %1084 = vmatprep.subr.mxu0 0.0
      %1085 = vmatpush1.msra.mxu0 0.0
      %1086 = vmatprep.subr.mxu0 0.0
      %1087 = vmatpush1.msra.mxu0 0.0
      %1088 = vmatprep.subr.mxu0 0.0
      %1089 = vmatpush1.msra.mxu0 0.0
      %1090 = vmatprep.subr.mxu0 0.0
      %1091 = vmatpush1.msra.mxu0 0.0
      %1092 = vmatprep.subr.mxu0 0.0
      %1093 = vmatpush1.msra.mxu0 0.0
      %1094 = vmatprep.subr.mxu0 0.0
      %1095 = vmatpush1.msra.mxu0 0.0
      %1096 = vmatprep.subr.mxu0 0.0
      %1097 = vmatpush1.msra.mxu0 0.0
      %1098 = vmatprep.subr.mxu0 0.0
      %1099 = vmatpush1.msra.mxu0 0.0
      %1100 = vmatprep.subr.mxu0 0.0
      %1101 = vmatpush1.msra.mxu0 0.0
      %1102 = vmatprep.subr.mxu0 0.0
      %1103 = vmatpush1.msra.mxu0 0.0
      %1104 = vmatprep.subr.mxu0 0.0
      %1105 = vmatpush1.msra.mxu0 0.0
      %1106 = vmatprep.subr.mxu0 0.0
      %1107 = vmatpush1.msra.mxu0 0.0
      %1108 = vmatprep.mubr.f32.mxu0 0.0
      %1109 = vmatmul.mubr.f32.gmra.mrb[0].mxu0 %v1043
      %v1110 = vpop.f32.mrb[0].mxu0
      %v1111 = vadd.f32 0.0, %v1110
      %v1112 = vpop.f32.mrb[0].mxu0
      %v1113 = vadd.f32 0.0, %v1112
      %1114 = vdwg.mxu0
      %1115 = vmatprep.subr.mxu0 %v900
      %1116 = vmatpush1.msra.mxu0 %v899
      %1117 = vmatprep.subr.mxu0 %v904
      %1118 = vmatpush1.msra.mxu0 %v903
      %1119 = vmatprep.subr.mxu0 %v908
      %1120 = vmatpush1.msra.mxu0 %v907
      %1121 = vmatprep.subr.mxu0 %v912
      %1122 = vmatpush1.msra.mxu0 %v911
      %1123 = vmatprep.subr.mxu0 %v916
      %1124 = vmatpush1.msra.mxu0 %v915
      %1125 = vmatprep.subr.mxu0 %v920
      %1126 = vmatpush1.msra.mxu0 %v919
      %1127 = vmatprep.subr.mxu0 %v924
      %1128 = vmatpush1.msra.mxu0 %v923
      %1129 = vmatprep.subr.mxu0 %v928
      %1130 = vmatpush1.msra.mxu0 %v927
      %1131 = vmatprep.subr.mxu0 %v932
      %1132 = vmatpush1.msra.mxu0 %v931
      %1133 = vmatprep.subr.mxu0 %v936
      %1134 = vmatpush1.msra.mxu0 %v935
      %1135 = vmatprep.subr.mxu0 %v940
      %1136 = vmatpush1.msra.mxu0 %v939
      %1137 = vmatprep.subr.mxu0 %v944
      %1138 = vmatpush1.msra.mxu0 %v943
      %1139 = vmatprep.subr.mxu0 %v948
      %1140 = vmatpush1.msra.mxu0 %v947
      %1141 = vmatprep.subr.mxu0 %v952
      %1142 = vmatpush1.msra.mxu0 %v951
      %1143 = vmatprep.subr.mxu0 %v956
      %1144 = vmatpush1.msra.mxu0 %v955
      %1145 = vmatprep.subr.mxu0 %v960
      %1146 = vmatpush1.msra.mxu0 %v959
      %1147 = vmatprep.subr.mxu0 0.0
      %1148 = vmatpush1.msra.mxu0 0.0
      %1149 = vmatprep.subr.mxu0 0.0
      %1150 = vmatpush1.msra.mxu0 0.0
      %1151 = vmatprep.subr.mxu0 0.0
      %1152 = vmatpush1.msra.mxu0 0.0
      %1153 = vmatprep.subr.mxu0 0.0
      %1154 = vmatpush1.msra.mxu0 0.0
      %1155 = vmatprep.subr.mxu0 0.0
      %1156 = vmatpush1.msra.mxu0 0.0
      %1157 = vmatprep.subr.mxu0 0.0
      %1158 = vmatpush1.msra.mxu0 0.0
      %1159 = vmatprep.subr.mxu0 0.0
      %1160 = vmatpush1.msra.mxu0 0.0
      %1161 = vmatprep.subr.mxu0 0.0
      %1162 = vmatpush1.msra.mxu0 0.0
      %1163 = vmatprep.subr.mxu0 0.0
      %1164 = vmatpush1.msra.mxu0 0.0
      %1165 = vmatprep.subr.mxu0 0.0
      %1166 = vmatpush1.msra.mxu0 0.0
      %1167 = vmatprep.subr.mxu0 0.0
      %1168 = vmatpush1.msra.mxu0 0.0
      %1169 = vmatprep.subr.mxu0 0.0
      %1170 = vmatpush1.msra.mxu0 0.0
      %1171 = vmatprep.subr.mxu0 0.0
      %1172 = vmatpush1.msra.mxu0 0.0
      %1173 = vmatprep.subr.mxu0 0.0
      %1174 = vmatpush1.msra.mxu0 0.0
      %1175 = vmatprep.subr.mxu0 0.0
      %1176 = vmatpush1.msra.mxu0 0.0
      %1177 = vmatprep.subr.mxu0 0.0
      %1178 = vmatpush1.msra.mxu0 0.0
      %1179 = vmatprep.mubr.f32.mxu0 0.0
      %1180 = vmatmul.mubr.f32.gmra.mrb[0].mxu0 %v1043
      %v1181 = vpop.f32.mrb[0].mxu0
      %v1182 = vadd.f32 0.0, %v1181
      %v1183 = vpop.f32.mrb[0].mxu0
      %v1184 = vadd.f32 0.0, %v1183
      %1185 = vdwg.mxu0
      %v1186 = vadd.f32 %v1039, %v1111
      %v1187 = vadd.f32 %v1040, %v1113
      %v1188 = vadd.f32 %v1041, %v1182
      %v1189 = vadd.f32 %v1042, %v1184
      %s1190 = sshra.s32 %s1033, 3
      %s1191 = sand.u32 %s1033, 7
      %s1192 = smul.u32 %s1190, 4
      %s1193 = smul.addr %s1192, 8
      %s1194 = scalar_lea.vmem [#allocation3], %s1193
      %v1195 = vld [vmem:[%s1194] sm:$0xff]
      %v1196 = vld [vmem:[%s1194 + $0x8] sm:$0xff]
      %v1197 = vld [vmem:[%s1194 + $0x10] sm:$0xff]
      %v1198 = vld [vmem:[%s1194 + $0x18] sm:$0xff]
      %v1199 = vld [vmem:[#allocation6] sm:$0xff]
      %1200 = vmatprep.subr.mxu0 %v962
      %1201 = vmatpush1.msra.mxu0 %v961
      %1202 = vmatprep.subr.mxu0 %v966
      %1203 = vmatpush1.msra.mxu0 %v965
      %1204 = vmatprep.subr.mxu0 %v970
      %1205 = vmatpush1.msra.mxu0 %v969
      %1206 = vmatprep.subr.mxu0 %v974
      %1207 = vmatpush1.msra.mxu0 %v973
      %1208 = vmatprep.subr.mxu0 %v978
      %1209 = vmatpush1.msra.mxu0 %v977
      %1210 = vmatprep.subr.mxu0 %v982
      %1211 = vmatpush1.msra.mxu0 %v981
      %1212 = vmatprep.subr.mxu0 %v986
      %1213 = vmatpush1.msra.mxu0 %v985
      %1214 = vmatprep.subr.mxu0 %v990
      %1215 = vmatpush1.msra.mxu0 %v989
      %1216 = vmatprep.subr.mxu0 %v994
      %1217 = vmatpush1.msra.mxu0 %v993
      %1218 = vmatprep.subr.mxu0 %v998
      %1219 = vmatpush1.msra.mxu0 %v997
      %1220 = vmatprep.subr.mxu0 %v1002
      %1221 = vmatpush1.msra.mxu0 %v1001
      %1222 = vmatprep.subr.mxu0 %v1006
      %1223 = vmatpush1.msra.mxu0 %v1005
      %1224 = vmatprep.subr.mxu0 %v1010
      %1225 = vmatpush1.msra.mxu0 %v1009
      %1226 = vmatprep.subr.mxu0 %v1014
      %1227 = vmatpush1.msra.mxu0 %v1013
      %1228 = vmatprep.subr.mxu0 %v1018
      %1229 = vmatpush1.msra.mxu0 %v1017
      %1230 = vmatprep.subr.mxu0 %v1022
      %1231 = vmatpush1.msra.mxu0 %v1021
      %1232 = vmatprep.subr.mxu0 0.0
      %1233 = vmatpush1.msra.mxu0 0.0
      %1234 = vmatprep.subr.mxu0 0.0
      %1235 = vmatpush1.msra.mxu0 0.0
      %1236 = vmatprep.subr.mxu0 0.0
      %1237 = vmatpush1.msra.mxu0 0.0
      %1238 = vmatprep.subr.mxu0 0.0
      %1239 = vmatpush1.msra.mxu0 0.0
      %1240 = vmatprep.subr.mxu0 0.0
      %1241 = vmatpush1.msra.mxu0 0.0
      %1242 = vmatprep.subr.mxu0 0.0
      %1243 = vmatpush1.msra.mxu0 0.0
      %1244 = vmatprep.subr.mxu0 0.0
      %1245 = vmatpush1.msra.mxu0 0.0
      %1246 = vmatprep.subr.mxu0 0.0
      %1247 = vmatpush1.msra.mxu0 0.0
      %1248 = vmatprep.subr.mxu0 0.0
      %1249 = vmatpush1.msra.mxu0 0.0
      %1250 = vmatprep.subr.mxu0 0.0
      %1251 = vmatpush1.msra.mxu0 0.0
      %1252 = vmatprep.subr.mxu0 0.0
      %1253 = vmatpush1.msra.mxu0 0.0
      %1254 = vmatprep.subr.mxu0 0.0
      %1255 = vmatpush1.msra.mxu0 0.0
      %1256 = vmatprep.subr.mxu0 0.0
      %1257 = vmatpush1.msra.mxu0 0.0
      %1258 = vmatprep.subr.mxu0 0.0
      %1259 = vmatpush1.msra.mxu0 0.0
      %1260 = vmatprep.subr.mxu0 0.0
      %1261 = vmatpush1.msra.mxu0 0.0
      %1262 = vmatprep.subr.mxu0 0.0
      %1263 = vmatpush1.msra.mxu0 0.0
      %1264 = vmatprep.mubr.f32.mxu0 0.0
      %1265 = vmatmul.mubr.f32.gmra.mrb[0].mxu0 %v1199
      %v1266 = vpop.f32.mrb[0].mxu0
      %v1267 = vadd.f32 0.0, %v1266
      %v1268 = vpop.f32.mrb[0].mxu0
      %v1269 = vadd.f32 0.0, %v1268
      %1270 = vdwg.mxu0
      %1271 = vmatprep.subr.mxu0 %v964
      %1272 = vmatpush1.msra.mxu0 %v963
      %1273 = vmatprep.subr.mxu0 %v968
      %1274 = vmatpush1.msra.mxu0 %v967
      %1275 = vmatprep.subr.mxu0 %v972
      %1276 = vmatpush1.msra.mxu0 %v971
      %1277 = vmatprep.subr.mxu0 %v976
      %1278 = vmatpush1.msra.mxu0 %v975
      %1279 = vmatprep.subr.mxu0 %v980
      %1280 = vmatpush1.msra.mxu0 %v979
      %1281 = vmatprep.subr.mxu0 %v984
      %1282 = vmatpush1.msra.mxu0 %v983
      %1283 = vmatprep.subr.mxu0 %v988
      %1284 = vmatpush1.msra.mxu0 %v987
      %1285 = vmatprep.subr.mxu0 %v992
      %1286 = vmatpush1.msra.mxu0 %v991
      %1287 = vmatprep.subr.mxu0 %v996
      %1288 = vmatpush1.msra.mxu0 %v995
      %1289 = vmatprep.subr.mxu0 %v1000
      %1290 = vmatpush1.msra.mxu0 %v999
      %1291 = vmatprep.subr.mxu0 %v1004
      %1292 = vmatpush1.msra.mxu0 %v1003
      %1293 = vmatprep.subr.mxu0 %v1008
      %1294 = vmatpush1.msra.mxu0 %v1007
      %1295 = vmatprep.subr.mxu0 %v1012
      %1296 = vmatpush1.msra.mxu0 %v1011
      %1297 = vmatprep.subr.mxu0 %v1016
      %1298 = vmatpush1.msra.mxu0 %v1015
      %1299 = vmatprep.subr.mxu0 %v1020
      %1300 = vmatpush1.msra.mxu0 %v1019
      %1301 = vmatprep.subr.mxu0 %v1024
      %1302 = vmatpush1.msra.mxu0 %v1023
      %1303 = vmatprep.subr.mxu0 0.0
      %1304 = vmatpush1.msra.mxu0 0.0
      %1305 = vmatprep.subr.mxu0 0.0
      %1306 = vmatpush1.msra.mxu0 0.0
      %1307 = vmatprep.subr.mxu0 0.0
      %1308 = vmatpush1.msra.mxu0 0.0
      %1309 = vmatprep.subr.mxu0 0.0
      %1310 = vmatpush1.msra.mxu0 0.0
      %1311 = vmatprep.subr.mxu0 0.0
      %1312 = vmatpush1.msra.mxu0 0.0
      %1313 = vmatprep.subr.mxu0 0.0
      %1314 = vmatpush1.msra.mxu0 0.0
      %1315 = vmatprep.subr.mxu0 0.0
      %1316 = vmatpush1.msra.mxu0 0.0
      %1317 = vmatprep.subr.mxu0 0.0
      %1318 = vmatpush1.msra.mxu0 0.0
      %1319 = vmatprep.subr.mxu0 0.0
      %1320 = vmatpush1.msra.mxu0 0.0
      %1321 = vmatprep.subr.mxu0 0.0
      %1322 = vmatpush1.msra.mxu0 0.0
      %1323 = vmatprep.subr.mxu0 0.0
      %1324 = vmatpush1.msra.mxu0 0.0
      %1325 = vmatprep.subr.mxu0 0.0
      %1326 = vmatpush1.msra.mxu0 0.0
      %1327 = vmatprep.subr.mxu0 0.0
      %1328 = vmatpush1.msra.mxu0 0.0
      %1329 = vmatprep.subr.mxu0 0.0
      %1330 = vmatpush1.msra.mxu0 0.0
      %1331 = vmatprep.subr.mxu0 0.0
      %1332 = vmatpush1.msra.mxu0 0.0
      %1333 = vmatprep.subr.mxu0 0.0
      %1334 = vmatpush1.msra.mxu0 0.0
      %1335 = vmatprep.mubr.f32.mxu0 0.0
      %1336 = vmatmul.mubr.f32.gmra.mrb[0].mxu0 %v1199
      %v1337 = vpop.f32.mrb[0].mxu0
      %v1338 = vadd.f32 0.0, %v1337
      %v1339 = vpop.f32.mrb[0].mxu0
      %v1340 = vadd.f32 0.0, %v1339
      %1341 = vdwg.mxu0
      %v1342 = vadd.f32 %v1195, %v1267
      %v1343 = vadd.f32 %v1196, %v1269
      %v1344 = vadd.f32 %v1197, %v1338
      %v1345 = vadd.f32 %v1198, %v1340
      %v1346 = vld [vmem:[#allocation5] sm:$0xff]
      %v1347 = vxor.u32 %v1186, 2147483648
      %v1348 = vmul.f32 %v1347, 1.442695
      %v1349 = vpow.pop %v1348
      %v1350 = vadd.f32 %v1349, 1.0
      %v1351 = vrcp.pop %v1350
      %v1352 = vmul.f32 1.0, %v1351
      %v1353 = vxor.u32 %v1187, 2147483648
      %v1354 = vmul.f32 %v1353, 1.442695
      %v1355 = vpow.pop %v1354
      %v1356 = vadd.f32 %v1355, 1.0
      %v1357 = vrcp.pop %v1356
      %v1358 = vmul.f32 1.0, %v1357
      %v1359 = vtanh.pop %v1188
      %v1360 = vxor.u32 %v1189, 2147483648
      %v1361 = vmul.f32 %v1360, 1.442695
      %v1362 = vpow.pop %v1361
      %v1363 = vadd.f32 %v1362, 1.0
      %v1364 = vrcp.pop %v1363
      %v1365 = vmul.f32 1.0, %v1364
      %v1366 = vmul.f32 %v1358, %v1346
      %v1367 = vmul.f32 %v1352, %v1359
      %v1368 = vadd.f32 %v1366, %v1367
      %v1369 = vtanh.pop %v1368
      %v1370 = vmul.f32 %v1365, %v1369
      %v1371 = vld [vmem:[#allocation7] sm:$0xff]
      %v1372 = vxor.u32 %v1342, 2147483648
      %v1373 = vmul.f32 %v1372, 1.442695
      %v1374 = vpow.pop %v1373
      %v1375 = vadd.f32 %v1374, 1.0
      %v1376 = vrcp.pop %v1375
      %v1377 = vmul.f32 1.0, %v1376
      %v1378 = vxor.u32 %v1343, 2147483648
      %v1379 = vmul.f32 %v1378, 1.442695
      %v1380 = vpow.pop %v1379
      %v1381 = vadd.f32 %v1380, 1.0
      %v1382 = vrcp.pop %v1381
      %v1383 = vmul.f32 1.0, %v1382
      %v1384 = vtanh.pop %v1344
      %v1385 = vxor.u32 %v1345, 2147483648
      %v1386 = vmul.f32 %v1385, 1.442695
      %v1387 = vpow.pop %v1386
      %v1388 = vadd.f32 %v1387, 1.0
      %v1389 = vrcp.pop %v1388
      %v1390 = vmul.f32 1.0, %v1389
      %v1391 = vmul.f32 %v1383, %v1371
      %v1392 = vmul.f32 %v1377, %v1384
      %v1393 = vadd.f32 %v1391, %v1392
      %v1394 = vtanh.pop %v1393
      %v1395 = vmul.f32 %v1390, %v1394
      %1396 = vst [vmem:[#allocation4] sm:$0xff] %v1370
      %1397 = vst [vmem:[#allocation5] sm:$0xff] %v1368
      %1398 = vst [vmem:[#allocation6] sm:$0xff] %v1395
      %1399 = vst [vmem:[#allocation7] sm:$0xff] %v1393
      %p1400 = scmp.eq.s32.totalorder %s1026, 0
      // Predicated region
      $region53: #{bilstm_forward.3} parent=49 // pred_check
        %p1401 = pneg %p1400
      $region54: #{bilstm_forward.3} parent=49 // pred_check_branch
        %1403 = sbr.rel (%p1401) target = $region56
      $region55: #{bilstm_forward.3} parent=49 // pred_region
        %1404 = vst [vmem:[#allocation8] sm:$0xff] %v1395
      $region56: #{bilstm_forward.3} parent=49 // pred_fallthru
        _
    $region50: #{bilstm_forward.3} parent=1 // loop_footer
      %s1030 = sadd.s32 1, %s1026
    $region51: #{bilstm_forward.3} parent=1 // loop_footer_branch
      %1025 = sbr.rel target = $region47
    $region52: #{bilstm_forward.3} parent=1 // loop_exit
      _
    %v1405 = vld [vmem:[#allocation4] sm:$0xff]
    %v1406 = vld [vmem:[%s7] sm:$0xff]
    %v1407 = vld [vmem:[%s7 + $0x8] sm:$0xff]
    %v1408 = vld [vmem:[%s7 + $0x10] sm:$0xff]
    %v1409 = vld [vmem:[%s7 + $0x18] sm:$0xff]
    %v1410 = vld [vmem:[%s7 + $0x20] sm:$0xff]
    %v1411 = vld [vmem:[%s7 + $0x28] sm:$0xff]
    %v1412 = vld [vmem:[%s7 + $0x30] sm:$0xff]
    %v1413 = vld [vmem:[%s7 + $0x38] sm:$0xff]
    %v1414 = vld [vmem:[%s7 + $0x40] sm:$0xff]
    %v1415 = vld [vmem:[%s7 + $0x48] sm:$0xff]
    %v1416 = vld [vmem:[%s7 + $0x50] sm:$0xff]
    %v1417 = vld [vmem:[%s7 + $0x58] sm:$0xff]
    %v1418 = vld [vmem:[%s7 + $0x60] sm:$0xff]
    %v1419 = vld [vmem:[%s7 + $0x68] sm:$0xff]
    %v1420 = vld [vmem:[%s7 + $0x70] sm:$0xff]
    %v1421 = vld [vmem:[%s7 + $0x78] sm:$0xff]
    %v1422 = vld [vmem:[#allocation8] sm:$0xff]
    %v1423 = vld [vmem:[%s7 + $0x80] sm:$0xff]
    %v1424 = vld [vmem:[%s7 + $0x88] sm:$0xff]
    %v1425 = vld [vmem:[%s7 + $0x90] sm:$0xff]
    %v1426 = vld [vmem:[%s7 + $0x98] sm:$0xff]
    %v1427 = vld [vmem:[%s7 + $0xa0] sm:$0xff]
    %v1428 = vld [vmem:[%s7 + $0xa8] sm:$0xff]
    %v1429 = vld [vmem:[%s7 + $0xb0] sm:$0xff]
    %v1430 = vld [vmem:[%s7 + $0xb8] sm:$0xff]
    %v1431 = vld [vmem:[%s7 + $0xc0] sm:$0xff]
    %v1432 = vld [vmem:[%s7 + $0xc8] sm:$0xff]
    %v1433 = vld [vmem:[%s7 + $0xd0] sm:$0xff]
    %v1434 = vld [vmem:[%s7 + $0xd8] sm:$0xff]
    %v1435 = vld [vmem:[%s7 + $0xe0] sm:$0xff]
    %v1436 = vld [vmem:[%s7 + $0xe8] sm:$0xff]
    %v1437 = vld [vmem:[%s7 + $0xf0] sm:$0xff]
    %v1438 = vld [vmem:[%s7 + $0xf8] sm:$0xff]
    %1439 = vmatprep.subr.mxu0 0.0
    %1440 = vmatpush1.msra.mxu0 %v1423
    %1441 = vmatprep.subr.mxu0 0.0
    %1442 = vmatpush1.msra.mxu0 %v1424
    %1443 = vmatprep.subr.mxu0 0.0
    %1444 = vmatpush1.msra.mxu0 %v1425
    %1445 = vmatprep.subr.mxu0 0.0
    %1446 = vmatpush1.msra.mxu0 %v1426
    %1447 = vmatprep.subr.mxu0 0.0
    %1448 = vmatpush1.msra.mxu0 %v1427
    %1449 = vmatprep.subr.mxu0 0.0
    %1450 = vmatpush1.msra.mxu0 %v1428
    %1451 = vmatprep.subr.mxu0 0.0
    %1452 = vmatpush1.msra.mxu0 %v1429
    %1453 = vmatprep.subr.mxu0 0.0
    %1454 = vmatpush1.msra.mxu0 %v1430
    %1455 = vmatprep.subr.mxu0 0.0
    %1456 = vmatpush1.msra.mxu0 %v1431
    %1457 = vmatprep.subr.mxu0 0.0
    %1458 = vmatpush1.msra.mxu0 %v1432
    %1459 = vmatprep.subr.mxu0 0.0
    %1460 = vmatpush1.msra.mxu0 %v1433
    %1461 = vmatprep.subr.mxu0 0.0
    %1462 = vmatpush1.msra.mxu0 %v1434
    %1463 = vmatprep.subr.mxu0 0.0
    %1464 = vmatpush1.msra.mxu0 %v1435
    %1465 = vmatprep.subr.mxu0 0.0
    %1466 = vmatpush1.msra.mxu0 %v1436
    %1467 = vmatprep.subr.mxu0 0.0
    %1468 = vmatpush1.msra.mxu0 %v1437
    %1469 = vmatprep.subr.mxu0 0.0
    %1470 = vmatpush1.msra.mxu0 %v1438
    %1471 = vmatprep.subr.mxu0 0.0
    %1472 = vmatpush1.msra.mxu0 0.0
    %1473 = vmatprep.subr.mxu0 0.0
    %1474 = vmatpush1.msra.mxu0 0.0
    %1475 = vmatprep.subr.mxu0 0.0
    %1476 = vmatpush1.msra.mxu0 0.0
    %1477 = vmatprep.subr.mxu0 0.0
    %1478 = vmatpush1.msra.mxu0 0.0
    %1479 = vmatprep.subr.mxu0 0.0
    %1480 = vmatpush1.msra.mxu0 0.0
    %1481 = vmatprep.subr.mxu0 0.0
    %1482 = vmatpush1.msra.mxu0 0.0
    %1483 = vmatprep.subr.mxu0 0.0
    %1484 = vmatpush1.msra.mxu0 0.0
    %1485 = vmatprep.subr.mxu0 0.0
    %1486 = vmatpush1.msra.mxu0 0.0
    %1487 = vmatprep.subr.mxu0 0.0
    %1488 = vmatpush1.msra.mxu0 0.0
    %1489 = vmatprep.subr.mxu0 0.0
    %1490 = vmatpush1.msra.mxu0 0.0
    %1491 = vmatprep.subr.mxu0 0.0
    %1492 = vmatpush1.msra.mxu0 0.0
    %1493 = vmatprep.subr.mxu0 0.0
    %1494 = vmatpush1.msra.mxu0 0.0
    %1495 = vmatprep.subr.mxu0 0.0
    %1496 = vmatpush1.msra.mxu0 0.0
    %1497 = vmatprep.subr.mxu0 0.0
    %1498 = vmatpush1.msra.mxu0 0.0
    %1499 = vmatprep.subr.mxu0 0.0
    %1500 = vmatpush1.msra.mxu0 0.0
    %1501 = vmatprep.subr.mxu0 0.0
    %1502 = vmatpush1.msra.mxu0 0.0
    %1503 = vmatprep.mubr.f32.mxu0 0.0
    %1504 = vmatmul.mubr.f32.gmra.mrb[0].mxu0 %v1422
    %v1505 = vpop.f32.mrb[0].mxu0
    %v1506 = vadd.f32 0.0, %v1505
    %v1507 = vpop.f32.mrb[0].mxu0
    %1508 = vdwg.mxu0
    %1509 = vmatprep.subr.mxu0 0.0
    %1510 = vmatpush1.msra.mxu0 %v1406
    %1511 = vmatprep.subr.mxu0 0.0
    %1512 = vmatpush1.msra.mxu0 %v1407
    %1513 = vmatprep.subr.mxu0 0.0
    %1514 = vmatpush1.msra.mxu0 %v1408
    %1515 = vmatprep.subr.mxu0 0.0
    %1516 = vmatpush1.msra.mxu0 %v1409
    %1517 = vmatprep.subr.mxu0 0.0
    %1518 = vmatpush1.msra.mxu0 %v1410
    %1519 = vmatprep.subr.mxu0 0.0
    %1520 = vmatpush1.msra.mxu0 %v1411
    %1521 = vmatprep.subr.mxu0 0.0
    %1522 = vmatpush1.msra.mxu0 %v1412
    %1523 = vmatprep.subr.mxu0 0.0
    %1524 = vmatpush1.msra.mxu0 %v1413
    %1525 = vmatprep.subr.mxu0 0.0
    %1526 = vmatpush1.msra.mxu0 %v1414
    %1527 = vmatprep.subr.mxu0 0.0
    %1528 = vmatpush1.msra.mxu0 %v1415
    %1529 = vmatprep.subr.mxu0 0.0
    %1530 = vmatpush1.msra.mxu0 %v1416
    %1531 = vmatprep.subr.mxu0 0.0
    %1532 = vmatpush1.msra.mxu0 %v1417
    %1533 = vmatprep.subr.mxu0 0.0
    %1534 = vmatpush1.msra.mxu0 %v1418
    %1535 = vmatprep.subr.mxu0 0.0
    %1536 = vmatpush1.msra.mxu0 %v1419
    %1537 = vmatprep.subr.mxu0 0.0
    %1538 = vmatpush1.msra.mxu0 %v1420
    %1539 = vmatprep.subr.mxu0 0.0
    %1540 = vmatpush1.msra.mxu0 %v1421
    %1541 = vmatprep.subr.mxu0 0.0
    %1542 = vmatpush1.msra.mxu0 0.0
    %1543 = vmatprep.subr.mxu0 0.0
    %1544 = vmatpush1.msra.mxu0 0.0
    %1545 = vmatprep.subr.mxu0 0.0
    %1546 = vmatpush1.msra.mxu0 0.0
    %1547 = vmatprep.subr.mxu0 0.0
    %1548 = vmatpush1.msra.mxu0 0.0
    %1549 = vmatprep.subr.mxu0 0.0
    %1550 = vmatpush1.msra.mxu0 0.0
    %1551 = vmatprep.subr.mxu0 0.0
    %1552 = vmatpush1.msra.mxu0 0.0
    %1553 = vmatprep.subr.mxu0 0.0
    %1554 = vmatpush1.msra.mxu0 0.0
    %1555 = vmatprep.subr.mxu0 0.0
    %1556 = vmatpush1.msra.mxu0 0.0
    %1557 = vmatprep.subr.mxu0 0.0
    %1558 = vmatpush1.msra.mxu0 0.0
    %1559 = vmatprep.subr.mxu0 0.0
    %1560 = vmatpush1.msra.mxu0 0.0
    %1561 = vmatprep.subr.mxu0 0.0
    %1562 = vmatpush1.msra.mxu0 0.0
    %1563 = vmatprep.subr.mxu0 0.0
    %1564 = vmatpush1.msra.mxu0 0.0
    %1565 = vmatprep.subr.mxu0 0.0
    %1566 = vmatpush1.msra.mxu0 0.0
    %1567 = vmatprep.subr.mxu0 0.0
    %1568 = vmatpush1.msra.mxu0 0.0
    %1569 = vmatprep.subr.mxu0 0.0
    %1570 = vmatpush1.msra.mxu0 0.0
    %1571 = vmatprep.subr.mxu0 0.0
    %1572 = vmatpush1.msra.mxu0 0.0
    %1573 = vmatprep.mubr.f32.mxu0 0.0
    %1574 = vmatmul.mubr.f32.gmra.mrb[0].mxu0 %v1405
    %v1575 = vpop.f32.mrb[0].mxu0
    %v1576 = vadd.f32 %v1506, %v1575
    %v1577 = vpop.f32.mrb[0].mxu0
    %1578 = vdwg.mxu0
    %v1579 = vld [vmem:[%s8] sm:$0x1]
    %v1581 = vlaneseq
    %v1582 = vshrl.u32 %v1581, 7
    %v1583 = vsub.s32 0, %v1582
    %v1584 = vrot.slane %v1579, %v1583
    %v1586 = vadd.f32 %v1576, %v1584
    %1587 = vmax.xlane.f32.xlu0 %v1586
    %v1588 = vpop.xlane.xlu0 %1587
    %v1589 = vsub.f32 %v1586, %v1588
    %v1590 = vmul.f32 %v1589, 1.442695
    %v1591 = vpow.pop %v1590
    %1592 = vadd.xlane.f32.xlu0 %v1591
    %v1593 = vpop.xlane.xlu0 %1592
    %v1594 = vrcp.pop %v1593
    %v1595 = vmul.f32 %v1591, %v1594
    %1596 = vst [vmem:[%s9] sm:$0xff] %v1595
    // Predicated region
    $region57: #{bilstm_forward.3} parent=1 // pred_check
      _
    $region58: #{bilstm_forward.3} parent=1 // pred_check_branch
      %1598 = sbr.rel (0) target = $region60
    $region59: #{bilstm_forward.3} parent=1 // pred_region
      _
    $region60: #{bilstm_forward.3} parent=1 // pred_fallthru
      _
    // Predicated region
    $region61: #{bilstm_forward.3} parent=1 // pred_check
      _
    $region62: #{bilstm_forward.3} parent=1 // pred_check_branch
      %1600 = sbr.rel (0) target = $region64
    $region63: #{bilstm_forward.3} parent=1 // pred_region
      _
    $region64: #{bilstm_forward.3} parent=1 // pred_fallthru
      _
    %1601 = vsyncpa [#allocation10], 1
    %1602 = vsyncpa [#allocation12], 1

</llo_original>
